<compile_context>
chip_gen: v7x
topology: tpu7x:2x2x1
jax: 0.10.0
libtpu: 0.0.40
codegen_flags: <defaults>
</compile_context>

<pallas_src>
import functools
import math

import jax
import jax.numpy as jnp
from jax.experimental import pallas as pl
from jax.experimental.pallas import tpu as pltpu


def _round_up(x, m):
    return (x + m - 1) // m * m


# ----------------------------- Pallas kernels ------------------------------

def _linear_kernel(x_ref, w_ref, b_ref, o_ref, acc_ref, *, activation):
    k = pl.program_id(2)

    @pl.when(k == 0)
    def _():
        acc_ref[...] = jnp.zeros_like(acc_ref)

    acc_ref[...] += jnp.dot(x_ref[...], w_ref[...],
                            preferred_element_type=jnp.float32)

    @pl.when(k == pl.num_programs(2) - 1)
    def _():
        r = acc_ref[...] + b_ref[...].astype(jnp.float32)
        if activation == "relu":
            r = jnp.maximum(r, 0.0)
        o_ref[...] = r.astype(o_ref.dtype)


def pallas_linear(x, w, b, activation=None, tm=512, tk=512, tn=512):
    """y = x @ w + b  (w stored (in, out)); optional fused ReLU.

    Tiled over (M, N, K) with a float32 VMEM accumulator; tiles are capped by
    the (padded) problem size so demo shapes and production shapes both work.
    Tile budget (512^3 f32 ~ 6 MiB of double-buffered VMEM) is safe on v5e /
    v6e (128 MiB) and v7x (64 MiB).
    # NOTE: for peak v6e/v7x MXU rate operands could be cast to bf16 here
    # (accumulation stays f32); kept f32 to match PyTorch numerics exactly.
    """
    K, N = w.shape
    lead = x.shape[:-1]
    x2 = x.reshape(-1, K)
    M = x2.shape[0]

    tm = min(tm, _round_up(M, 8))
    tk = min(tk, _round_up(K, 128))
    tn = min(tn, _round_up(N, 128))
    Mp, Kp, Np = _round_up(M, tm), _round_up(K, tk), _round_up(N, tn)

    if (Mp, Kp) != (M, K):
        x2 = jnp.pad(x2, ((0, Mp - M), (0, Kp - K)))
    wp = w if (Kp, Np) == (K, N) else jnp.pad(w, ((0, Kp - K), (0, Np - N)))
    bp = b if Np == N else jnp.pad(b, (0, Np - N))

    out = pl.pallas_call(
        functools.partial(_linear_kernel, activation=activation),
        out_shape=jax.ShapeDtypeStruct((Mp, Np), x.dtype),
        grid=(Mp // tm, Np // tn, Kp // tk),
        in_specs=[
            pl.BlockSpec((tm, tk), lambda i, j, k: (i, k)),
            pl.BlockSpec((tk, tn), lambda i, j, k: (k, j)),
            pl.BlockSpec((1, tn), lambda i, j, k: (0, j)),
        ],
        out_specs=pl.BlockSpec((tm, tn), lambda i, j, k: (i, j)),
        scratch_shapes=[pltpu.VMEM((tm, tn), jnp.float32)],
        compiler_params=pltpu.CompilerParams(
            dimension_semantics=("parallel", "parallel", "arbitrary"),
            vmem_limit_bytes=48 * 1024 * 1024),
    )(x2, wp, bp.reshape(1, Np))
    out = out[:M, :N]
    return out.reshape(lead + (N,))


def _add_ln_kernel(x_ref, r_ref, g_ref, b_ref, o_ref, *, eps):
    v = x_ref[...].astype(jnp.float32) + r_ref[...].astype(jnp.float32)
    mean = jnp.mean(v, axis=-1, keepdims=True)
    c = v - mean
    var = jnp.mean(c * c, axis=-1, keepdims=True)
    y = c * jax.lax.rsqrt(var + eps)
    o_ref[...] = (y * g_ref[...] + b_ref[...]).astype(o_ref.dtype)


def pallas_add_layernorm(x, residual, gamma, beta, eps=1e-5, tm=256):
    """LayerNorm(residual + x), row-tiled (dropout is identity in eval).

    Residual input is aliased to the output to avoid an extra HBM allocation.
    """
    D = x.shape[-1]
    lead = x.shape[:-1]
    x2 = x.reshape(-1, D)
    r2 = residual.reshape(-1, D)
    M = x2.shape[0]
    tm = min(tm, _round_up(M, 8))
    Mp = _round_up(M, tm)
    if Mp != M:
        x2 = jnp.pad(x2, ((0, Mp - M), (0, 0)))
        r2 = jnp.pad(r2, ((0, Mp - M), (0, 0)))
    out = pl.pallas_call(
        functools.partial(_add_ln_kernel, eps=eps),
        out_shape=jax.ShapeDtypeStruct((Mp, D), x.dtype),
        grid=(Mp // tm,),
        in_specs=[
            pl.BlockSpec((tm, D), lambda i: (i, 0)),
            pl.BlockSpec((tm, D), lambda i: (i, 0)),
            pl.BlockSpec((1, D), lambda i: (0, 0)),
            pl.BlockSpec((1, D), lambda i: (0, 0)),
        ],
        out_specs=pl.BlockSpec((tm, D), lambda i: (i, 0)),
        input_output_aliases={1: 0},
        compiler_params=pltpu.CompilerParams(
            dimension_semantics=("parallel",)),
    )(x2, r2, gamma.reshape(1, D), beta.reshape(1, D))
    return out[:M].reshape(lead + (D,))


def _mha_kernel(q_ref, k_ref, v_ref, o_ref, *, n_heads, scale):
    # One batch item per grid step; all heads handled inside the kernel so the
    # (Nq, D) output store is lane-dense and no JAX-level head transposes exist.
    q = q_ref[0].astype(jnp.float32)
    k = k_ref[0].astype(jnp.float32)
    v = v_ref[0].astype(jnp.float32)
    D = q.shape[-1]
    Dh = D // n_heads
    outs = []
    for h in range(n_heads):              # static unroll, data stays in VMEM
        sl = slice(h * Dh, (h + 1) * Dh)
        qh, kh, vh = q[:, sl], k[:, sl], v[:, sl]
        s = jax.lax.dot_general(qh, kh, (((1,), (1,)), ((), ())),
                                preferred_element_type=jnp.float32) * scale
        s = s - jnp.max(s, axis=-1, keepdims=True)
        p = jnp.exp(s)
        p = p * pl.reciprocal(jnp.sum(p, axis=-1, keepdims=True), approx=True)
        outs.append(jnp.dot(p, vh, preferred_element_type=jnp.float32))
    o_ref[0] = jnp.concatenate(outs, axis=-1).astype(o_ref.dtype)


def pallas_mha(q, k, v, n_heads):
    """q,k,v: (B, Nq, D). Standard softmax attention; heads split in-kernel."""
    B, Nq, D = q.shape
    scale = 1.0 / math.sqrt(D // n_heads)
    return pl.pallas_call(
        functools.partial(_mha_kernel, n_heads=n_heads, scale=scale),
        out_shape=jax.ShapeDtypeStruct((B, Nq, D), q.dtype),
        grid=(B,),
        in_specs=[pl.BlockSpec((1, Nq, D), lambda b: (b, 0, 0))] * 3,
        out_specs=pl.BlockSpec((1, Nq, D), lambda b: (b, 0, 0)),
        compiler_params=pltpu.CompilerParams(
            dimension_semantics=("parallel",)),
    )(q, k, v)


# --------------------------- MSDeformAttn (JAX glue) -----------------------

def ms_deform_attn_core(value, spatial_shapes, sampling_locations, attention_weights):
    # value: (B, S, Hn, Dh); locations in [0,1]; weights (B, Lq, Hn, L, P)
    # TODO(synk): the bilinear grid-sample gather is data-dependent; kept in
    # plain JAX, but consolidated into ONE take_along_axis over all
    # levels x corners (level offsets folded into the flat index) instead of
    # 4 levels x 4 corners separate gathers.
    B, S, Hn, Dh = value.shape
    _, Lq, _, L, P, _ = sampling_locations.shape
    v_t = jnp.transpose(value, (0, 2, 1, 3))                     # (B,Hn,S,Dh)

    idx_all, w_all = [], []
    start = 0
    for lid, (H_, W_) in enumerate(spatial_shapes):
        g = sampling_locations[:, :, :, lid]                     # (B,Lq,Hn,P,2)
        x = g[..., 0] * W_ - 0.5                                 # align_corners=False
        y = g[..., 1] * H_ - 0.5
        x0 = jnp.floor(x)
        y0 = jnp.floor(y)
        lx = x - x0
        ly = y - y0
        aw_l = attention_weights[:, :, :, lid]                   # (B,Lq,Hn,P)
        for dy, dx, w in ((0, 0, (1 - ly) * (1 - lx)), (0, 1, (1 - ly) * lx),
                          (1, 0, ly * (1 - lx)), (1, 1, ly * lx)):
            xi = x0 + dx
            yi = y0 + dy
            valid = ((xi >= 0) & (xi < W_) & (yi >= 0) & (yi < H_)).astype(jnp.float32)
            xi_c = jnp.clip(xi, 0, W_ - 1).astype(jnp.int32)
            yi_c = jnp.clip(yi, 0, H_ - 1).astype(jnp.int32)
            idx_all.append(start + yi_c * W_ + xi_c)             # (B,Lq,Hn,P)
            w_all.append(w * valid * aw_l)
        start += H_ * W_

    nc = len(idx_all)                                            # 4 * L
    idx = jnp.stack(idx_all, axis=-1)                            # (B,Lq,Hn,P,4L)
    wgt = jnp.stack(w_all, axis=-1)
    idx = jnp.transpose(idx, (0, 2, 1, 3, 4)).reshape(B, Hn, Lq * P * nc)
    wgt = jnp.transpose(wgt, (0, 2, 1, 3, 4)).reshape(B, Hn, Lq, P * nc)
    gathered = jnp.take_along_axis(v_t, idx[..., None], axis=2)  # (B,Hn,LqP4L,Dh)
    gathered = gathered.reshape(B, Hn, Lq, P * nc, Dh)
    out = jnp.sum(gathered * wgt[..., None], axis=3)             # (B,Hn,Lq,Dh)
    return jnp.transpose(out, (0, 2, 1, 3)).reshape(B, Lq, Hn * Dh)


def ms_deform_attn(p, query, reference_points, input_flatten, spatial_shapes,
                   padding_mask, cfg):
    B, Lq, D = query.shape
    Hn = cfg["n_heads"]
    L = len(spatial_shapes)
    P = p["so_b"].shape[0] // (Hn * L * 2)
    S = input_flatten.shape[1]

    value = pallas_linear(input_flatten, p["vp_w"], p["vp_b"])
    if padding_mask is not None:
        value = jnp.where(padding_mask[..., None], 0.0, value)
    value = value.reshape(B, S, Hn, D // Hn)

    offsets = pallas_linear(query, p["so_w"], p["so_b"]).reshape(B, Lq, Hn, L, P, 2)
    aw = pallas_linear(query, p["aw_w"], p["aw_b"]).reshape(B, Lq, Hn, L * P)
    aw = jax.nn.softmax(aw, axis=-1).reshape(B, Lq, Hn, L, P)

    normalizer = jnp.array([[w, h] for (h, w) in spatial_shapes], jnp.float32)  # (L,2)
    loc = (reference_points[:, :, None, :, None, :]
           + offsets / normalizer[None, None, None, :, None, :])

    out = ms_deform_attn_core(value, spatial_shapes, loc, aw)
    return pallas_linear(out, p["op_w"], p["op_b"])


# ------------------------------ Encoder / Decoder ---------------------------

def get_valid_ratio(mask):
    _, H, W = mask.shape
    valid_H = jnp.sum(~mask[:, :, 0], axis=1).astype(jnp.float32)
    valid_W = jnp.sum(~mask[:, 0, :], axis=1).astype(jnp.float32)
    return jnp.stack([valid_W / W, valid_H / H], -1)


def get_encoder_reference_points(spatial_shapes, valid_ratios):
    ref_list = []
    for lvl, (H_, W_) in enumerate(spatial_shapes):
        ref_y, ref_x = jnp.meshgrid(
            jnp.linspace(0.5, H_ - 0.5, H_, dtype=jnp.float32),
            jnp.linspace(0.5, W_ - 0.5, W_, dtype=jnp.float32),
            indexing="ij")
        ref_y = ref_y.reshape(-1)[None] / (valid_ratios[:, None, lvl, 1] * H_)
        ref_x = ref_x.reshape(-1)[None] / (valid_ratios[:, None, lvl, 0] * W_)
        ref_list.append(jnp.stack((ref_x, ref_y), -1))
    reference_points = jnp.concatenate(ref_list, 1)
    return reference_points[:, :, None] * valid_ratios[:, None]


def encoder_layer_forward(p, src, pos, reference_points, spatial_shapes,
                          padding_mask, cfg):
    src2 = ms_deform_attn(p["self_attn"], src + pos, reference_points, src,
                          spatial_shapes, padding_mask, cfg)
    src = pallas_add_layernorm(src2, src, p["norm1_g"], p["norm1_b"])
    h = pallas_linear(src, p["lin1_w"], p["lin1_b"], activation="relu")
    src2 = pallas_linear(h, p["lin2_w"], p["lin2_b"])
    src = pallas_add_layernorm(src2, src, p["norm2_g"], p["norm2_b"])
    return src


def encoder_forward(p, src, spatial_shapes, valid_ratios, pos, padding_mask, cfg):
    output = src
    reference_points = get_encoder_reference_points(spatial_shapes, valid_ratios)
    for lp in p["layers"]:
        output = encoder_layer_forward(lp, output, pos, reference_points,
                                       spatial_shapes, padding_mask, cfg)
    return output


def decoder_layer_forward(p, tgt, query_pos, reference_points, src,
                          spatial_shapes, src_padding_mask, cfg):
    B, Nq, D = tgt.shape
    Hn = cfg["n_heads"]

    # self attention (nn.MultiheadAttention, query_attn_mask=None)
    # Q and K share the same input (tgt+pos): fuse their projections into one
    # (D, 2D) matmul; V uses tgt (no pos) so it gets its own (D, D) matmul.
    q_in = tgt + query_pos
    qk = pallas_linear(q_in, p["in_w"][:, :2 * D], p["in_b"][:2 * D])
    qp, kp = qk[..., :D], qk[..., D:]
    vp = pallas_linear(tgt, p["in_w"][:, 2 * D:], p["in_b"][2 * D:])

    attn = pallas_mha(qp, kp, vp, n_heads=Hn)        # heads handled in-kernel
    tgt2 = pallas_linear(attn, p["out_w"], p["out_b"])
    tgt = pallas_add_layernorm(tgt2, tgt, p["norm2_g"], p["norm2_b"])

    # cross deformable attention
    tgt2 = ms_deform_attn(p["cross_attn"], tgt + query_pos, reference_points, src,
                          spatial_shapes, src_padding_mask, cfg)
    tgt = pallas_add_layernorm(tgt2, tgt, p["norm1_g"], p["norm1_b"])

    # FFN
    h = pallas_linear(tgt, p["lin1_w"], p["lin1_b"], activation="relu")
    tgt2 = pallas_linear(h, p["lin2_w"], p["lin2_b"])
    tgt = pallas_add_layernorm(tgt2, tgt, p["norm3_g"], p["norm3_b"])
    return tgt


def decoder_forward(p, tgt, reference_points, src, spatial_shapes, valid_ratios,
                    query_pos, src_padding_mask, cfg):
    # return_intermediate=False, bbox embeds are None -> reference points unchanged
    output = tgt
    for lp in p["layers"]:
        reference_points_input = reference_points[:, :, None] * valid_ratios[:, None]
        output = decoder_layer_forward(lp, output, query_pos, reference_points_input,
                                       src, spatial_shapes, src_padding_mask, cfg)
    return output, reference_points


# ------------------------------ Top-level forward ---------------------------

def deformable_transformer_forward(params, srcs, masks, pos_embeds, query_embed, cfg):
    spatial_shapes = tuple((int(s.shape[2]), int(s.shape[3])) for s in srcs)

    src_flat, mask_flat, pos_flat = [], [], []
    for lvl, (src, mask, pos) in enumerate(zip(srcs, masks, pos_embeds)):
        B, C, H, W = src.shape
        src_flat.append(src.reshape(B, C, H * W).transpose(0, 2, 1))
        mask_flat.append(mask.reshape(B, H * W))
        pos_flat.append(pos.reshape(B, C, H * W).transpose(0, 2, 1)
                        + params["level_embed"][lvl][None, None, :])
    src_flatten = jnp.concatenate(src_flat, 1)
    mask_flatten = jnp.concatenate(mask_flat, 1)
    lvl_pos_embed_flatten = jnp.concatenate(pos_flat, 1)
    valid_ratios = jnp.stack([get_valid_ratio(m) for m in masks], 1)

    memory = encoder_forward(params["encoder"], src_flatten, spatial_shapes,
                             valid_ratios, lvl_pos_embed_flatten, mask_flatten, cfg)

    B = memory.shape[0]
    query_embed_, tgt = jnp.split(query_embed, 2, axis=1)
    query_embed_ = jnp.broadcast_to(query_embed_[None], (B,) + query_embed_.shape)
    tgt = jnp.broadcast_to(tgt[None], (B,) + tgt.shape)
    # Reference-point head has output dim 2 (<< 128 lanes): plain XLA matmul
    # avoids masked partial-store Pallas output tiles.
    reference_points = jax.nn.sigmoid(
        jnp.dot(query_embed_, params["ref_w"]) + params["ref_b"])
    init_reference_out = reference_points

    hs, inter_references = decoder_forward(params["decoder"], tgt, reference_points,
                                           memory, spatial_shapes, valid_ratios,
                                           query_embed_, mask_flatten, cfg)
    return hs, memory, init_reference_out, inter_references


# ------------------------------ Parameter init ------------------------------

def _xavier(key, fan_in, fan_out):
    a = math.sqrt(6.0 / (fan_in + fan_out))
    return jax.random.uniform(key, (fan_in, fan_out), jnp.float32, minval=-a, maxval=a)


def init_msdeform(key, D, L, Hn, P):
    k1, k2 = jax.random.split(key)
    # MSDeformAttn._reset_parameters: zero weight, directional grid bias for offsets
    thetas = jnp.arange(Hn, dtype=jnp.float32) * (2.0 * math.pi / Hn)
    grid = jnp.stack([jnp.cos(thetas), jnp.sin(thetas)], -1)
    grid = grid / jnp.max(jnp.abs(grid), axis=-1, keepdims=True)
    grid = jnp.tile(grid[:, None, None, :], (1, L, P, 1))
    grid = grid * jnp.arange(1, P + 1, dtype=jnp.float32)[None, None, :, None]
    return dict(
        so_w=jnp.zeros((D, Hn * L * P * 2), jnp.float32),
        so_b=grid.reshape(-1),
        aw_w=jnp.zeros((D, Hn * L * P), jnp.float32),
        aw_b=jnp.zeros((Hn * L * P,), jnp.float32),
        vp_w=_xavier(k1, D, D),
        vp_b=jnp.zeros((D,), jnp.float32),
        op_w=_xavier(k2, D, D),
        op_b=jnp.zeros((D,), jnp.float32),
    )


def init_encoder_layer(key, D, F, L, Hn, P):
    ks = jax.random.split(key, 3)
    return dict(
        self_attn=init_msdeform(ks[0], D, L, Hn, P),
        norm1_g=jnp.ones((D,), jnp.float32), norm1_b=jnp.zeros((D,), jnp.float32),
        lin1_w=_xavier(ks[1], D, F), lin1_b=jnp.zeros((F,), jnp.float32),
        lin2_w=_xavier(ks[2], F, D), lin2_b=jnp.zeros((D,), jnp.float32),
        norm2_g=jnp.ones((D,), jnp.float32), norm2_b=jnp.zeros((D,), jnp.float32),
    )


def init_decoder_layer(key, D, F, L, Hn, P):
    ks = jax.random.split(key, 5)
    return dict(
        cross_attn=init_msdeform(ks[0], D, L, Hn, P),
        norm1_g=jnp.ones((D,), jnp.float32), norm1_b=jnp.zeros((D,), jnp.float32),
        in_w=_xavier(ks[1], D, 3 * D), in_b=jnp.zeros((3 * D,), jnp.float32),
        out_w=_xavier(ks[2], D, D), out_b=jnp.zeros((D,), jnp.float32),
        norm2_g=jnp.ones((D,), jnp.float32), norm2_b=jnp.zeros((D,), jnp.float32),
        lin1_w=_xavier(ks[3], D, F), lin1_b=jnp.zeros((F,), jnp.float32),
        lin2_w=_xavier(ks[4], F, D), lin2_b=jnp.zeros((D,), jnp.float32),
        norm3_g=jnp.ones((D,), jnp.float32), norm3_b=jnp.zeros((D,), jnp.float32),
    )


def init_params(key, cfg):
    D, F, L, Hn = cfg["d_model"], cfg["d_ffn"], cfg["n_levels"], cfg["n_heads"]
    n_enc, n_dec = cfg["num_encoder_layers"], cfg["num_decoder_layers"]
    keys = jax.random.split(key, 2 + n_enc + n_dec)
    enc = [init_encoder_layer(keys[2 + i], D, F, L, Hn, cfg["enc_n_points"])
           for i in range(n_enc)]
    dec = [init_decoder_layer(keys[2 + n_enc + i], D, F, L, Hn, cfg["dec_n_points"])
           for i in range(n_dec)]
    return dict(
        level_embed=jax.random.normal(keys[0], (L, D), jnp.float32),
        ref_w=_xavier(keys[1], D, 2),
        ref_b=jnp.zeros((2,), jnp.float32),
        encoder=dict(layers=enc),
        decoder=dict(layers=dec),
    )


# ----------------------------------- Main -----------------------------------

if __name__ == "__main__":
    cfg = dict(d_model=32, n_heads=4, d_ffn=64, n_levels=2,
               num_encoder_layers=2, num_decoder_layers=2,
               enc_n_points=2, dec_n_points=2, num_queries=8)

    key = jax.random.PRNGKey(0)
    kp, k_src, k_pos, kq = jax.random.split(key, 4)
    params = init_params(kp, cfg)

    B = 2
    level_shapes = [(8, 8), (4, 4)]
    src_keys = jax.random.split(k_src, len(level_shapes))
    pos_keys = jax.random.split(k_pos, len(level_shapes))
    srcs = [jax.random.normal(src_keys[i], (B, cfg["d_model"], h, w), jnp.float32)
            for i, (h, w) in enumerate(level_shapes)]
    pos_embeds = [jax.random.normal(pos_keys[i], (B, cfg["d_model"], h, w), jnp.float32)
                  for i, (h, w) in enumerate(level_shapes)]
    masks = [jnp.zeros((B, h, w), jnp.bool_) for (h, w) in level_shapes]
    query_embed = jax.random.normal(kq, (cfg["num_queries"], 2 * cfg["d_model"]),
                                    jnp.float32)

    fwd = jax.jit(functools.partial(deformable_transformer_forward, cfg=cfg))
    hs, memory, init_ref, inter_ref = fwd(params, srcs, masks, pos_embeds, query_embed)
    jax.block_until_ready((hs, memory, init_ref, inter_ref))

    S = sum(h * w for h, w in level_shapes)
    assert hs.shape == (B, cfg["num_queries"], cfg["d_model"])
    assert memory.shape == (B, S, cfg["d_model"])
    assert init_ref.shape == (B, cfg["num_queries"], 2)
    assert inter_ref.shape == (B, cfg["num_queries"], 2)
    assert bool(jnp.all(jnp.isfinite(hs))) and bool(jnp.all(jnp.isfinite(memory)))
    print("KERNEL_OK")
</pallas_src>

<mosaic_0001>
module attributes {stable_mosaic.version = 11 : i64} {
  func.func @_linear_kernel(%arg0: i32, %arg1: i32, %arg2: i32, %arg3: memref<160x128xf32, #tpu.memory_space<vmem>>, %arg4: memref<128x128xf32, #tpu.memory_space<vmem>>, %arg5: memref<1x128xf32, #tpu.memory_space<vmem>>, %arg6: memref<160x128xf32, #tpu.memory_space<vmem>>, %arg7: memref<160x128xf32, #tpu.memory_space<vmem>>) attributes {dimension_semantics = [#tpu.dimension_semantics<parallel>, #tpu.dimension_semantics<parallel>, #tpu.dimension_semantics<arbitrary>], iteration_bounds = array<i64: 1, 1, 1>, scalar_prefetch = 0 : i64, scratch_operands = 1 : i64, tpu.core_type = #tpu.core_type<tc>, window_params = [{transform_indices = @transform_0, window_bounds = array<i64: 160, 128>}, {transform_indices = @transform_1, window_bounds = array<i64: 128, 128>}, {transform_indices = @transform_2, window_bounds = array<i64: 1, 128>}, {transform_indices = @transform_3, window_bounds = array<i64: 160, 128>}]} {
    %c0_i32 = arith.constant 0 : i32
    %0 = arith.cmpi eq, %arg2, %c0_i32 : i32
    %1 = arith.extui %0 : i1 to i32
    %c0_i32_0 = arith.constant 0 : i32
    %2 = arith.cmpi ne, %1, %c0_i32_0 : i32
    scf.if %2 {
      %cst_10 = arith.constant 0.000000e+00 : f32
      %12 = vector.broadcast %cst_10 : f32 to vector<160x128xf32>
      %c0_11 = arith.constant 0 : index
      %c0_12 = arith.constant 0 : index
      %13 = vector.load %arg7[%c0_11, %c0_12] : memref<160x128xf32, #tpu.memory_space<vmem>>, vector<160x128xf32>
      tpu.vector_store %arg7[%c0_11, %c0_12], %12 {strides = array<i32>} : memref<160x128xf32, #tpu.memory_space<vmem>>, vector<160x128xf32>,
    } else {
    }
    %c0 = arith.constant 0 : index
    %c0_1 = arith.constant 0 : index
    %3 = vector.load %arg7[%c0, %c0_1] : memref<160x128xf32, #tpu.memory_space<vmem>>, vector<160x128xf32>
    %c0_2 = arith.constant 0 : index
    %c0_3 = arith.constant 0 : index
    %4 = vector.load %arg3[%c0_2, %c0_3] : memref<160x128xf32, #tpu.memory_space<vmem>>, vector<160x128xf32>
    %c0_4 = arith.constant 0 : index
    %c0_5 = arith.constant 0 : index
    %5 = vector.load %arg4[%c0_4, %c0_5] : memref<128x128xf32, #tpu.memory_space<vmem>>, vector<128x128xf32>
    %cst = arith.constant dense<0.000000e+00> : vector<160x128xf32>
    %6 = tpu.matmul %4, %5, %cst {dimension_numbers = #tpu.dot_dimension_numbers<[1], [0], [0], [1], [0, 0, 1, 1], [], []>} : vector<160x128xf32>, vector<128x128xf32>, vector<160x128xf32> -> vector<160x128xf32>
    %7 = arith.addf %3, %6 : vector<160x128xf32>
    %c0_6 = arith.constant 0 : index
    %c0_7 = arith.constant 0 : index
    %8 = vector.load %arg7[%c0_6, %c0_7] : memref<160x128xf32, #tpu.memory_space<vmem>>, vector<160x128xf32>
    tpu.vector_store %arg7[%c0_6, %c0_7], %7 {strides = array<i32>} : memref<160x128xf32, #tpu.memory_space<vmem>>, vector<160x128xf32>,
    %c0_i32_8 = arith.constant 0 : i32
    %9 = arith.cmpi eq, %arg2, %c0_i32_8 : i32
    %10 = arith.extui %9 : i1 to i32
    %c0_i32_9 = arith.constant 0 : i32
    %11 = arith.cmpi ne, %10, %c0_i32_9 : i32
    scf.if %11 {
      %c0_10 = arith.constant 0 : index
      %c0_11 = arith.constant 0 : index
      %12 = vector.load %arg7[%c0_10, %c0_11] : memref<160x128xf32, #tpu.memory_space<vmem>>, vector<160x128xf32>
      %c0_12 = arith.constant 0 : index
      %c0_13 = arith.constant 0 : index
      %13 = vector.load %arg5[%c0_12, %c0_13] : memref<1x128xf32, #tpu.memory_space<vmem>>, vector<1x128xf32>
      %14 = vector.broadcast %13 : vector<1x128xf32> to vector<160x128xf32>
      %15 = arith.addf %12, %14 : vector<160x128xf32>
      %c0_14 = arith.constant 0 : index
      %c0_15 = arith.constant 0 : index
      %16 = vector.load %arg6[%c0_14, %c0_15] : memref<160x128xf32, #tpu.memory_space<vmem>>, vector<160x128xf32>
      tpu.vector_store %arg6[%c0_14, %c0_15], %15 {strides = array<i32>} : memref<160x128xf32, #tpu.memory_space<vmem>>, vector<160x128xf32>,
    } else {
    }
    return
  }
  func.func @transform_0(%arg0: i32, %arg1: i32, %arg2: i32) -> (i32, i32) {
    %c0_i32 = arith.constant 0 : i32
    return %arg0, %arg2 : i32, i32
  }
  func.func @transform_1(%arg0: i32, %arg1: i32, %arg2: i32) -> (i32, i32) {
    %c0_i32 = arith.constant 0 : i32
    return %arg2, %arg1 : i32, i32
  }
  func.func @transform_2(%arg0: i32, %arg1: i32, %arg2: i32) -> (i32, i32) {
    %c0_i32 = arith.constant 0 : i32
    %c0_i32_0 = arith.constant 0 : i32
    return %c0_i32, %arg1 : i32, i32
  }
  func.func @transform_3(%arg0: i32, %arg1: i32, %arg2: i32) -> (i32, i32) {
    %c0_i32 = arith.constant 0 : i32
    return %arg0, %arg1 : i32, i32
  }
}

module attributes {stable_mosaic.version = 11 : i64} {
  func.func @_add_ln_kernel(%arg0: i32, %arg1: memref<160x32xf32, #tpu.memory_space<vmem>>, %arg2: memref<160x32xf32, #tpu.memory_space<vmem>>, %arg3: memref<1x32xf32, #tpu.memory_space<vmem>>, %arg4: memref<1x32xf32, #tpu.memory_space<vmem>>, %arg5: memref<160x32xf32, #tpu.memory_space<vmem>>) attributes {dimension_semantics = [#tpu.dimension_semantics<parallel>], iteration_bounds = array<i64: 1>, scalar_prefetch = 0 : i64, scratch_operands = 0 : i64, tpu.core_type = #tpu.core_type<tc>, window_params = [{transform_indices = @transform_0, window_bounds = array<i64: 160, 32>}, {transform_indices = @transform_1, window_bounds = array<i64: 160, 32>}, {pipeline_mode = #tpu.pipeline_mode<synchronous>, transform_indices = @transform_2, window_bounds = array<i64: 1, 32>}, {pipeline_mode = #tpu.pipeline_mode<synchronous>, transform_indices = @transform_3, window_bounds = array<i64: 1, 32>}, {transform_indices = @transform_4, window_bounds = array<i64: 160, 32>}]} {
    %c0 = arith.constant 0 : index
    %c0_0 = arith.constant 0 : index
    %0 = vector.load %arg1[%c0, %c0_0] : memref<160x32xf32, #tpu.memory_space<vmem>>, vector<160x32xf32>
    %c0_1 = arith.constant 0 : index
    %c0_2 = arith.constant 0 : index
    %1 = vector.load %arg2[%c0_1, %c0_2] : memref<160x32xf32, #tpu.memory_space<vmem>>, vector<160x32xf32>
    %2 = arith.addf %0, %1 : vector<160x32xf32>
    %cst = arith.constant dense<0.000000e+00> : vector<160xf32>
    %3 = vector.multi_reduction <add>, %2, %cst [1] : vector<160x32xf32> to vector<160xf32>
    %4 = vector.shape_cast %3 : vector<160xf32> to vector<160x1xf32>
    %cst_3 = arith.constant 3.200000e+01 : f32
    %5 = vector.broadcast %cst_3 : f32 to vector<160x1xf32>
    %6 = arith.divf %4, %5 : vector<160x1xf32>
    %7 = vector.broadcast %6 : vector<160x1xf32> to vector<160x32xf32>
    %8 = arith.subf %2, %7 : vector<160x32xf32>
    %9 = arith.mulf %8, %8 : vector<160x32xf32>
    %cst_4 = arith.constant dense<0.000000e+00> : vector<160xf32>
    %10 = vector.multi_reduction <add>, %9, %cst_4 [1] : vector<160x32xf32> to vector<160xf32>
    %11 = vector.shape_cast %10 : vector<160xf32> to vector<160x1xf32>
    %cst_5 = arith.constant 3.200000e+01 : f32
    %12 = vector.broadcast %cst_5 : f32 to vector<160x1xf32>
    %13 = arith.divf %11, %12 : vector<160x1xf32>
    %cst_6 = arith.constant 9.99999974E-6 : f32
    %14 = vector.broadcast %cst_6 : f32 to vector<160x1xf32>
    %15 = arith.addf %13, %14 : vector<160x1xf32>
    %16 = math.rsqrt %15 : vector<160x1xf32>
    %17 = vector.broadcast %16 : vector<160x1xf32> to vector<160x32xf32>
    %18 = arith.mulf %8, %17 : vector<160x32xf32>
    %c0_7 = arith.constant 0 : index
    %c0_8 = arith.constant 0 : index
    %19 = vector.load %arg3[%c0_7, %c0_8] : memref<1x32xf32, #tpu.memory_space<vmem>>, vector<1x32xf32>
    %20 = vector.broadcast %19 : vector<1x32xf32> to vector<160x32xf32>
    %21 = arith.mulf %18, %20 : vector<160x32xf32>
    %c0_9 = arith.constant 0 : index
    %c0_10 = arith.constant 0 : index
    %22 = vector.load %arg4[%c0_9, %c0_10] : memref<1x32xf32, #tpu.memory_space<vmem>>, vector<1x32xf32>
    %23 = vector.broadcast %22 : vector<1x32xf32> to vector<160x32xf32>
    %24 = arith.addf %21, %23 : vector<160x32xf32>
    %c0_11 = arith.constant 0 : index
    %c0_12 = arith.constant 0 : index
    %25 = vector.load %arg5[%c0_11, %c0_12] : memref<160x32xf32, #tpu.memory_space<vmem>>, vector<160x32xf32>
    tpu.vector_store %arg5[%c0_11, %c0_12], %24 {strides = array<i32>} : memref<160x32xf32, #tpu.memory_space<vmem>>, vector<160x32xf32>,
    return
  }
  func.func @transform_0(%arg0: i32) -> (i32, i32) {
    %c0_i32 = arith.constant 0 : i32
    %c0_i32_0 = arith.constant 0 : i32
    return %arg0, %c0_i32 : i32, i32
  }
  func.func @transform_1(%arg0: i32) -> (i32, i32) {
    %c0_i32 = arith.constant 0 : i32
    %c0_i32_0 = arith.constant 0 : i32
    return %arg0, %c0_i32 : i32, i32
  }
  func.func @transform_2(%arg0: i32) -> (i32, i32) {
    %c0_i32 = arith.constant 0 : i32
    %c0_i32_0 = arith.constant 0 : i32
    %c0_i32_1 = arith.constant 0 : i32
    return %c0_i32, %c0_i32_0 : i32, i32
  }
  func.func @transform_3(%arg0: i32) -> (i32, i32) {
    %c0_i32 = arith.constant 0 : i32
    %c0_i32_0 = arith.constant 0 : i32
    %c0_i32_1 = arith.constant 0 : i32
    return %c0_i32, %c0_i32_0 : i32, i32
  }
  func.func @transform_4(%arg0: i32) -> (i32, i32) {
    %c0_i32 = arith.constant 0 : i32
    %c0_i32_0 = arith.constant 0 : i32
    return %arg0, %c0_i32 : i32, i32
  }
}

module attributes {stable_mosaic.version = 11 : i64} {
  func.func @_linear_kernel(%arg0: i32, %arg1: i32, %arg2: i32, %arg3: memref<160x128xf32, #tpu.memory_space<vmem>>, %arg4: memref<128x128xf32, #tpu.memory_space<vmem>>, %arg5: memref<1x128xf32, #tpu.memory_space<vmem>>, %arg6: memref<160x128xf32, #tpu.memory_space<vmem>>, %arg7: memref<160x128xf32, #tpu.memory_space<vmem>>) attributes {dimension_semantics = [#tpu.dimension_semantics<parallel>, #tpu.dimension_semantics<parallel>, #tpu.dimension_semantics<arbitrary>], iteration_bounds = array<i64: 1, 1, 1>, scalar_prefetch = 0 : i64, scratch_operands = 1 : i64, tpu.core_type = #tpu.core_type<tc>, window_params = [{transform_indices = @transform_0, window_bounds = array<i64: 160, 128>}, {transform_indices = @transform_1, window_bounds = array<i64: 128, 128>}, {transform_indices = @transform_2, window_bounds = array<i64: 1, 128>}, {transform_indices = @transform_3, window_bounds = array<i64: 160, 128>}]} {
    %c0_i32 = arith.constant 0 : i32
    %0 = arith.cmpi eq, %arg2, %c0_i32 : i32
    %1 = arith.extui %0 : i1 to i32
    %c0_i32_0 = arith.constant 0 : i32
    %2 = arith.cmpi ne, %1, %c0_i32_0 : i32
    scf.if %2 {
      %cst_10 = arith.constant 0.000000e+00 : f32
      %12 = vector.broadcast %cst_10 : f32 to vector<160x128xf32>
      %c0_11 = arith.constant 0 : index
      %c0_12 = arith.constant 0 : index
      %13 = vector.load %arg7[%c0_11, %c0_12] : memref<160x128xf32, #tpu.memory_space<vmem>>, vector<160x128xf32>
      tpu.vector_store %arg7[%c0_11, %c0_12], %12 {strides = array<i32>} : memref<160x128xf32, #tpu.memory_space<vmem>>, vector<160x128xf32>,
    } else {
    }
    %c0 = arith.constant 0 : index
    %c0_1 = arith.constant 0 : index
    %3 = vector.load %arg7[%c0, %c0_1] : memref<160x128xf32, #tpu.memory_space<vmem>>, vector<160x128xf32>
    %c0_2 = arith.constant 0 : index
    %c0_3 = arith.constant 0 : index
    %4 = vector.load %arg3[%c0_2, %c0_3] : memref<160x128xf32, #tpu.memory_space<vmem>>, vector<160x128xf32>
    %c0_4 = arith.constant 0 : index
    %c0_5 = arith.constant 0 : index
    %5 = vector.load %arg4[%c0_4, %c0_5] : memref<128x128xf32, #tpu.memory_space<vmem>>, vector<128x128xf32>
    %cst = arith.constant dense<0.000000e+00> : vector<160x128xf32>
    %6 = tpu.matmul %4, %5, %cst {dimension_numbers = #tpu.dot_dimension_numbers<[1], [0], [0], [1], [0, 0, 1, 1], [], []>} : vector<160x128xf32>, vector<128x128xf32>, vector<160x128xf32> -> vector<160x128xf32>
    %7 = arith.addf %3, %6 : vector<160x128xf32>
    %c0_6 = arith.constant 0 : index
    %c0_7 = arith.constant 0 : index
    %8 = vector.load %arg7[%c0_6, %c0_7] : memref<160x128xf32, #tpu.memory_space<vmem>>, vector<160x128xf32>
    tpu.vector_store %arg7[%c0_6, %c0_7], %7 {strides = array<i32>} : memref<160x128xf32, #tpu.memory_space<vmem>>, vector<160x128xf32>,
    %c0_i32_8 = arith.constant 0 : i32
    %9 = arith.cmpi eq, %arg2, %c0_i32_8 : i32
    %10 = arith.extui %9 : i1 to i32
    %c0_i32_9 = arith.constant 0 : i32
    %11 = arith.cmpi ne, %10, %c0_i32_9 : i32
    scf.if %11 {
      %c0_10 = arith.constant 0 : index
      %c0_11 = arith.constant 0 : index
      %12 = vector.load %arg7[%c0_10, %c0_11] : memref<160x128xf32, #tpu.memory_space<vmem>>, vector<160x128xf32>
      %c0_12 = arith.constant 0 : index
      %c0_13 = arith.constant 0 : index
      %13 = vector.load %arg5[%c0_12, %c0_13] : memref<1x128xf32, #tpu.memory_space<vmem>>, vector<1x128xf32>
      %14 = vector.broadcast %13 : vector<1x128xf32> to vector<160x128xf32>
      %15 = arith.addf %12, %14 : vector<160x128xf32>
      %cst_14 = arith.constant 0.000000e+00 : f32
      %16 = vector.broadcast %cst_14 : f32 to vector<160x128xf32>
      %17 = arith.maximumf %15, %16 : vector<160x128xf32>
      %c0_15 = arith.constant 0 : index
      %c0_16 = arith.constant 0 : index
      %18 = vector.load %arg6[%c0_15, %c0_16] : memref<160x128xf32, #tpu.memory_space<vmem>>, vector<160x128xf32>
      tpu.vector_store %arg6[%c0_15, %c0_16], %17 {strides = array<i32>} : memref<160x128xf32, #tpu.memory_space<vmem>>, vector<160x128xf32>,
    } else {
    }
    return
  }
  func.func @transform_0(%arg0: i32, %arg1: i32, %arg2: i32) -> (i32, i32) {
    %c0_i32 = arith.constant 0 : i32
    return %arg0, %arg2 : i32, i32
  }
  func.func @transform_1(%arg0: i32, %arg1: i32, %arg2: i32) -> (i32, i32) {
    %c0_i32 = arith.constant 0 : i32
    return %arg2, %arg1 : i32, i32
  }
  func.func @transform_2(%arg0: i32, %arg1: i32, %arg2: i32) -> (i32, i32) {
    %c0_i32 = arith.constant 0 : i32
    %c0_i32_0 = arith.constant 0 : i32
    return %c0_i32, %arg1 : i32, i32
  }
  func.func @transform_3(%arg0: i32, %arg1: i32, %arg2: i32) -> (i32, i32) {
    %c0_i32 = arith.constant 0 : i32
    return %arg0, %arg1 : i32, i32
  }
}

module attributes {stable_mosaic.version = 11 : i64} {
  func.func @_linear_kernel(%arg0: i32, %arg1: i32, %arg2: i32, %arg3: memref<16x128xf32, #tpu.memory_space<vmem>>, %arg4: memref<128x128xf32, #tpu.memory_space<vmem>>, %arg5: memref<1x128xf32, #tpu.memory_space<vmem>>, %arg6: memref<16x128xf32, #tpu.memory_space<vmem>>, %arg7: memref<16x128xf32, #tpu.memory_space<vmem>>) attributes {dimension_semantics = [#tpu.dimension_semantics<parallel>, #tpu.dimension_semantics<parallel>, #tpu.dimension_semantics<arbitrary>], iteration_bounds = array<i64: 1, 1, 1>, scalar_prefetch = 0 : i64, scratch_operands = 1 : i64, tpu.core_type = #tpu.core_type<tc>, window_params = [{transform_indices = @transform_0, window_bounds = array<i64: 16, 128>}, {transform_indices = @transform_1, window_bounds = array<i64: 128, 128>}, {transform_indices = @transform_2, window_bounds = array<i64: 1, 128>}, {transform_indices = @transform_3, window_bounds = array<i64: 16, 128>}]} {
    %c0_i32 = arith.constant 0 : i32
    %0 = arith.cmpi eq, %arg2, %c0_i32 : i32
    %1 = arith.extui %0 : i1 to i32
    %c0_i32_0 = arith.constant 0 : i32
    %2 = arith.cmpi ne, %1, %c0_i32_0 : i32
    scf.if %2 {
      %cst_10 = arith.constant 0.000000e+00 : f32
      %12 = vector.broadcast %cst_10 : f32 to vector<16x128xf32>
      %c0_11 = arith.constant 0 : index
      %c0_12 = arith.constant 0 : index
      %13 = vector.load %arg7[%c0_11, %c0_12] : memref<16x128xf32, #tpu.memory_space<vmem>>, vector<16x128xf32>
      tpu.vector_store %arg7[%c0_11, %c0_12], %12 {strides = array<i32>} : memref<16x128xf32, #tpu.memory_space<vmem>>, vector<16x128xf32>,
    } else {
    }
    %c0 = arith.constant 0 : index
    %c0_1 = arith.constant 0 : index
    %3 = vector.load %arg7[%c0, %c0_1] : memref<16x128xf32, #tpu.memory_space<vmem>>, vector<16x128xf32>
    %c0_2 = arith.constant 0 : index
    %c0_3 = arith.constant 0 : index
    %4 = vector.load %arg3[%c0_2, %c0_3] : memref<16x128xf32, #tpu.memory_space<vmem>>, vector<16x128xf32>
    %c0_4 = arith.constant 0 : index
    %c0_5 = arith.constant 0 : index
    %5 = vector.load %arg4[%c0_4, %c0_5] : memref<128x128xf32, #tpu.memory_space<vmem>>, vector<128x128xf32>
    %cst = arith.constant dense<0.000000e+00> : vector<16x128xf32>
    %6 = tpu.matmul %4, %5, %cst {dimension_numbers = #tpu.dot_dimension_numbers<[1], [0], [0], [1], [0, 0, 1, 1], [], []>} : vector<16x128xf32>, vector<128x128xf32>, vector<16x128xf32> -> vector<16x128xf32>
    %7 = arith.addf %3, %6 : vector<16x128xf32>
    %c0_6 = arith.constant 0 : index
    %c0_7 = arith.constant 0 : index
    %8 = vector.load %arg7[%c0_6, %c0_7] : memref<16x128xf32, #tpu.memory_space<vmem>>, vector<16x128xf32>
    tpu.vector_store %arg7[%c0_6, %c0_7], %7 {strides = array<i32>} : memref<16x128xf32, #tpu.memory_space<vmem>>, vector<16x128xf32>,
    %c0_i32_8 = arith.constant 0 : i32
    %9 = arith.cmpi eq, %arg2, %c0_i32_8 : i32
    %10 = arith.extui %9 : i1 to i32
    %c0_i32_9 = arith.constant 0 : i32
    %11 = arith.cmpi ne, %10, %c0_i32_9 : i32
    scf.if %11 {
      %c0_10 = arith.constant 0 : index
      %c0_11 = arith.constant 0 : index
      %12 = vector.load %arg7[%c0_10, %c0_11] : memref<16x128xf32, #tpu.memory_space<vmem>>, vector<16x128xf32>
      %c0_12 = arith.constant 0 : index
      %c0_13 = arith.constant 0 : index
      %13 = vector.load %arg5[%c0_12, %c0_13] : memref<1x128xf32, #tpu.memory_space<vmem>>, vector<1x128xf32>
      %14 = vector.broadcast %13 : vector<1x128xf32> to vector<16x128xf32>
      %15 = arith.addf %12, %14 : vector<16x128xf32>
      %c0_14 = arith.constant 0 : index
      %c0_15 = arith.constant 0 : index
      %16 = vector.load %arg6[%c0_14, %c0_15] : memref<16x128xf32, #tpu.memory_space<vmem>>, vector<16x128xf32>
      tpu.vector_store %arg6[%c0_14, %c0_15], %15 {strides = array<i32>} : memref<16x128xf32, #tpu.memory_space<vmem>>, vector<16x128xf32>,
    } else {
    }
    return
  }
  func.func @transform_0(%arg0: i32, %arg1: i32, %arg2: i32) -> (i32, i32) {
    %c0_i32 = arith.constant 0 : i32
    return %arg0, %arg2 : i32, i32
  }
  func.func @transform_1(%arg0: i32, %arg1: i32, %arg2: i32) -> (i32, i32) {
    %c0_i32 = arith.constant 0 : i32
    return %arg2, %arg1 : i32, i32
  }
  func.func @transform_2(%arg0: i32, %arg1: i32, %arg2: i32) -> (i32, i32) {
    %c0_i32 = arith.constant 0 : i32
    %c0_i32_0 = arith.constant 0 : i32
    return %c0_i32, %arg1 : i32, i32
  }
  func.func @transform_3(%arg0: i32, %arg1: i32, %arg2: i32) -> (i32, i32) {
    %c0_i32 = arith.constant 0 : i32
    return %arg0, %arg1 : i32, i32
  }
}

module attributes {stable_mosaic.version = 11 : i64} {
  func.func @_add_ln_kernel(%arg0: i32, %arg1: memref<16x32xf32, #tpu.memory_space<vmem>>, %arg2: memref<16x32xf32, #tpu.memory_space<vmem>>, %arg3: memref<1x32xf32, #tpu.memory_space<vmem>>, %arg4: memref<1x32xf32, #tpu.memory_space<vmem>>, %arg5: memref<16x32xf32, #tpu.memory_space<vmem>>) attributes {dimension_semantics = [#tpu.dimension_semantics<parallel>], iteration_bounds = array<i64: 1>, scalar_prefetch = 0 : i64, scratch_operands = 0 : i64, tpu.core_type = #tpu.core_type<tc>, window_params = [{transform_indices = @transform_0, window_bounds = array<i64: 16, 32>}, {transform_indices = @transform_1, window_bounds = array<i64: 16, 32>}, {pipeline_mode = #tpu.pipeline_mode<synchronous>, transform_indices = @transform_2, window_bounds = array<i64: 1, 32>}, {pipeline_mode = #tpu.pipeline_mode<synchronous>, transform_indices = @transform_3, window_bounds = array<i64: 1, 32>}, {transform_indices = @transform_4, window_bounds = array<i64: 16, 32>}]} {
    %c0 = arith.constant 0 : index
    %c0_0 = arith.constant 0 : index
    %0 = vector.load %arg1[%c0, %c0_0] : memref<16x32xf32, #tpu.memory_space<vmem>>, vector<16x32xf32>
    %c0_1 = arith.constant 0 : index
    %c0_2 = arith.constant 0 : index
    %1 = vector.load %arg2[%c0_1, %c0_2] : memref<16x32xf32, #tpu.memory_space<vmem>>, vector<16x32xf32>
    %2 = arith.addf %0, %1 : vector<16x32xf32>
    %cst = arith.constant dense<0.000000e+00> : vector<16xf32>
    %3 = vector.multi_reduction <add>, %2, %cst [1] : vector<16x32xf32> to vector<16xf32>
    %4 = vector.shape_cast %3 : vector<16xf32> to vector<16x1xf32>
    %cst_3 = arith.constant 3.200000e+01 : f32
    %5 = vector.broadcast %cst_3 : f32 to vector<16x1xf32>
    %6 = arith.divf %4, %5 : vector<16x1xf32>
    %7 = vector.broadcast %6 : vector<16x1xf32> to vector<16x32xf32>
    %8 = arith.subf %2, %7 : vector<16x32xf32>
    %9 = arith.mulf %8, %8 : vector<16x32xf32>
    %cst_4 = arith.constant dense<0.000000e+00> : vector<16xf32>
    %10 = vector.multi_reduction <add>, %9, %cst_4 [1] : vector<16x32xf32> to vector<16xf32>
    %11 = vector.shape_cast %10 : vector<16xf32> to vector<16x1xf32>
    %cst_5 = arith.constant 3.200000e+01 : f32
    %12 = vector.broadcast %cst_5 : f32 to vector<16x1xf32>
    %13 = arith.divf %11, %12 : vector<16x1xf32>
    %cst_6 = arith.constant 9.99999974E-6 : f32
    %14 = vector.broadcast %cst_6 : f32 to vector<16x1xf32>
    %15 = arith.addf %13, %14 : vector<16x1xf32>
    %16 = math.rsqrt %15 : vector<16x1xf32>
    %17 = vector.broadcast %16 : vector<16x1xf32> to vector<16x32xf32>
    %18 = arith.mulf %8, %17 : vector<16x32xf32>
    %c0_7 = arith.constant 0 : index
    %c0_8 = arith.constant 0 : index
    %19 = vector.load %arg3[%c0_7, %c0_8] : memref<1x32xf32, #tpu.memory_space<vmem>>, vector<1x32xf32>
    %20 = vector.broadcast %19 : vector<1x32xf32> to vector<16x32xf32>
    %21 = arith.mulf %18, %20 : vector<16x32xf32>
    %c0_9 = arith.constant 0 : index
    %c0_10 = arith.constant 0 : index
    %22 = vector.load %arg4[%c0_9, %c0_10] : memref<1x32xf32, #tpu.memory_space<vmem>>, vector<1x32xf32>
    %23 = vector.broadcast %22 : vector<1x32xf32> to vector<16x32xf32>
    %24 = arith.addf %21, %23 : vector<16x32xf32>
    %c0_11 = arith.constant 0 : index
    %c0_12 = arith.constant 0 : index
    %25 = vector.load %arg5[%c0_11, %c0_12] : memref<16x32xf32, #tpu.memory_space<vmem>>, vector<16x32xf32>
    tpu.vector_store %arg5[%c0_11, %c0_12], %24 {strides = array<i32>} : memref<16x32xf32, #tpu.memory_space<vmem>>, vector<16x32xf32>,
    return
  }
  func.func @transform_0(%arg0: i32) -> (i32, i32) {
    %c0_i32 = arith.constant 0 : i32
    %c0_i32_0 = arith.constant 0 : i32
    return %arg0, %c0_i32 : i32, i32
  }
  func.func @transform_1(%arg0: i32) -> (i32, i32) {
    %c0_i32 = arith.constant 0 : i32
    %c0_i32_0 = arith.constant 0 : i32
    return %arg0, %c0_i32 : i32, i32
  }
  func.func @transform_2(%arg0: i32) -> (i32, i32) {
    %c0_i32 = arith.constant 0 : i32
    %c0_i32_0 = arith.constant 0 : i32
    %c0_i32_1 = arith.constant 0 : i32
    return %c0_i32, %c0_i32_0 : i32, i32
  }
  func.func @transform_3(%arg0: i32) -> (i32, i32) {
    %c0_i32 = arith.constant 0 : i32
    %c0_i32_0 = arith.constant 0 : i32
    %c0_i32_1 = arith.constant 0 : i32
    return %c0_i32, %c0_i32_0 : i32, i32
  }
  func.func @transform_4(%arg0: i32) -> (i32, i32) {
    %c0_i32 = arith.constant 0 : i32
    %c0_i32_0 = arith.constant 0 : i32
    return %arg0, %c0_i32 : i32, i32
  }
}

module attributes {stable_mosaic.version = 11 : i64} {
  func.func @_mha_kernel(%arg0: i32, %arg1: memref<1x8x32xf32, #tpu.memory_space<vmem>>, %arg2: memref<1x8x32xf32, #tpu.memory_space<vmem>>, %arg3: memref<1x8x32xf32, #tpu.memory_space<vmem>>, %arg4: memref<1x8x32xf32, #tpu.memory_space<vmem>>) attributes {dimension_semantics = [#tpu.dimension_semantics<parallel>], iteration_bounds = array<i64: 2>, scalar_prefetch = 0 : i64, scratch_operands = 0 : i64, tpu.core_type = #tpu.core_type<tc>, window_params = [{transform_indices = @transform_0, window_bounds = array<i64: 1, 8, 32>}, {transform_indices = @transform_1, window_bounds = array<i64: 1, 8, 32>}, {transform_indices = @transform_2, window_bounds = array<i64: 1, 8, 32>}, {transform_indices = @transform_3, window_bounds = array<i64: 1, 8, 32>}]} {
    %c0 = arith.constant 0 : index
    %c0_0 = arith.constant 0 : index
    %c0_1 = arith.constant 0 : index
    %0 = vector.load %arg1[%c0, %c0_0, %c0_1] : memref<1x8x32xf32, #tpu.memory_space<vmem>>, vector<1x8x32xf32>
    %1 = vector.shape_cast %0 : vector<1x8x32xf32> to vector<8x32xf32>
    %c0_2 = arith.constant 0 : index
    %c0_3 = arith.constant 0 : index
    %c0_4 = arith.constant 0 : index
    %2 = vector.load %arg2[%c0_2, %c0_3, %c0_4] : memref<1x8x32xf32, #tpu.memory_space<vmem>>, vector<1x8x32xf32>
    %3 = vector.shape_cast %2 : vector<1x8x32xf32> to vector<8x32xf32>
    %c0_5 = arith.constant 0 : index
    %c0_6 = arith.constant 0 : index
    %c0_7 = arith.constant 0 : index
    %4 = vector.load %arg3[%c0_5, %c0_6, %c0_7] : memref<1x8x32xf32, #tpu.memory_space<vmem>>, vector<1x8x32xf32>
    %5 = vector.shape_cast %4 : vector<1x8x32xf32> to vector<8x32xf32>
    %6 = vector.extract_strided_slice %1 {offsets = [0, 0], sizes = [8, 8], strides = [1, 1]} : vector<8x32xf32> to vector<8x8xf32>
    %7 = vector.extract_strided_slice %3 {offsets = [0, 0], sizes = [8, 8], strides = [1, 1]} : vector<8x32xf32> to vector<8x8xf32>
    %8 = vector.extract_strided_slice %5 {offsets = [0, 0], sizes = [8, 8], strides = [1, 1]} : vector<8x32xf32> to vector<8x8xf32>
    %cst = arith.constant dense<0.000000e+00> : vector<8x8xf32>
    %9 = tpu.matmul %6, %7, %cst {dimension_numbers = #tpu.dot_dimension_numbers<[1], [1], [0], [0], [0, 0, 1, 0], [], []>} : vector<8x8xf32>, vector<8x8xf32>, vector<8x8xf32> -> vector<8x8xf32>
    %cst_8 = arith.constant 0.353553385 : f32
    %10 = vector.broadcast %cst_8 : f32 to vector<8x8xf32>
    %11 = arith.mulf %9, %10 : vector<8x8xf32>
    %cst_9 = arith.constant dense<0xFF800000> : vector<8xf32>
    %12 = vector.multi_reduction <maximumf>, %11, %cst_9 [1] : vector<8x8xf32> to vector<8xf32>
    %13 = vector.shape_cast %12 : vector<8xf32> to vector<8x1xf32>
    %14 = vector.broadcast %13 : vector<8x1xf32> to vector<8x8xf32>
    %15 = arith.subf %11, %14 : vector<8x8xf32>
    %16 = math.exp %15 : vector<8x8xf32>
    %cst_10 = arith.constant dense<0.000000e+00> : vector<8xf32>
    %17 = vector.multi_reduction <add>, %16, %cst_10 [1] : vector<8x8xf32> to vector<8xf32>
    %18 = vector.shape_cast %17 : vector<8xf32> to vector<8x1xf32>
    %19 = tpu.reciprocal %18 {approx = true} : vector<8x1xf32> -> vector<8x1xf32>
    %20 = vector.broadcast %19 : vector<8x1xf32> to vector<8x8xf32>
    %21 = arith.mulf %16, %20 : vector<8x8xf32>
    %cst_11 = arith.constant dense<0.000000e+00> : vector<8x8xf32>
    %22 = tpu.matmul %21, %8, %cst_11 {dimension_numbers = #tpu.dot_dimension_numbers<[1], [0], [0], [1], [0, 0, 1, 1], [], []>} : vector<8x8xf32>, vector<8x8xf32>, vector<8x8xf32> -> vector<8x8xf32>
    %23 = vector.extract_strided_slice %1 {offsets = [0, 8], sizes = [8, 8], strides = [1, 1]} : vector<8x32xf32> to vector<8x8xf32>
    %24 = vector.extract_strided_slice %3 {offsets = [0, 8], sizes = [8, 8], strides = [1, 1]} : vector<8x32xf32> to vector<8x8xf32>
    %25 = vector.extract_strided_slice %5 {offsets = [0, 8], sizes = [8, 8], strides = [1, 1]} : vector<8x32xf32> to vector<8x8xf32>
    %cst_12 = arith.constant dense<0.000000e+00> : vector<8x8xf32>
    %26 = tpu.matmul %23, %24, %cst_12 {dimension_numbers = #tpu.dot_dimension_numbers<[1], [1], [0], [0], [0, 0, 1, 0], [], []>} : vector<8x8xf32>, vector<8x8xf32>, vector<8x8xf32> -> vector<8x8xf32>
    %cst_13 = arith.constant 0.353553385 : f32
    %27 = vector.broadcast %cst_13 : f32 to vector<8x8xf32>
    %28 = arith.mulf %26, %27 : vector<8x8xf32>
    %cst_14 = arith.constant dense<0xFF800000> : vector<8xf32>
    %29 = vector.multi_reduction <maximumf>, %28, %cst_14 [1] : vector<8x8xf32> to vector<8xf32>
    %30 = vector.shape_cast %29 : vector<8xf32> to vector<8x1xf32>
    %31 = vector.broadcast %30 : vector<8x1xf32> to vector<8x8xf32>
    %32 = arith.subf %28, %31 : vector<8x8xf32>
    %33 = math.exp %32 : vector<8x8xf32>
    %cst_15 = arith.constant dense<0.000000e+00> : vector<8xf32>
    %34 = vector.multi_reduction <add>, %33, %cst_15 [1] : vector<8x8xf32> to vector<8xf32>
    %35 = vector.shape_cast %34 : vector<8xf32> to vector<8x1xf32>
    %36 = tpu.reciprocal %35 {approx = true} : vector<8x1xf32> -> vector<8x1xf32>
    %37 = vector.broadcast %36 : vector<8x1xf32> to vector<8x8xf32>
    %38 = arith.mulf %33, %37 : vector<8x8xf32>
    %cst_16 = arith.constant dense<0.000000e+00> : vector<8x8xf32>
    %39 = tpu.matmul %38, %25, %cst_16 {dimension_numbers = #tpu.dot_dimension_numbers<[1], [0], [0], [1], [0, 0, 1, 1], [], []>} : vector<8x8xf32>, vector<8x8xf32>, vector<8x8xf32> -> vector<8x8xf32>
    %40 = vector.extract_strided_slice %1 {offsets = [0, 16], sizes = [8, 8], strides = [1, 1]} : vector<8x32xf32> to vector<8x8xf32>
    %41 = vector.extract_strided_slice %3 {offsets = [0, 16], sizes = [8, 8], strides = [1, 1]} : vector<8x32xf32> to vector<8x8xf32>
    %42 = vector.extract_strided_slice %5 {offsets = [0, 16], sizes = [8, 8], strides = [1, 1]} : vector<8x32xf32> to vector<8x8xf32>
    %cst_17 = arith.constant dense<0.000000e+00> : vector<8x8xf32>
    %43 = tpu.matmul %40, %41, %cst_17 {dimension_numbers = #tpu.dot_dimension_numbers<[1], [1], [0], [0], [0, 0, 1, 0], [], []>} : vector<8x8xf32>, vector<8x8xf32>, vector<8x8xf32> -> vector<8x8xf32>
    %cst_18 = arith.constant 0.353553385 : f32
    %44 = vector.broadcast %cst_18 : f32 to vector<8x8xf32>
    %45 = arith.mulf %43, %44 : vector<8x8xf32>
    %cst_19 = arith.constant dense<0xFF800000> : vector<8xf32>
    %46 = vector.multi_reduction <maximumf>, %45, %cst_19 [1] : vector<8x8xf32> to vector<8xf32>
    %47 = vector.shape_cast %46 : vector<8xf32> to vector<8x1xf32>
    %48 = vector.broadcast %47 : vector<8x1xf32> to vector<8x8xf32>
    %49 = arith.subf %45, %48 : vector<8x8xf32>
    %50 = math.exp %49 : vector<8x8xf32>
    %cst_20 = arith.constant dense<0.000000e+00> : vector<8xf32>
    %51 = vector.multi_reduction <add>, %50, %cst_20 [1] : vector<8x8xf32> to vector<8xf32>
    %52 = vector.shape_cast %51 : vector<8xf32> to vector<8x1xf32>
    %53 = tpu.reciprocal %52 {approx = true} : vector<8x1xf32> -> vector<8x1xf32>
    %54 = vector.broadcast %53 : vector<8x1xf32> to vector<8x8xf32>
    %55 = arith.mulf %50, %54 : vector<8x8xf32>
    %cst_21 = arith.constant dense<0.000000e+00> : vector<8x8xf32>
    %56 = tpu.matmul %55, %42, %cst_21 {dimension_numbers = #tpu.dot_dimension_numbers<[1], [0], [0], [1], [0, 0, 1, 1], [], []>} : vector<8x8xf32>, vector<8x8xf32>, vector<8x8xf32> -> vector<8x8xf32>
    %57 = vector.extract_strided_slice %1 {offsets = [0, 24], sizes = [8, 8], strides = [1, 1]} : vector<8x32xf32> to vector<8x8xf32>
    %58 = vector.extract_strided_slice %3 {offsets = [0, 24], sizes = [8, 8], strides = [1, 1]} : vector<8x32xf32> to vector<8x8xf32>
    %59 = vector.extract_strided_slice %5 {offsets = [0, 24], sizes = [8, 8], strides = [1, 1]} : vector<8x32xf32> to vector<8x8xf32>
    %cst_22 = arith.constant dense<0.000000e+00> : vector<8x8xf32>
    %60 = tpu.matmul %57, %58, %cst_22 {dimension_numbers = #tpu.dot_dimension_numbers<[1], [1], [0], [0], [0, 0, 1, 0], [], []>} : vector<8x8xf32>, vector<8x8xf32>, vector<8x8xf32> -> vector<8x8xf32>
    %cst_23 = arith.constant 0.353553385 : f32
    %61 = vector.broadcast %cst_23 : f32 to vector<8x8xf32>
    %62 = arith.mulf %60, %61 : vector<8x8xf32>
    %cst_24 = arith.constant dense<0xFF800000> : vector<8xf32>
    %63 = vector.multi_reduction <maximumf>, %62, %cst_24 [1] : vector<8x8xf32> to vector<8xf32>
    %64 = vector.shape_cast %63 : vector<8xf32> to vector<8x1xf32>
    %65 = vector.broadcast %64 : vector<8x1xf32> to vector<8x8xf32>
    %66 = arith.subf %62, %65 : vector<8x8xf32>
    %67 = math.exp %66 : vector<8x8xf32>
    %cst_25 = arith.constant dense<0.000000e+00> : vector<8xf32>
    %68 = vector.multi_reduction <add>, %67, %cst_25 [1] : vector<8x8xf32> to vector<8xf32>
    %69 = vector.shape_cast %68 : vector<8xf32> to vector<8x1xf32>
    %70 = tpu.reciprocal %69 {approx = true} : vector<8x1xf32> -> vector<8x1xf32>
    %71 = vector.broadcast %70 : vector<8x1xf32> to vector<8x8xf32>
    %72 = arith.mulf %67, %71 : vector<8x8xf32>
    %cst_26 = arith.constant dense<0.000000e+00> : vector<8x8xf32>
    %73 = tpu.matmul %72, %59, %cst_26 {dimension_numbers = #tpu.dot_dimension_numbers<[1], [0], [0], [1], [0, 0, 1, 1], [], []>} : vector<8x8xf32>, vector<8x8xf32>, vector<8x8xf32> -> vector<8x8xf32>
    %74 = tpu.concatenate %22, %39, %56, %73 in 1 : vector<8x8xf32>, vector<8x8xf32>, vector<8x8xf32>, vector<8x8xf32> -> vector<8x32xf32>
    %c0_27 = arith.constant 0 : index
    %c0_28 = arith.constant 0 : index
    %c0_29 = arith.constant 0 : index
    %75 = vector.load %arg4[%c0_27, %c0_28, %c0_29] : memref<1x8x32xf32, #tpu.memory_space<vmem>>, vector<1x8x32xf32>
    %76 = vector.shape_cast %75 : vector<1x8x32xf32> to vector<8x32xf32>
    %77 = vector.shape_cast %74 : vector<8x32xf32> to vector<1x8x32xf32>
    tpu.vector_store %arg4[%c0_27, %c0_28, %c0_29], %77 {strides = array<i32>} : memref<1x8x32xf32, #tpu.memory_space<vmem>>, vector<1x8x32xf32>,
    return
  }
  func.func @transform_0(%arg0: i32) -> (i32, i32, i32) {
    %c0_i32 = arith.constant 0 : i32
    %c0_i32_0 = arith.constant 0 : i32
    %c0_i32_1 = arith.constant 0 : i32
    return %arg0, %c0_i32, %c0_i32_0 : i32, i32, i32
  }
  func.func @transform_1(%arg0: i32) -> (i32, i32, i32) {
    %c0_i32 = arith.constant 0 : i32
    %c0_i32_0 = arith.constant 0 : i32
    %c0_i32_1 = arith.constant 0 : i32
    return %arg0, %c0_i32, %c0_i32_0 : i32, i32, i32
  }
  func.func @transform_2(%arg0: i32) -> (i32, i32, i32) {
    %c0_i32 = arith.constant 0 : i32
    %c0_i32_0 = arith.constant 0 : i32
    %c0_i32_1 = arith.constant 0 : i32
    return %arg0, %c0_i32, %c0_i32_0 : i32, i32, i32
  }
  func.func @transform_3(%arg0: i32) -> (i32, i32, i32) {
    %c0_i32 = arith.constant 0 : i32
    %c0_i32_0 = arith.constant 0 : i32
    %c0_i32_1 = arith.constant 0 : i32
    return %arg0, %c0_i32, %c0_i32_0 : i32, i32, i32
  }
}

module attributes {stable_mosaic.version = 11 : i64} {
  func.func @_linear_kernel(%arg0: i32, %arg1: i32, %arg2: i32, %arg3: memref<16x128xf32, #tpu.memory_space<vmem>>, %arg4: memref<128x128xf32, #tpu.memory_space<vmem>>, %arg5: memref<1x128xf32, #tpu.memory_space<vmem>>, %arg6: memref<16x128xf32, #tpu.memory_space<vmem>>, %arg7: memref<16x128xf32, #tpu.memory_space<vmem>>) attributes {dimension_semantics = [#tpu.dimension_semantics<parallel>, #tpu.dimension_semantics<parallel>, #tpu.dimension_semantics<arbitrary>], iteration_bounds = array<i64: 1, 1, 1>, scalar_prefetch = 0 : i64, scratch_operands = 1 : i64, tpu.core_type = #tpu.core_type<tc>, window_params = [{transform_indices = @transform_0, window_bounds = array<i64: 16, 128>}, {transform_indices = @transform_1, window_bounds = array<i64: 128, 128>}, {transform_indices = @transform_2, window_bounds = array<i64: 1, 128>}, {transform_indices = @transform_3, window_bounds = array<i64: 16, 128>}]} {
    %c0_i32 = arith.constant 0 : i32
    %0 = arith.cmpi eq, %arg2, %c0_i32 : i32
    %1 = arith.extui %0 : i1 to i32
    %c0_i32_0 = arith.constant 0 : i32
    %2 = arith.cmpi ne, %1, %c0_i32_0 : i32
    scf.if %2 {
      %cst_10 = arith.constant 0.000000e+00 : f32
      %12 = vector.broadcast %cst_10 : f32 to vector<16x128xf32>
      %c0_11 = arith.constant 0 : index
      %c0_12 = arith.constant 0 : index
      %13 = vector.load %arg7[%c0_11, %c0_12] : memref<16x128xf32, #tpu.memory_space<vmem>>, vector<16x128xf32>
      tpu.vector_store %arg7[%c0_11, %c0_12], %12 {strides = array<i32>} : memref<16x128xf32, #tpu.memory_space<vmem>>, vector<16x128xf32>,
    } else {
    }
    %c0 = arith.constant 0 : index
    %c0_1 = arith.constant 0 : index
    %3 = vector.load %arg7[%c0, %c0_1] : memref<16x128xf32, #tpu.memory_space<vmem>>, vector<16x128xf32>
    %c0_2 = arith.constant 0 : index
    %c0_3 = arith.constant 0 : index
    %4 = vector.load %arg3[%c0_2, %c0_3] : memref<16x128xf32, #tpu.memory_space<vmem>>, vector<16x128xf32>
    %c0_4 = arith.constant 0 : index
    %c0_5 = arith.constant 0 : index
    %5 = vector.load %arg4[%c0_4, %c0_5] : memref<128x128xf32, #tpu.memory_space<vmem>>, vector<128x128xf32>
    %cst = arith.constant dense<0.000000e+00> : vector<16x128xf32>
    %6 = tpu.matmul %4, %5, %cst {dimension_numbers = #tpu.dot_dimension_numbers<[1], [0], [0], [1], [0, 0, 1, 1], [], []>} : vector<16x128xf32>, vector<128x128xf32>, vector<16x128xf32> -> vector<16x128xf32>
    %7 = arith.addf %3, %6 : vector<16x128xf32>
    %c0_6 = arith.constant 0 : index
    %c0_7 = arith.constant 0 : index
    %8 = vector.load %arg7[%c0_6, %c0_7] : memref<16x128xf32, #tpu.memory_space<vmem>>, vector<16x128xf32>
    tpu.vector_store %arg7[%c0_6, %c0_7], %7 {strides = array<i32>} : memref<16x128xf32, #tpu.memory_space<vmem>>, vector<16x128xf32>,
    %c0_i32_8 = arith.constant 0 : i32
    %9 = arith.cmpi eq, %arg2, %c0_i32_8 : i32
    %10 = arith.extui %9 : i1 to i32
    %c0_i32_9 = arith.constant 0 : i32
    %11 = arith.cmpi ne, %10, %c0_i32_9 : i32
    scf.if %11 {
      %c0_10 = arith.constant 0 : index
      %c0_11 = arith.constant 0 : index
      %12 = vector.load %arg7[%c0_10, %c0_11] : memref<16x128xf32, #tpu.memory_space<vmem>>, vector<16x128xf32>
      %c0_12 = arith.constant 0 : index
      %c0_13 = arith.constant 0 : index
      %13 = vector.load %arg5[%c0_12, %c0_13] : memref<1x128xf32, #tpu.memory_space<vmem>>, vector<1x128xf32>
      %14 = vector.broadcast %13 : vector<1x128xf32> to vector<16x128xf32>
      %15 = arith.addf %12, %14 : vector<16x128xf32>
      %cst_14 = arith.constant 0.000000e+00 : f32
      %16 = vector.broadcast %cst_14 : f32 to vector<16x128xf32>
      %17 = arith.maximumf %15, %16 : vector<16x128xf32>
      %c0_15 = arith.constant 0 : index
      %c0_16 = arith.constant 0 : index
      %18 = vector.load %arg6[%c0_15, %c0_16] : memref<16x128xf32, #tpu.memory_space<vmem>>, vector<16x128xf32>
      tpu.vector_store %arg6[%c0_15, %c0_16], %17 {strides = array<i32>} : memref<16x128xf32, #tpu.memory_space<vmem>>, vector<16x128xf32>,
    } else {
    }
    return
  }
  func.func @transform_0(%arg0: i32, %arg1: i32, %arg2: i32) -> (i32, i32) {
    %c0_i32 = arith.constant 0 : i32
    return %arg0, %arg2 : i32, i32
  }
  func.func @transform_1(%arg0: i32, %arg1: i32, %arg2: i32) -> (i32, i32) {
    %c0_i32 = arith.constant 0 : i32
    return %arg2, %arg1 : i32, i32
  }
  func.func @transform_2(%arg0: i32, %arg1: i32, %arg2: i32) -> (i32, i32) {
    %c0_i32 = arith.constant 0 : i32
    %c0_i32_0 = arith.constant 0 : i32
    return %c0_i32, %arg1 : i32, i32
  }
  func.func @transform_3(%arg0: i32, %arg1: i32, %arg2: i32) -> (i32, i32) {
    %c0_i32 = arith.constant 0 : i32
    return %arg0, %arg1 : i32, i32
  }
}

</mosaic_0001>

<llo_original>
// kernel: deformable_transformer_forward.42
$region0: #{deformable_transformer_forward.42}
  #allocation0 [shape = 'u32[]', space=smem, size = 0x4, offset = 0x4, fixed_abs, tag = 'smem constant byte address 0x4 - core index']
  #allocation1 [shape = 'u32[144,128]{1,0:T(1,128)}', space=vmem, size = 0x12000, scoped, tag = 'internal scratch']
  #allocation2 [shape = 'f32[160,128]{1,0:T(8,128)}', space=vmem, size = 0x14000, scoped, tag = 'scratch operand']
  %s0 = inlined_call_operand.vmem [shape: f32[160,128], index: 0, kind: input, shape index: {}]
  %s1 = inlined_call_operand.vmem [shape: f32[128,128], index: 1, kind: input, shape index: {}]
  %s2 = inlined_call_operand.vmem [shape: f32[1,128], index: 2, kind: input, shape index: {}]
  %s3 = inlined_call_operand.vmem [shape: f32[160,128], index: 3, kind: output, shape index: {}]
  %s4 = sld [smem:[#allocation0]]
  $region30: #{deformable_transformer_forward.42} parent=0
    _
  %s6 = ssub.s32 1, %s4
  %s7 = scalar_select 0, %s6, %s4
  // Predicated region
  $region2: #{deformable_transformer_forward.42} parent=0 // pred_check
    _
  $region3: #{deformable_transformer_forward.42} parent=0 // pred_check_branch
    %9 = sbr.rel (0) target = $region5
  $region4: #{deformable_transformer_forward.42} parent=0 // pred_region
    _
  $region5: #{deformable_transformer_forward.42} parent=0 // pred_fallthru
    _
  // Predicated region
  $region6: #{deformable_transformer_forward.42} parent=0 // pred_check
    _
  $region7: #{deformable_transformer_forward.42} parent=0 // pred_check_branch
    %11 = sbr.rel (0) target = $region9
  $region8: #{deformable_transformer_forward.42} parent=0 // pred_region
    _
  $region9: #{deformable_transformer_forward.42} parent=0 // pred_fallthru
    _
  // Predicated region
  $region10: #{deformable_transformer_forward.42} parent=0 // pred_check
    _
  $region11: #{deformable_transformer_forward.42} parent=0 // pred_check_branch
    %13 = sbr.rel (0) target = $region13
  $region12: #{deformable_transformer_forward.42} parent=0 // pred_region
    _
  $region13: #{deformable_transformer_forward.42} parent=0 // pred_fallthru
    _
  %p14 = scmp.eq.s32.totalorder 0, 0
  // Predicated region
  $region14: #{deformable_transformer_forward.42} parent=0 // pred_check
    %p15 = pneg %p14
  $region15: #{deformable_transformer_forward.42} parent=0 // pred_check_branch
    %17 = sbr.rel (%p15) target = $region17
  $region16: #{deformable_transformer_forward.42} parent=0 // pred_region
    %18 = vst [vmem:[#allocation2] sm:$0xff] 0.0
    %19 = vst [vmem:[#allocation2 + $0x8] sm:$0xff] 0.0
    %20 = vst [vmem:[#allocation2 + $0x10] sm:$0xff] 0.0
    %21 = vst [vmem:[#allocation2 + $0x18] sm:$0xff] 0.0
    %22 = vst [vmem:[#allocation2 + $0x20] sm:$0xff] 0.0
    %23 = vst [vmem:[#allocation2 + $0x28] sm:$0xff] 0.0
    %24 = vst [vmem:[#allocation2 + $0x30] sm:$0xff] 0.0
    %25 = vst [vmem:[#allocation2 + $0x38] sm:$0xff] 0.0
    %26 = vst [vmem:[#allocation2 + $0x40] sm:$0xff] 0.0
    %27 = vst [vmem:[#allocation2 + $0x48] sm:$0xff] 0.0
    %28 = vst [vmem:[#allocation2 + $0x50] sm:$0xff] 0.0
    %29 = vst [vmem:[#allocation2 + $0x58] sm:$0xff] 0.0
    %30 = vst [vmem:[#allocation2 + $0x60] sm:$0xff] 0.0
    %31 = vst [vmem:[#allocation2 + $0x68] sm:$0xff] 0.0
    %32 = vst [vmem:[#allocation2 + $0x70] sm:$0xff] 0.0
    %33 = vst [vmem:[#allocation2 + $0x78] sm:$0xff] 0.0
    %34 = vst [vmem:[#allocation2 + $0x80] sm:$0xff] 0.0
    %35 = vst [vmem:[#allocation2 + $0x88] sm:$0xff] 0.0
    %36 = vst [vmem:[#allocation2 + $0x90] sm:$0xff] 0.0
    %37 = vst [vmem:[#allocation2 + $0x98] sm:$0xff] 0.0
  $region17: #{deformable_transformer_forward.42} parent=0 // pred_fallthru
    _
  %v38 = vld [vmem:[#allocation2] sm:$0xff]
  %v39 = vld [vmem:[#allocation2 + $0x8] sm:$0xff]
  %v40 = vld [vmem:[#allocation2 + $0x10] sm:$0xff]
  %v41 = vld [vmem:[#allocation2 + $0x18] sm:$0xff]
  %v42 = vld [vmem:[#allocation2 + $0x20] sm:$0xff]
  %v43 = vld [vmem:[#allocation2 + $0x28] sm:$0xff]
  %v44 = vld [vmem:[#allocation2 + $0x30] sm:$0xff]
  %v45 = vld [vmem:[#allocation2 + $0x38] sm:$0xff]
  %v46 = vld [vmem:[#allocation2 + $0x40] sm:$0xff]
  %v47 = vld [vmem:[#allocation2 + $0x48] sm:$0xff]
  %v48 = vld [vmem:[#allocation2 + $0x50] sm:$0xff]
  %v49 = vld [vmem:[#allocation2 + $0x58] sm:$0xff]
  %v50 = vld [vmem:[#allocation2 + $0x60] sm:$0xff]
  %v51 = vld [vmem:[#allocation2 + $0x68] sm:$0xff]
  %v52 = vld [vmem:[#allocation2 + $0x70] sm:$0xff]
  %v53 = vld [vmem:[#allocation2 + $0x78] sm:$0xff]
  %v54 = vld [vmem:[#allocation2 + $0x80] sm:$0xff]
  %v55 = vld [vmem:[#allocation2 + $0x88] sm:$0xff]
  %v56 = vld [vmem:[#allocation2 + $0x90] sm:$0xff]
  %v57 = vld [vmem:[#allocation2 + $0x98] sm:$0xff]
  %v58 = vld [vmem:[%s0] sm:$0xff]
  %v59 = vld [vmem:[%s0 + $0x8] sm:$0xff]
  %v60 = vld [vmem:[%s0 + $0x10] sm:$0xff]
  %v61 = vld [vmem:[%s0 + $0x18] sm:$0xff]
  %v62 = vld [vmem:[%s0 + $0x20] sm:$0xff]
  %v63 = vld [vmem:[%s0 + $0x28] sm:$0xff]
  %v64 = vld [vmem:[%s0 + $0x30] sm:$0xff]
  %v65 = vld [vmem:[%s0 + $0x38] sm:$0xff]
  %v66 = vld [vmem:[%s0 + $0x40] sm:$0xff]
  %v67 = vld [vmem:[%s0 + $0x48] sm:$0xff]
  %v68 = vld [vmem:[%s0 + $0x50] sm:$0xff]
  %v69 = vld [vmem:[%s0 + $0x58] sm:$0xff]
  %v70 = vld [vmem:[%s0 + $0x60] sm:$0xff]
  %v71 = vld [vmem:[%s0 + $0x68] sm:$0xff]
  %v72 = vld [vmem:[%s0 + $0x70] sm:$0xff]
  %v73 = vld [vmem:[%s0 + $0x78] sm:$0xff]
  %v74 = vld [vmem:[%s0 + $0x80] sm:$0xff]
  %v75 = vld [vmem:[%s0 + $0x88] sm:$0xff]
  %v76 = vld [vmem:[%s0 + $0x90] sm:$0xff]
  %v77 = vld [vmem:[%s0 + $0x98] sm:$0xff]
  %v78 = vld [vmem:[%s1] sm:$0xff]
  %v79 = vld [vmem:[%s1 + $0x8] sm:$0xff]
  %v80 = vld [vmem:[%s1 + $0x10] sm:$0xff]
  %v81 = vld [vmem:[%s1 + $0x18] sm:$0xff]
  %v82 = vld [vmem:[%s1 + $0x20] sm:$0xff]
  %v83 = vld [vmem:[%s1 + $0x28] sm:$0xff]
  %v84 = vld [vmem:[%s1 + $0x30] sm:$0xff]
  %v85 = vld [vmem:[%s1 + $0x38] sm:$0xff]
  %v86 = vld [vmem:[%s1 + $0x40] sm:$0xff]
  %v87 = vld [vmem:[%s1 + $0x48] sm:$0xff]
  %v88 = vld [vmem:[%s1 + $0x50] sm:$0xff]
  %v89 = vld [vmem:[%s1 + $0x58] sm:$0xff]
  %v90 = vld [vmem:[%s1 + $0x60] sm:$0xff]
  %v91 = vld [vmem:[%s1 + $0x68] sm:$0xff]
  %v92 = vld [vmem:[%s1 + $0x70] sm:$0xff]
  %v93 = vld [vmem:[%s1 + $0x78] sm:$0xff]
  %94 = vmatprep.subr.mxu0 0.0
  %95 = vmatpush1.msra.mxu0 %v78
  %96 = vmatprep.subr.mxu0 0.0
  %97 = vmatpush1.msra.mxu0 %v79
  %98 = vmatprep.subr.mxu0 0.0
  %99 = vmatpush1.msra.mxu0 %v80
  %100 = vmatprep.subr.mxu0 0.0
  %101 = vmatpush1.msra.mxu0 %v81
  %102 = vmatprep.subr.mxu0 0.0
  %103 = vmatpush1.msra.mxu0 %v82
  %104 = vmatprep.subr.mxu0 0.0
  %105 = vmatpush1.msra.mxu0 %v83
  %106 = vmatprep.subr.mxu0 0.0
  %107 = vmatpush1.msra.mxu0 %v84
  %108 = vmatprep.subr.mxu0 0.0
  %109 = vmatpush1.msra.mxu0 %v85
  %110 = vmatprep.subr.mxu0 0.0
  %111 = vmatpush1.msra.mxu0 %v86
  %112 = vmatprep.subr.mxu0 0.0
  %113 = vmatpush1.msra.mxu0 %v87
  %114 = vmatprep.subr.mxu0 0.0
  %115 = vmatpush1.msra.mxu0 %v88
  %116 = vmatprep.subr.mxu0 0.0
  %117 = vmatpush1.msra.mxu0 %v89
  %118 = vmatprep.subr.mxu0 0.0
  %119 = vmatpush1.msra.mxu0 %v90
  %120 = vmatprep.subr.mxu0 0.0
  %121 = vmatpush1.msra.mxu0 %v91
  %122 = vmatprep.subr.mxu0 0.0
  %123 = vmatpush1.msra.mxu0 %v92
  %124 = vmatprep.subr.mxu0 0.0
  %125 = vmatpush1.msra.mxu0 %v93
  %126 = vmatprep.subr.mxu0 0.0
  %127 = vmatpush1.msra.mxu0 0.0
  %128 = vmatprep.subr.mxu0 0.0
  %129 = vmatpush1.msra.mxu0 0.0
  %130 = vmatprep.subr.mxu0 0.0
  %131 = vmatpush1.msra.mxu0 0.0
  %132 = vmatprep.subr.mxu0 0.0
  %133 = vmatpush1.msra.mxu0 0.0
  %134 = vmatprep.subr.mxu0 0.0
  %135 = vmatpush1.msra.mxu0 0.0
  %136 = vmatprep.subr.mxu0 0.0
  %137 = vmatpush1.msra.mxu0 0.0
  %138 = vmatprep.subr.mxu0 0.0
  %139 = vmatpush1.msra.mxu0 0.0
  %140 = vmatprep.subr.mxu0 0.0
  %141 = vmatpush1.msra.mxu0 0.0
  %142 = vmatprep.subr.mxu0 0.0
  %143 = vmatpush1.msra.mxu0 0.0
  %144 = vmatprep.subr.mxu0 0.0
  %145 = vmatpush1.msra.mxu0 0.0
  %146 = vmatprep.subr.mxu0 0.0
  %147 = vmatpush1.msra.mxu0 0.0
  %148 = vmatprep.subr.mxu0 0.0
  %149 = vmatpush1.msra.mxu0 0.0
  %150 = vmatprep.subr.mxu0 0.0
  %151 = vmatpush1.msra.mxu0 0.0
  %152 = vmatprep.subr.mxu0 0.0
  %153 = vmatpush1.msra.mxu0 0.0
  %154 = vmatprep.subr.mxu0 0.0
  %155 = vmatpush1.msra.mxu0 0.0
  %156 = vmatprep.subr.mxu0 0.0
  %157 = vmatpush1.msra.mxu0 0.0
  %158 = vmatprep.mubr.f32.mxu0 0.0
  %159 = vmatmul.mubr.f32.gmra.mrb[0].mxu0 %v58
  %v160 = vpop.f32.mrb[0].mxu0
  %v161 = vadd.f32 0.0, %v160
  %v162 = vpop.f32.mrb[0].mxu0
  %163 = vmatprep.mubr.f32.mxu0 0.0
  %164 = vmatmul.mubr.f32.gmra.mrb[0].mxu0 %v59
  %v165 = vpop.f32.mrb[0].mxu0
  %v166 = vadd.f32 0.0, %v165
  %v167 = vpop.f32.mrb[0].mxu0
  %168 = vmatprep.mubr.f32.mxu0 0.0
  %169 = vmatmul.mubr.f32.gmra.mrb[0].mxu0 %v60
  %v170 = vpop.f32.mrb[0].mxu0
  %v171 = vadd.f32 0.0, %v170
  %v172 = vpop.f32.mrb[0].mxu0
  %173 = vmatprep.mubr.f32.mxu0 0.0
  %174 = vmatmul.mubr.f32.gmra.mrb[0].mxu0 %v61
  %v175 = vpop.f32.mrb[0].mxu0
  %v176 = vadd.f32 0.0, %v175
  %v177 = vpop.f32.mrb[0].mxu0
  %178 = vmatprep.mubr.f32.mxu0 0.0
  %179 = vmatmul.mubr.f32.gmra.mrb[0].mxu0 %v62
  %v180 = vpop.f32.mrb[0].mxu0
  %v181 = vadd.f32 0.0, %v180
  %v182 = vpop.f32.mrb[0].mxu0
  %183 = vmatprep.mubr.f32.mxu0 0.0
  %184 = vmatmul.mubr.f32.gmra.mrb[0].mxu0 %v63
  %v185 = vpop.f32.mrb[0].mxu0
  %v186 = vadd.f32 0.0, %v185
  %v187 = vpop.f32.mrb[0].mxu0
  %188 = vmatprep.mubr.f32.mxu0 0.0
  %189 = vmatmul.mubr.f32.gmra.mrb[0].mxu0 %v64
  %v190 = vpop.f32.mrb[0].mxu0
  %v191 = vadd.f32 0.0, %v190
  %v192 = vpop.f32.mrb[0].mxu0
  %193 = vmatprep.mubr.f32.mxu0 0.0
  %194 = vmatmul.mubr.f32.gmra.mrb[0].mxu0 %v65
  %v195 = vpop.f32.mrb[0].mxu0
  %v196 = vadd.f32 0.0, %v195
  %v197 = vpop.f32.mrb[0].mxu0
  %198 = vmatprep.mubr.f32.mxu0 0.0
  %199 = vmatmul.mubr.f32.gmra.mrb[0].mxu0 %v66
  %v200 = vpop.f32.mrb[0].mxu0
  %v201 = vadd.f32 0.0, %v200
  %v202 = vpop.f32.mrb[0].mxu0
  %203 = vmatprep.mubr.f32.mxu0 0.0
  %204 = vmatmul.mubr.f32.gmra.mrb[0].mxu0 %v67
  %v205 = vpop.f32.mrb[0].mxu0
  %v206 = vadd.f32 0.0, %v205
  %v207 = vpop.f32.mrb[0].mxu0
  %208 = vmatprep.mubr.f32.mxu0 0.0
  %209 = vmatmul.mubr.f32.gmra.mrb[0].mxu0 %v68
  %v210 = vpop.f32.mrb[0].mxu0
  %v211 = vadd.f32 0.0, %v210
  %v212 = vpop.f32.mrb[0].mxu0
  %213 = vmatprep.mubr.f32.mxu0 0.0
  %214 = vmatmul.mubr.f32.gmra.mrb[0].mxu0 %v69
  %v215 = vpop.f32.mrb[0].mxu0
  %v216 = vadd.f32 0.0, %v215
  %v217 = vpop.f32.mrb[0].mxu0
  %218 = vmatprep.mubr.f32.mxu0 0.0
  %219 = vmatmul.mubr.f32.gmra.mrb[0].mxu0 %v70
  %v220 = vpop.f32.mrb[0].mxu0
  %v221 = vadd.f32 0.0, %v220
  %v222 = vpop.f32.mrb[0].mxu0
  %223 = vmatprep.mubr.f32.mxu0 0.0
  %224 = vmatmul.mubr.f32.gmra.mrb[0].mxu0 %v71
  %v225 = vpop.f32.mrb[0].mxu0
  %v226 = vadd.f32 0.0, %v225
  %v227 = vpop.f32.mrb[0].mxu0
  %228 = vmatprep.mubr.f32.mxu0 0.0
  %229 = vmatmul.mubr.f32.gmra.mrb[0].mxu0 %v72
  %v230 = vpop.f32.mrb[0].mxu0
  %v231 = vadd.f32 0.0, %v230
  %v232 = vpop.f32.mrb[0].mxu0
  %233 = vmatprep.mubr.f32.mxu0 0.0
  %234 = vmatmul.mubr.f32.gmra.mrb[0].mxu0 %v73
  %v235 = vpop.f32.mrb[0].mxu0
  %v236 = vadd.f32 0.0, %v235
  %v237 = vpop.f32.mrb[0].mxu0
  %238 = vmatprep.mubr.f32.mxu0 0.0
  %239 = vmatmul.mubr.f32.gmra.mrb[0].mxu0 %v74
  %v240 = vpop.f32.mrb[0].mxu0
  %v241 = vadd.f32 0.0, %v240
  %v242 = vpop.f32.mrb[0].mxu0
  %243 = vmatprep.mubr.f32.mxu0 0.0
  %244 = vmatmul.mubr.f32.gmra.mrb[0].mxu0 %v75
  %v245 = vpop.f32.mrb[0].mxu0
  %v246 = vadd.f32 0.0, %v245
  %v247 = vpop.f32.mrb[0].mxu0
  %248 = vmatprep.mubr.f32.mxu0 0.0
  %249 = vmatmul.mubr.f32.gmra.mrb[0].mxu0 %v76
  %v250 = vpop.f32.mrb[0].mxu0
  %v251 = vadd.f32 0.0, %v250
  %v252 = vpop.f32.mrb[0].mxu0
  %253 = vmatprep.mubr.f32.mxu0 0.0
  %254 = vmatmul.mubr.f32.gmra.mrb[0].mxu0 %v77
  %v255 = vpop.f32.mrb[0].mxu0
  %v256 = vadd.f32 0.0, %v255
  %v257 = vpop.f32.mrb[0].mxu0
  %258 = vdwg.mxu0
  %v259 = vadd.f32 %v38, %v161
  %v260 = vadd.f32 %v39, %v166
  %v261 = vadd.f32 %v40, %v171
  %v262 = vadd.f32 %v41, %v176
  %v263 = vadd.f32 %v42, %v181
  %v264 = vadd.f32 %v43, %v186
  %v265 = vadd.f32 %v44, %v191
  %v266 = vadd.f32 %v45, %v196
  %v267 = vadd.f32 %v46, %v201
  %v268 = vadd.f32 %v47, %v206
  %v269 = vadd.f32 %v48, %v211
  %v270 = vadd.f32 %v49, %v216
  %v271 = vadd.f32 %v50, %v221
  %v272 = vadd.f32 %v51, %v226
  %v273 = vadd.f32 %v52, %v231
  %v274 = vadd.f32 %v53, %v236
  %v275 = vadd.f32 %v54, %v241
  %v276 = vadd.f32 %v55, %v246
  %v277 = vadd.f32 %v56, %v251
  %v278 = vadd.f32 %v57, %v256
  %279 = vst [vmem:[#allocation2] sm:$0xff] %v259
  %280 = vst [vmem:[#allocation2 + $0x8] sm:$0xff] %v260
  %281 = vst [vmem:[#allocation2 + $0x10] sm:$0xff] %v261
  %282 = vst [vmem:[#allocation2 + $0x18] sm:$0xff] %v262
  %283 = vst [vmem:[#allocation2 + $0x20] sm:$0xff] %v263
  %284 = vst [vmem:[#allocation2 + $0x28] sm:$0xff] %v264
  %285 = vst [vmem:[#allocation2 + $0x30] sm:$0xff] %v265
  %286 = vst [vmem:[#allocation2 + $0x38] sm:$0xff] %v266
  %287 = vst [vmem:[#allocation2 + $0x40] sm:$0xff] %v267
  %288 = vst [vmem:[#allocation2 + $0x48] sm:$0xff] %v268
  %289 = vst [vmem:[#allocation2 + $0x50] sm:$0xff] %v269
  %290 = vst [vmem:[#allocation2 + $0x58] sm:$0xff] %v270
  %291 = vst [vmem:[#allocation2 + $0x60] sm:$0xff] %v271
  %292 = vst [vmem:[#allocation2 + $0x68] sm:$0xff] %v272
  %293 = vst [vmem:[#allocation2 + $0x70] sm:$0xff] %v273
  %294 = vst [vmem:[#allocation2 + $0x78] sm:$0xff] %v274
  %295 = vst [vmem:[#allocation2 + $0x80] sm:$0xff] %v275
  %296 = vst [vmem:[#allocation2 + $0x88] sm:$0xff] %v276
  %297 = vst [vmem:[#allocation2 + $0x90] sm:$0xff] %v277
  %298 = vst [vmem:[#allocation2 + $0x98] sm:$0xff] %v278
  // Predicated region
  $region18: #{deformable_transformer_forward.42} parent=0 // pred_check
    %p299 = pneg %p14
  $region19: #{deformable_transformer_forward.42} parent=0 // pred_check_branch
    %301 = sbr.rel (%p299) target = $region21
  $region20: #{deformable_transformer_forward.42} parent=0 // pred_region
    %v302 = vld [vmem:[#allocation2] sm:$0xff]
    %v303 = vld [vmem:[#allocation2 + $0x8] sm:$0xff]
    %v304 = vld [vmem:[#allocation2 + $0x10] sm:$0xff]
    %v305 = vld [vmem:[#allocation2 + $0x18] sm:$0xff]
    %v306 = vld [vmem:[#allocation2 + $0x20] sm:$0xff]
    %v307 = vld [vmem:[#allocation2 + $0x28] sm:$0xff]
    %v308 = vld [vmem:[#allocation2 + $0x30] sm:$0xff]
    %v309 = vld [vmem:[#allocation2 + $0x38] sm:$0xff]
    %v310 = vld [vmem:[#allocation2 + $0x40] sm:$0xff]
    %v311 = vld [vmem:[#allocation2 + $0x48] sm:$0xff]
    %v312 = vld [vmem:[#allocation2 + $0x50] sm:$0xff]
    %v313 = vld [vmem:[#allocation2 + $0x58] sm:$0xff]
    %v314 = vld [vmem:[#allocation2 + $0x60] sm:$0xff]
    %v315 = vld [vmem:[#allocation2 + $0x68] sm:$0xff]
    %v316 = vld [vmem:[#allocation2 + $0x70] sm:$0xff]
    %v317 = vld [vmem:[#allocation2 + $0x78] sm:$0xff]
    %v318 = vld [vmem:[#allocation2 + $0x80] sm:$0xff]
    %v319 = vld [vmem:[#allocation2 + $0x88] sm:$0xff]
    %v320 = vld [vmem:[#allocation2 + $0x90] sm:$0xff]
    %v321 = vld [vmem:[#allocation2 + $0x98] sm:$0xff]
    %v322 = vld [vmem:[%s2] sm:$0x1]
    %v324 = vlaneseq
    %v325 = vshrl.u32 %v324, 7
    %v326 = vsub.s32 0, %v325
    %v327 = vrot.slane %v322, %v326
    %v329 = vadd.f32 %v302, %v327
    %v330 = vadd.f32 %v303, %v327
    %v331 = vadd.f32 %v304, %v327
    %v332 = vadd.f32 %v305, %v327
    %v333 = vadd.f32 %v306, %v327
    %v334 = vadd.f32 %v307, %v327
    %v335 = vadd.f32 %v308, %v327
    %v336 = vadd.f32 %v309, %v327
    %v337 = vadd.f32 %v310, %v327
    %v338 = vadd.f32 %v311, %v327
    %v339 = vadd.f32 %v312, %v327
    %v340 = vadd.f32 %v313, %v327
    %v341 = vadd.f32 %v314, %v327
    %v342 = vadd.f32 %v315, %v327
    %v343 = vadd.f32 %v316, %v327
    %v344 = vadd.f32 %v317, %v327
    %v345 = vadd.f32 %v318, %v327
    %v346 = vadd.f32 %v319, %v327
    %v347 = vadd.f32 %v320, %v327
    %v348 = vadd.f32 %v321, %v327
    %349 = vst [vmem:[%s3] sm:$0xff] %v329
    %350 = vst [vmem:[%s3 + $0x8] sm:$0xff] %v330
    %351 = vst [vmem:[%s3 + $0x10] sm:$0xff] %v331
    %352 = vst [vmem:[%s3 + $0x18] sm:$0xff] %v332
    %353 = vst [vmem:[%s3 + $0x20] sm:$0xff] %v333
    %354 = vst [vmem:[%s3 + $0x28] sm:$0xff] %v334
    %355 = vst [vmem:[%s3 + $0x30] sm:$0xff] %v335
    %356 = vst [vmem:[%s3 + $0x38] sm:$0xff] %v336
    %357 = vst [vmem:[%s3 + $0x40] sm:$0xff] %v337
    %358 = vst [vmem:[%s3 + $0x48] sm:$0xff] %v338
    %359 = vst [vmem:[%s3 + $0x50] sm:$0xff] %v339
    %360 = vst [vmem:[%s3 + $0x58] sm:$0xff] %v340
    %361 = vst [vmem:[%s3 + $0x60] sm:$0xff] %v341
    %362 = vst [vmem:[%s3 + $0x68] sm:$0xff] %v342
    %363 = vst [vmem:[%s3 + $0x70] sm:$0xff] %v343
    %364 = vst [vmem:[%s3 + $0x78] sm:$0xff] %v344
    %365 = vst [vmem:[%s3 + $0x80] sm:$0xff] %v345
    %366 = vst [vmem:[%s3 + $0x88] sm:$0xff] %v346
    %367 = vst [vmem:[%s3 + $0x90] sm:$0xff] %v347
    %368 = vst [vmem:[%s3 + $0x98] sm:$0xff] %v348
  $region21: #{deformable_transformer_forward.42} parent=0 // pred_fallthru
    _
  // Predicated region
  $region22: #{deformable_transformer_forward.42} parent=0 // pred_check
    _
  $region23: #{deformable_transformer_forward.42} parent=0 // pred_check_branch
    %370 = sbr.rel (0) target = $region25
  $region24: #{deformable_transformer_forward.42} parent=0 // pred_region
    _
  $region25: #{deformable_transformer_forward.42} parent=0 // pred_fallthru
    _
  // Predicated region
  $region26: #{deformable_transformer_forward.42} parent=0 // pred_check
    _
  $region27: #{deformable_transformer_forward.42} parent=0 // pred_check_branch
    %372 = sbr.rel (0) target = $region29
  $region28: #{deformable_transformer_forward.42} parent=0 // pred_region
    _
  $region29: #{deformable_transformer_forward.42} parent=0 // pred_fallthru
    _

// kernel: deformable_transformer_forward.46
$region0: #{deformable_transformer_forward.46}
  #allocation0 [shape = 'u32[]', space=smem, size = 0x4, offset = 0x4, fixed_abs, tag = 'smem constant byte address 0x4 - core index']
  #allocation1 [shape = 'u32[144,128]{1,0:T(1,128)}', space=vmem, size = 0x12000, scoped, tag = 'internal scratch']
  %s0 = inlined_call_operand.vmem [shape: f32[160,32], index: 0, kind: input, shape index: {}]
  %s1 = inlined_call_operand.vmem [shape: f32[160,32], index: 1, kind: input, shape index: {}, may-alias: {1,4}]
  %s2 = inlined_call_operand.vmem [shape: f32[1,32], index: 2, kind: input, shape index: {}]
  %s3 = inlined_call_operand.vmem [shape: f32[1,32], index: 3, kind: input, shape index: {}]
  %s4 = inlined_call_operand.vmem [shape: f32[160,32], index: 4, kind: output, shape index: {}, may-alias: {1,4}]
  %s5 = sld [smem:[#allocation0]]
  $region26: #{deformable_transformer_forward.46} parent=0
    _
  %s7 = ssub.s32 1, %s5
  %s8 = scalar_select 0, %s7, %s5
  // Predicated region
  $region2: #{deformable_transformer_forward.46} parent=0 // pred_check
    _
  $region3: #{deformable_transformer_forward.46} parent=0 // pred_check_branch
    %10 = sbr.rel (0) target = $region5
  $region4: #{deformable_transformer_forward.46} parent=0 // pred_region
    _
  $region5: #{deformable_transformer_forward.46} parent=0 // pred_fallthru
    _
  // Predicated region
  $region6: #{deformable_transformer_forward.46} parent=0 // pred_check
    _
  $region7: #{deformable_transformer_forward.46} parent=0 // pred_check_branch
    %12 = sbr.rel (0) target = $region9
  $region8: #{deformable_transformer_forward.46} parent=0 // pred_region
    _
  $region9: #{deformable_transformer_forward.46} parent=0 // pred_fallthru
    _
  // Predicated region
  $region10: #{deformable_transformer_forward.46} parent=0 // pred_check
    _
  $region11: #{deformable_transformer_forward.46} parent=0 // pred_check_branch
    %14 = sbr.rel (0) target = $region13
  $region12: #{deformable_transformer_forward.46} parent=0 // pred_region
    _
  $region13: #{deformable_transformer_forward.46} parent=0 // pred_fallthru
    _
  // Predicated region
  $region14: #{deformable_transformer_forward.46} parent=0 // pred_check
    _
  $region15: #{deformable_transformer_forward.46} parent=0 // pred_check_branch
    %16 = sbr.rel (0) target = $region17
  $region16: #{deformable_transformer_forward.46} parent=0 // pred_region
    _
  $region17: #{deformable_transformer_forward.46} parent=0 // pred_fallthru
    _
  %v17 = vld [vmem:[%s0] sm:$0xff]
  %v18 = vld [vmem:[%s0 + $0x8] sm:$0xff]
  %v19 = vld [vmem:[%s0 + $0x10] sm:$0xff]
  %v20 = vld [vmem:[%s0 + $0x18] sm:$0xff]
  %v21 = vld [vmem:[%s0 + $0x20] sm:$0xff]
  %v22 = vld [vmem:[%s0 + $0x28] sm:$0xff]
  %v23 = vld [vmem:[%s0 + $0x30] sm:$0xff]
  %v24 = vld [vmem:[%s0 + $0x38] sm:$0xff]
  %v25 = vld [vmem:[%s0 + $0x40] sm:$0xff]
  %v26 = vld [vmem:[%s0 + $0x48] sm:$0xff]
  %v27 = vld [vmem:[%s0 + $0x50] sm:$0xff]
  %v28 = vld [vmem:[%s0 + $0x58] sm:$0xff]
  %v29 = vld [vmem:[%s0 + $0x60] sm:$0xff]
  %v30 = vld [vmem:[%s0 + $0x68] sm:$0xff]
  %v31 = vld [vmem:[%s0 + $0x70] sm:$0xff]
  %v32 = vld [vmem:[%s0 + $0x78] sm:$0xff]
  %v33 = vld [vmem:[%s0 + $0x80] sm:$0xff]
  %v34 = vld [vmem:[%s0 + $0x88] sm:$0xff]
  %v35 = vld [vmem:[%s0 + $0x90] sm:$0xff]
  %v36 = vld [vmem:[%s0 + $0x98] sm:$0xff]
  %v37 = vld [vmem:[%s1] sm:$0xff]
  %v38 = vld [vmem:[%s1 + $0x8] sm:$0xff]
  %v39 = vld [vmem:[%s1 + $0x10] sm:$0xff]
  %v40 = vld [vmem:[%s1 + $0x18] sm:$0xff]
  %v41 = vld [vmem:[%s1 + $0x20] sm:$0xff]
  %v42 = vld [vmem:[%s1 + $0x28] sm:$0xff]
  %v43 = vld [vmem:[%s1 + $0x30] sm:$0xff]
  %v44 = vld [vmem:[%s1 + $0x38] sm:$0xff]
  %v45 = vld [vmem:[%s1 + $0x40] sm:$0xff]
  %v46 = vld [vmem:[%s1 + $0x48] sm:$0xff]
  %v47 = vld [vmem:[%s1 + $0x50] sm:$0xff]
  %v48 = vld [vmem:[%s1 + $0x58] sm:$0xff]
  %v49 = vld [vmem:[%s1 + $0x60] sm:$0xff]
  %v50 = vld [vmem:[%s1 + $0x68] sm:$0xff]
  %v51 = vld [vmem:[%s1 + $0x70] sm:$0xff]
  %v52 = vld [vmem:[%s1 + $0x78] sm:$0xff]
  %v53 = vld [vmem:[%s1 + $0x80] sm:$0xff]
  %v54 = vld [vmem:[%s1 + $0x88] sm:$0xff]
  %v55 = vld [vmem:[%s1 + $0x90] sm:$0xff]
  %v56 = vld [vmem:[%s1 + $0x98] sm:$0xff]
  %v57 = vadd.f32 %v17, %v37
  %v58 = vadd.f32 %v18, %v38
  %v59 = vadd.f32 %v19, %v39
  %v60 = vadd.f32 %v20, %v40
  %v61 = vadd.f32 %v21, %v41
  %v62 = vadd.f32 %v22, %v42
  %v63 = vadd.f32 %v23, %v43
  %v64 = vadd.f32 %v24, %v44
  %v65 = vadd.f32 %v25, %v45
  %v66 = vadd.f32 %v26, %v46
  %v67 = vadd.f32 %v27, %v47
  %v68 = vadd.f32 %v28, %v48
  %v69 = vadd.f32 %v29, %v49
  %v70 = vadd.f32 %v30, %v50
  %v71 = vadd.f32 %v31, %v51
  %v72 = vadd.f32 %v32, %v52
  %v73 = vadd.f32 %v33, %v53
  %v74 = vadd.f32 %v34, %v54
  %v75 = vadd.f32 %v35, %v55
  %v76 = vadd.f32 %v36, %v56
  %vm77 = vcmask 261120
  %v78 = vsel %vm77, %v57, 0.0
  %79 = vadd.xlane.f32.xlu0 %v78
  %v80 = vpop.xlane.xlu0 %79
  %v81 = vsel %vm77, %v58, 0.0
  %82 = vadd.xlane.f32.xlu0 %v81
  %v83 = vpop.xlane.xlu0 %82
  %v84 = vsel %vm77, %v59, 0.0
  %85 = vadd.xlane.f32.xlu0 %v84
  %v86 = vpop.xlane.xlu0 %85
  %v87 = vsel %vm77, %v60, 0.0
  %88 = vadd.xlane.f32.xlu0 %v87
  %v89 = vpop.xlane.xlu0 %88
  %v90 = vsel %vm77, %v61, 0.0
  %91 = vadd.xlane.f32.xlu0 %v90
  %v92 = vpop.xlane.xlu0 %91
  %v93 = vsel %vm77, %v62, 0.0
  %94 = vadd.xlane.f32.xlu0 %v93
  %v95 = vpop.xlane.xlu0 %94
  %v96 = vsel %vm77, %v63, 0.0
  %97 = vadd.xlane.f32.xlu0 %v96
  %v98 = vpop.xlane.xlu0 %97
  %v99 = vsel %vm77, %v64, 0.0
  %100 = vadd.xlane.f32.xlu0 %v99
  %v101 = vpop.xlane.xlu0 %100
  %v102 = vsel %vm77, %v65, 0.0
  %103 = vadd.xlane.f32.xlu0 %v102
  %v104 = vpop.xlane.xlu0 %103
  %v105 = vsel %vm77, %v66, 0.0
  %106 = vadd.xlane.f32.xlu0 %v105
  %v107 = vpop.xlane.xlu0 %106
  %v108 = vsel %vm77, %v67, 0.0
  %109 = vadd.xlane.f32.xlu0 %v108
  %v110 = vpop.xlane.xlu0 %109
  %v111 = vsel %vm77, %v68, 0.0
  %112 = vadd.xlane.f32.xlu0 %v111
  %v113 = vpop.xlane.xlu0 %112
  %v114 = vsel %vm77, %v69, 0.0
  %115 = vadd.xlane.f32.xlu0 %v114
  %v116 = vpop.xlane.xlu0 %115
  %v117 = vsel %vm77, %v70, 0.0
  %118 = vadd.xlane.f32.xlu0 %v117
  %v119 = vpop.xlane.xlu0 %118
  %v120 = vsel %vm77, %v71, 0.0
  %121 = vadd.xlane.f32.xlu0 %v120
  %v122 = vpop.xlane.xlu0 %121
  %v123 = vsel %vm77, %v72, 0.0
  %124 = vadd.xlane.f32.xlu0 %v123
  %v125 = vpop.xlane.xlu0 %124
  %v126 = vsel %vm77, %v73, 0.0
  %127 = vadd.xlane.f32.xlu0 %v126
  %v128 = vpop.xlane.xlu0 %127
  %v129 = vsel %vm77, %v74, 0.0
  %130 = vadd.xlane.f32.xlu0 %v129
  %v131 = vpop.xlane.xlu0 %130
  %v132 = vsel %vm77, %v75, 0.0
  %133 = vadd.xlane.f32.xlu0 %v132
  %v134 = vpop.xlane.xlu0 %133
  %v135 = vsel %vm77, %v76, 0.0
  %136 = vadd.xlane.f32.xlu0 %v135
  %v137 = vpop.xlane.xlu0 %136
  %v138 = vrcp.pop 32.0
  %v139 = vmul.f32 %v80, %v138
  %v140 = vmul.f32 %v83, %v138
  %v141 = vmul.f32 %v86, %v138
  %v142 = vmul.f32 %v89, %v138
  %v143 = vmul.f32 %v92, %v138
  %v144 = vmul.f32 %v95, %v138
  %v145 = vmul.f32 %v98, %v138
  %v146 = vmul.f32 %v101, %v138
  %v147 = vmul.f32 %v104, %v138
  %v148 = vmul.f32 %v107, %v138
  %v149 = vmul.f32 %v110, %v138
  %v150 = vmul.f32 %v113, %v138
  %v151 = vmul.f32 %v116, %v138
  %v152 = vmul.f32 %v119, %v138
  %v153 = vmul.f32 %v122, %v138
  %v154 = vmul.f32 %v125, %v138
  %v155 = vmul.f32 %v128, %v138
  %v156 = vmul.f32 %v131, %v138
  %v157 = vmul.f32 %v134, %v138
  %v158 = vmul.f32 %v137, %v138
  %v159 = vsub.f32 %v57, %v139
  %v160 = vsub.f32 %v58, %v140
  %v161 = vsub.f32 %v59, %v141
  %v162 = vsub.f32 %v60, %v142
  %v163 = vsub.f32 %v61, %v143
  %v164 = vsub.f32 %v62, %v144
  %v165 = vsub.f32 %v63, %v145
  %v166 = vsub.f32 %v64, %v146
  %v167 = vsub.f32 %v65, %v147
  %v168 = vsub.f32 %v66, %v148
  %v169 = vsub.f32 %v67, %v149
  %v170 = vsub.f32 %v68, %v150
  %v171 = vsub.f32 %v69, %v151
  %v172 = vsub.f32 %v70, %v152
  %v173 = vsub.f32 %v71, %v153
  %v174 = vsub.f32 %v72, %v154
  %v175 = vsub.f32 %v73, %v155
  %v176 = vsub.f32 %v74, %v156
  %v177 = vsub.f32 %v75, %v157
  %v178 = vsub.f32 %v76, %v158
  %v179 = vmul.f32 %v159, %v159
  %v180 = vmul.f32 %v160, %v160
  %v181 = vmul.f32 %v161, %v161
  %v182 = vmul.f32 %v162, %v162
  %v183 = vmul.f32 %v163, %v163
  %v184 = vmul.f32 %v164, %v164
  %v185 = vmul.f32 %v165, %v165
  %v186 = vmul.f32 %v166, %v166
  %v187 = vmul.f32 %v167, %v167
  %v188 = vmul.f32 %v168, %v168
  %v189 = vmul.f32 %v169, %v169
  %v190 = vmul.f32 %v170, %v170
  %v191 = vmul.f32 %v171, %v171
  %v192 = vmul.f32 %v172, %v172
  %v193 = vmul.f32 %v173, %v173
  %v194 = vmul.f32 %v174, %v174
  %v195 = vmul.f32 %v175, %v175
  %v196 = vmul.f32 %v176, %v176
  %v197 = vmul.f32 %v177, %v177
  %v198 = vmul.f32 %v178, %v178
  %v199 = vsel %vm77, %v179, 0.0
  %200 = vadd.xlane.f32.xlu0 %v199
  %v201 = vpop.xlane.xlu0 %200
  %v202 = vsel %vm77, %v180, 0.0
  %203 = vadd.xlane.f32.xlu0 %v202
  %v204 = vpop.xlane.xlu0 %203
  %v205 = vsel %vm77, %v181, 0.0
  %206 = vadd.xlane.f32.xlu0 %v205
  %v207 = vpop.xlane.xlu0 %206
  %v208 = vsel %vm77, %v182, 0.0
  %209 = vadd.xlane.f32.xlu0 %v208
  %v210 = vpop.xlane.xlu0 %209
  %v211 = vsel %vm77, %v183, 0.0
  %212 = vadd.xlane.f32.xlu0 %v211
  %v213 = vpop.xlane.xlu0 %212
  %v214 = vsel %vm77, %v184, 0.0
  %215 = vadd.xlane.f32.xlu0 %v214
  %v216 = vpop.xlane.xlu0 %215
  %v217 = vsel %vm77, %v185, 0.0
  %218 = vadd.xlane.f32.xlu0 %v217
  %v219 = vpop.xlane.xlu0 %218
  %v220 = vsel %vm77, %v186, 0.0
  %221 = vadd.xlane.f32.xlu0 %v220
  %v222 = vpop.xlane.xlu0 %221
  %v223 = vsel %vm77, %v187, 0.0
  %224 = vadd.xlane.f32.xlu0 %v223
  %v225 = vpop.xlane.xlu0 %224
  %v226 = vsel %vm77, %v188, 0.0
  %227 = vadd.xlane.f32.xlu0 %v226
  %v228 = vpop.xlane.xlu0 %227
  %v229 = vsel %vm77, %v189, 0.0
  %230 = vadd.xlane.f32.xlu0 %v229
  %v231 = vpop.xlane.xlu0 %230
  %v232 = vsel %vm77, %v190, 0.0
  %233 = vadd.xlane.f32.xlu0 %v232
  %v234 = vpop.xlane.xlu0 %233
  %v235 = vsel %vm77, %v191, 0.0
  %236 = vadd.xlane.f32.xlu0 %v235
  %v237 = vpop.xlane.xlu0 %236
  %v238 = vsel %vm77, %v192, 0.0
  %239 = vadd.xlane.f32.xlu0 %v238
  %v240 = vpop.xlane.xlu0 %239
  %v241 = vsel %vm77, %v193, 0.0
  %242 = vadd.xlane.f32.xlu0 %v241
  %v243 = vpop.xlane.xlu0 %242
  %v244 = vsel %vm77, %v194, 0.0
  %245 = vadd.xlane.f32.xlu0 %v244
  %v246 = vpop.xlane.xlu0 %245
  %v247 = vsel %vm77, %v195, 0.0
  %248 = vadd.xlane.f32.xlu0 %v247
  %v249 = vpop.xlane.xlu0 %248
  %v250 = vsel %vm77, %v196, 0.0
  %251 = vadd.xlane.f32.xlu0 %v250
  %v252 = vpop.xlane.xlu0 %251
  %v253 = vsel %vm77, %v197, 0.0
  %254 = vadd.xlane.f32.xlu0 %v253
  %v255 = vpop.xlane.xlu0 %254
  %v256 = vsel %vm77, %v198, 0.0
  %257 = vadd.xlane.f32.xlu0 %v256
  %v258 = vpop.xlane.xlu0 %257
  %v259 = vmul.f32 %v201, %v138
  %v260 = vmul.f32 %v204, %v138
  %v261 = vmul.f32 %v207, %v138
  %v262 = vmul.f32 %v210, %v138
  %v263 = vmul.f32 %v213, %v138
  %v264 = vmul.f32 %v216, %v138
  %v265 = vmul.f32 %v219, %v138
  %v266 = vmul.f32 %v222, %v138
  %v267 = vmul.f32 %v225, %v138
  %v268 = vmul.f32 %v228, %v138
  %v269 = vmul.f32 %v231, %v138
  %v270 = vmul.f32 %v234, %v138
  %v271 = vmul.f32 %v237, %v138
  %v272 = vmul.f32 %v240, %v138
  %v273 = vmul.f32 %v243, %v138
  %v274 = vmul.f32 %v246, %v138
  %v275 = vmul.f32 %v249, %v138
  %v276 = vmul.f32 %v252, %v138
  %v277 = vmul.f32 %v255, %v138
  %v278 = vmul.f32 %v258, %v138
  %v279 = vadd.f32 %v259, 1e-05
  %v280 = vadd.f32 %v260, 1e-05
  %v281 = vadd.f32 %v261, 1e-05
  %v282 = vadd.f32 %v262, 1e-05
  %v283 = vadd.f32 %v263, 1e-05
  %v284 = vadd.f32 %v264, 1e-05
  %v285 = vadd.f32 %v265, 1e-05
  %v286 = vadd.f32 %v266, 1e-05
  %v287 = vadd.f32 %v267, 1e-05
  %v288 = vadd.f32 %v268, 1e-05
  %v289 = vadd.f32 %v269, 1e-05
  %v290 = vadd.f32 %v270, 1e-05
  %v291 = vadd.f32 %v271, 1e-05
  %v292 = vadd.f32 %v272, 1e-05
  %v293 = vadd.f32 %v273, 1e-05
  %v294 = vadd.f32 %v274, 1e-05
  %v295 = vadd.f32 %v275, 1e-05
  %v296 = vadd.f32 %v276, 1e-05
  %v297 = vadd.f32 %v277, 1e-05
  %v298 = vadd.f32 %v278, 1e-05
  %v299 = vrsqrt.pop %v279
  %v300 = vrsqrt.pop %v280
  %v301 = vrsqrt.pop %v281
  %v302 = vrsqrt.pop %v282
  %v303 = vrsqrt.pop %v283
  %v304 = vrsqrt.pop %v284
  %v305 = vrsqrt.pop %v285
  %v306 = vrsqrt.pop %v286
  %v307 = vrsqrt.pop %v287
  %v308 = vrsqrt.pop %v288
  %v309 = vrsqrt.pop %v289
  %v310 = vrsqrt.pop %v290
  %v311 = vrsqrt.pop %v291
  %v312 = vrsqrt.pop %v292
  %v313 = vrsqrt.pop %v293
  %v314 = vrsqrt.pop %v294
  %v315 = vrsqrt.pop %v295
  %v316 = vrsqrt.pop %v296
  %v317 = vrsqrt.pop %v297
  %v318 = vrsqrt.pop %v298
  %v319 = vmul.f32 %v159, %v299
  %v320 = vmul.f32 %v160, %v300
  %v321 = vmul.f32 %v161, %v301
  %v322 = vmul.f32 %v162, %v302
  %v323 = vmul.f32 %v163, %v303
  %v324 = vmul.f32 %v164, %v304
  %v325 = vmul.f32 %v165, %v305
  %v326 = vmul.f32 %v166, %v306
  %v327 = vmul.f32 %v167, %v307
  %v328 = vmul.f32 %v168, %v308
  %v329 = vmul.f32 %v169, %v309
  %v330 = vmul.f32 %v170, %v310
  %v331 = vmul.f32 %v171, %v311
  %v332 = vmul.f32 %v172, %v312
  %v333 = vmul.f32 %v173, %v313
  %v334 = vmul.f32 %v174, %v314
  %v335 = vmul.f32 %v175, %v315
  %v336 = vmul.f32 %v176, %v316
  %v337 = vmul.f32 %v177, %v317
  %v338 = vmul.f32 %v178, %v318
  %v339 = vld [vmem:[%s2] sm:$0x1]
  %v341 = vlaneseq
  %v342 = vshrl.u32 %v341, 7
  %v343 = vsub.s32 0, %v342
  %v344 = vrot.slane %v339, %v343
  %v346 = vmul.f32 %v319, %v344
  %v347 = vmul.f32 %v320, %v344
  %v348 = vmul.f32 %v321, %v344
  %v349 = vmul.f32 %v322, %v344
  %v350 = vmul.f32 %v323, %v344
  %v351 = vmul.f32 %v324, %v344
  %v352 = vmul.f32 %v325, %v344
  %v353 = vmul.f32 %v326, %v344
  %v354 = vmul.f32 %v327, %v344
  %v355 = vmul.f32 %v328, %v344
  %v356 = vmul.f32 %v329, %v344
  %v357 = vmul.f32 %v330, %v344
  %v358 = vmul.f32 %v331, %v344
  %v359 = vmul.f32 %v332, %v344
  %v360 = vmul.f32 %v333, %v344
  %v361 = vmul.f32 %v334, %v344
  %v362 = vmul.f32 %v335, %v344
  %v363 = vmul.f32 %v336, %v344
  %v364 = vmul.f32 %v337, %v344
  %v365 = vmul.f32 %v338, %v344
  %v366 = vld [vmem:[%s3] sm:$0x1]
  %v368 = vlaneseq
  %v369 = vshrl.u32 %v368, 7
  %v370 = vsub.s32 0, %v369
  %v371 = vrot.slane %v366, %v370
  %v373 = vadd.f32 %v346, %v371
  %v374 = vadd.f32 %v347, %v371
  %v375 = vadd.f32 %v348, %v371
  %v376 = vadd.f32 %v349, %v371
  %v377 = vadd.f32 %v350, %v371
  %v378 = vadd.f32 %v351, %v371
  %v379 = vadd.f32 %v352, %v371
  %v380 = vadd.f32 %v353, %v371
  %v381 = vadd.f32 %v354, %v371
  %v382 = vadd.f32 %v355, %v371
  %v383 = vadd.f32 %v356, %v371
  %v384 = vadd.f32 %v357, %v371
  %v385 = vadd.f32 %v358, %v371
  %v386 = vadd.f32 %v359, %v371
  %v387 = vadd.f32 %v360, %v371
  %v388 = vadd.f32 %v361, %v371
  %v389 = vadd.f32 %v362, %v371
  %v390 = vadd.f32 %v363, %v371
  %v391 = vadd.f32 %v364, %v371
  %v392 = vadd.f32 %v365, %v371
  %393 = vst.msk [vmem:[%s4] sm:$0xff] %vm77, %v373
  %394 = vst.msk [vmem:[%s4 + $0x8] sm:$0xff] %vm77, %v374
  %395 = vst.msk [vmem:[%s4 + $0x10] sm:$0xff] %vm77, %v375
  %396 = vst.msk [vmem:[%s4 + $0x18] sm:$0xff] %vm77, %v376
  %397 = vst.msk [vmem:[%s4 + $0x20] sm:$0xff] %vm77, %v377
  %398 = vst.msk [vmem:[%s4 + $0x28] sm:$0xff] %vm77, %v378
  %399 = vst.msk [vmem:[%s4 + $0x30] sm:$0xff] %vm77, %v379
  %400 = vst.msk [vmem:[%s4 + $0x38] sm:$0xff] %vm77, %v380
  %401 = vst.msk [vmem:[%s4 + $0x40] sm:$0xff] %vm77, %v381
  %402 = vst.msk [vmem:[%s4 + $0x48] sm:$0xff] %vm77, %v382
  %403 = vst.msk [vmem:[%s4 + $0x50] sm:$0xff] %vm77, %v383
  %404 = vst.msk [vmem:[%s4 + $0x58] sm:$0xff] %vm77, %v384
  %405 = vst.msk [vmem:[%s4 + $0x60] sm:$0xff] %vm77, %v385
  %406 = vst.msk [vmem:[%s4 + $0x68] sm:$0xff] %vm77, %v386
  %407 = vst.msk [vmem:[%s4 + $0x70] sm:$0xff] %vm77, %v387
  %408 = vst.msk [vmem:[%s4 + $0x78] sm:$0xff] %vm77, %v388
  %409 = vst.msk [vmem:[%s4 + $0x80] sm:$0xff] %vm77, %v389
  %410 = vst.msk [vmem:[%s4 + $0x88] sm:$0xff] %vm77, %v390
  %411 = vst.msk [vmem:[%s4 + $0x90] sm:$0xff] %vm77, %v391
  %412 = vst.msk [vmem:[%s4 + $0x98] sm:$0xff] %vm77, %v392
  // Predicated region
  $region18: #{deformable_transformer_forward.46} parent=0 // pred_check
    _
  $region19: #{deformable_transformer_forward.46} parent=0 // pred_check_branch
    %414 = sbr.rel (0) target = $region21
  $region20: #{deformable_transformer_forward.46} parent=0 // pred_region
    _
  $region21: #{deformable_transformer_forward.46} parent=0 // pred_fallthru
    _
  // Predicated region
  $region22: #{deformable_transformer_forward.46} parent=0 // pred_check
    _
  $region23: #{deformable_transformer_forward.46} parent=0 // pred_check_branch
    %416 = sbr.rel (0) target = $region25
  $region24: #{deformable_transformer_forward.46} parent=0 // pred_region
    _
  $region25: #{deformable_transformer_forward.46} parent=0 // pred_fallthru
    _

// kernel: deformable_transformer_forward.47
$region0: #{deformable_transformer_forward.47}
  #allocation0 [shape = 'u32[]', space=smem, size = 0x4, offset = 0x4, fixed_abs, tag = 'smem constant byte address 0x4 - core index']
  #allocation1 [shape = 'u32[144,128]{1,0:T(1,128)}', space=vmem, size = 0x12000, scoped, tag = 'internal scratch']
  #allocation2 [shape = 'f32[160,128]{1,0:T(8,128)}', space=vmem, size = 0x14000, scoped, tag = 'scratch operand']
  %s0 = inlined_call_operand.vmem [shape: f32[160,128], index: 0, kind: input, shape index: {}]
  %s1 = inlined_call_operand.vmem [shape: f32[128,128], index: 1, kind: input, shape index: {}]
  %s2 = inlined_call_operand.vmem [shape: f32[1,128], index: 2, kind: input, shape index: {}]
  %s3 = inlined_call_operand.vmem [shape: f32[160,128], index: 3, kind: output, shape index: {}]
  %s4 = sld [smem:[#allocation0]]
  $region30: #{deformable_transformer_forward.47} parent=0
    _
  %s6 = ssub.s32 1, %s4
  %s7 = scalar_select 0, %s6, %s4
  // Predicated region
  $region2: #{deformable_transformer_forward.47} parent=0 // pred_check
    _
  $region3: #{deformable_transformer_forward.47} parent=0 // pred_check_branch
    %9 = sbr.rel (0) target = $region5
  $region4: #{deformable_transformer_forward.47} parent=0 // pred_region
    _
  $region5: #{deformable_transformer_forward.47} parent=0 // pred_fallthru
    _
  // Predicated region
  $region6: #{deformable_transformer_forward.47} parent=0 // pred_check
    _
  $region7: #{deformable_transformer_forward.47} parent=0 // pred_check_branch
    %11 = sbr.rel (0) target = $region9
  $region8: #{deformable_transformer_forward.47} parent=0 // pred_region
    _
  $region9: #{deformable_transformer_forward.47} parent=0 // pred_fallthru
    _
  // Predicated region
  $region10: #{deformable_transformer_forward.47} parent=0 // pred_check
    _
  $region11: #{deformable_transformer_forward.47} parent=0 // pred_check_branch
    %13 = sbr.rel (0) target = $region13
  $region12: #{deformable_transformer_forward.47} parent=0 // pred_region
    _
  $region13: #{deformable_transformer_forward.47} parent=0 // pred_fallthru
    _
  %p14 = scmp.eq.s32.totalorder 0, 0
  // Predicated region
  $region14: #{deformable_transformer_forward.47} parent=0 // pred_check
    %p15 = pneg %p14
  $region15: #{deformable_transformer_forward.47} parent=0 // pred_check_branch
    %17 = sbr.rel (%p15) target = $region17
  $region16: #{deformable_transformer_forward.47} parent=0 // pred_region
    %18 = vst [vmem:[#allocation2] sm:$0xff] 0.0
    %19 = vst [vmem:[#allocation2 + $0x8] sm:$0xff] 0.0
    %20 = vst [vmem:[#allocation2 + $0x10] sm:$0xff] 0.0
    %21 = vst [vmem:[#allocation2 + $0x18] sm:$0xff] 0.0
    %22 = vst [vmem:[#allocation2 + $0x20] sm:$0xff] 0.0
    %23 = vst [vmem:[#allocation2 + $0x28] sm:$0xff] 0.0
    %24 = vst [vmem:[#allocation2 + $0x30] sm:$0xff] 0.0
    %25 = vst [vmem:[#allocation2 + $0x38] sm:$0xff] 0.0
    %26 = vst [vmem:[#allocation2 + $0x40] sm:$0xff] 0.0
    %27 = vst [vmem:[#allocation2 + $0x48] sm:$0xff] 0.0
    %28 = vst [vmem:[#allocation2 + $0x50] sm:$0xff] 0.0
    %29 = vst [vmem:[#allocation2 + $0x58] sm:$0xff] 0.0
    %30 = vst [vmem:[#allocation2 + $0x60] sm:$0xff] 0.0
    %31 = vst [vmem:[#allocation2 + $0x68] sm:$0xff] 0.0
    %32 = vst [vmem:[#allocation2 + $0x70] sm:$0xff] 0.0
    %33 = vst [vmem:[#allocation2 + $0x78] sm:$0xff] 0.0
    %34 = vst [vmem:[#allocation2 + $0x80] sm:$0xff] 0.0
    %35 = vst [vmem:[#allocation2 + $0x88] sm:$0xff] 0.0
    %36 = vst [vmem:[#allocation2 + $0x90] sm:$0xff] 0.0
    %37 = vst [vmem:[#allocation2 + $0x98] sm:$0xff] 0.0
  $region17: #{deformable_transformer_forward.47} parent=0 // pred_fallthru
    _
  %v38 = vld [vmem:[#allocation2] sm:$0xff]
  %v39 = vld [vmem:[#allocation2 + $0x8] sm:$0xff]
  %v40 = vld [vmem:[#allocation2 + $0x10] sm:$0xff]
  %v41 = vld [vmem:[#allocation2 + $0x18] sm:$0xff]
  %v42 = vld [vmem:[#allocation2 + $0x20] sm:$0xff]
  %v43 = vld [vmem:[#allocation2 + $0x28] sm:$0xff]
  %v44 = vld [vmem:[#allocation2 + $0x30] sm:$0xff]
  %v45 = vld [vmem:[#allocation2 + $0x38] sm:$0xff]
  %v46 = vld [vmem:[#allocation2 + $0x40] sm:$0xff]
  %v47 = vld [vmem:[#allocation2 + $0x48] sm:$0xff]
  %v48 = vld [vmem:[#allocation2 + $0x50] sm:$0xff]
  %v49 = vld [vmem:[#allocation2 + $0x58] sm:$0xff]
  %v50 = vld [vmem:[#allocation2 + $0x60] sm:$0xff]
  %v51 = vld [vmem:[#allocation2 + $0x68] sm:$0xff]
  %v52 = vld [vmem:[#allocation2 + $0x70] sm:$0xff]
  %v53 = vld [vmem:[#allocation2 + $0x78] sm:$0xff]
  %v54 = vld [vmem:[#allocation2 + $0x80] sm:$0xff]
  %v55 = vld [vmem:[#allocation2 + $0x88] sm:$0xff]
  %v56 = vld [vmem:[#allocation2 + $0x90] sm:$0xff]
  %v57 = vld [vmem:[#allocation2 + $0x98] sm:$0xff]
  %v58 = vld [vmem:[%s0] sm:$0xff]
  %v59 = vld [vmem:[%s0 + $0x8] sm:$0xff]
  %v60 = vld [vmem:[%s0 + $0x10] sm:$0xff]
  %v61 = vld [vmem:[%s0 + $0x18] sm:$0xff]
  %v62 = vld [vmem:[%s0 + $0x20] sm:$0xff]
  %v63 = vld [vmem:[%s0 + $0x28] sm:$0xff]
  %v64 = vld [vmem:[%s0 + $0x30] sm:$0xff]
  %v65 = vld [vmem:[%s0 + $0x38] sm:$0xff]
  %v66 = vld [vmem:[%s0 + $0x40] sm:$0xff]
  %v67 = vld [vmem:[%s0 + $0x48] sm:$0xff]
  %v68 = vld [vmem:[%s0 + $0x50] sm:$0xff]
  %v69 = vld [vmem:[%s0 + $0x58] sm:$0xff]
  %v70 = vld [vmem:[%s0 + $0x60] sm:$0xff]
  %v71 = vld [vmem:[%s0 + $0x68] sm:$0xff]
  %v72 = vld [vmem:[%s0 + $0x70] sm:$0xff]
  %v73 = vld [vmem:[%s0 + $0x78] sm:$0xff]
  %v74 = vld [vmem:[%s0 + $0x80] sm:$0xff]
  %v75 = vld [vmem:[%s0 + $0x88] sm:$0xff]
  %v76 = vld [vmem:[%s0 + $0x90] sm:$0xff]
  %v77 = vld [vmem:[%s0 + $0x98] sm:$0xff]
  %v78 = vld [vmem:[%s1] sm:$0xff]
  %v79 = vld [vmem:[%s1 + $0x8] sm:$0xff]
  %v80 = vld [vmem:[%s1 + $0x10] sm:$0xff]
  %v81 = vld [vmem:[%s1 + $0x18] sm:$0xff]
  %v82 = vld [vmem:[%s1 + $0x20] sm:$0xff]
  %v83 = vld [vmem:[%s1 + $0x28] sm:$0xff]
  %v84 = vld [vmem:[%s1 + $0x30] sm:$0xff]
  %v85 = vld [vmem:[%s1 + $0x38] sm:$0xff]
  %v86 = vld [vmem:[%s1 + $0x40] sm:$0xff]
  %v87 = vld [vmem:[%s1 + $0x48] sm:$0xff]
  %v88 = vld [vmem:[%s1 + $0x50] sm:$0xff]
  %v89 = vld [vmem:[%s1 + $0x58] sm:$0xff]
  %v90 = vld [vmem:[%s1 + $0x60] sm:$0xff]
  %v91 = vld [vmem:[%s1 + $0x68] sm:$0xff]
  %v92 = vld [vmem:[%s1 + $0x70] sm:$0xff]
  %v93 = vld [vmem:[%s1 + $0x78] sm:$0xff]
  %94 = vmatprep.subr.mxu0 0.0
  %95 = vmatpush1.msra.mxu0 %v78
  %96 = vmatprep.subr.mxu0 0.0
  %97 = vmatpush1.msra.mxu0 %v79
  %98 = vmatprep.subr.mxu0 0.0
  %99 = vmatpush1.msra.mxu0 %v80
  %100 = vmatprep.subr.mxu0 0.0
  %101 = vmatpush1.msra.mxu0 %v81
  %102 = vmatprep.subr.mxu0 0.0
  %103 = vmatpush1.msra.mxu0 %v82
  %104 = vmatprep.subr.mxu0 0.0
  %105 = vmatpush1.msra.mxu0 %v83
  %106 = vmatprep.subr.mxu0 0.0
  %107 = vmatpush1.msra.mxu0 %v84
  %108 = vmatprep.subr.mxu0 0.0
  %109 = vmatpush1.msra.mxu0 %v85
  %110 = vmatprep.subr.mxu0 0.0
  %111 = vmatpush1.msra.mxu0 %v86
  %112 = vmatprep.subr.mxu0 0.0
  %113 = vmatpush1.msra.mxu0 %v87
  %114 = vmatprep.subr.mxu0 0.0
  %115 = vmatpush1.msra.mxu0 %v88
  %116 = vmatprep.subr.mxu0 0.0
  %117 = vmatpush1.msra.mxu0 %v89
  %118 = vmatprep.subr.mxu0 0.0
  %119 = vmatpush1.msra.mxu0 %v90
  %120 = vmatprep.subr.mxu0 0.0
  %121 = vmatpush1.msra.mxu0 %v91
  %122 = vmatprep.subr.mxu0 0.0
  %123 = vmatpush1.msra.mxu0 %v92
  %124 = vmatprep.subr.mxu0 0.0
  %125 = vmatpush1.msra.mxu0 %v93
  %126 = vmatprep.subr.mxu0 0.0
  %127 = vmatpush1.msra.mxu0 0.0
  %128 = vmatprep.subr.mxu0 0.0
  %129 = vmatpush1.msra.mxu0 0.0
  %130 = vmatprep.subr.mxu0 0.0
  %131 = vmatpush1.msra.mxu0 0.0
  %132 = vmatprep.subr.mxu0 0.0
  %133 = vmatpush1.msra.mxu0 0.0
  %134 = vmatprep.subr.mxu0 0.0
  %135 = vmatpush1.msra.mxu0 0.0
  %136 = vmatprep.subr.mxu0 0.0
  %137 = vmatpush1.msra.mxu0 0.0
  %138 = vmatprep.subr.mxu0 0.0
  %139 = vmatpush1.msra.mxu0 0.0
  %140 = vmatprep.subr.mxu0 0.0
  %141 = vmatpush1.msra.mxu0 0.0
  %142 = vmatprep.subr.mxu0 0.0
  %143 = vmatpush1.msra.mxu0 0.0
  %144 = vmatprep.subr.mxu0 0.0
  %145 = vmatpush1.msra.mxu0 0.0
  %146 = vmatprep.subr.mxu0 0.0
  %147 = vmatpush1.msra.mxu0 0.0
  %148 = vmatprep.subr.mxu0 0.0
  %149 = vmatpush1.msra.mxu0 0.0
  %150 = vmatprep.subr.mxu0 0.0
  %151 = vmatpush1.msra.mxu0 0.0
  %152 = vmatprep.subr.mxu0 0.0
  %153 = vmatpush1.msra.mxu0 0.0
  %154 = vmatprep.subr.mxu0 0.0
  %155 = vmatpush1.msra.mxu0 0.0
  %156 = vmatprep.subr.mxu0 0.0
  %157 = vmatpush1.msra.mxu0 0.0
  %158 = vmatprep.mubr.f32.mxu0 0.0
  %159 = vmatmul.mubr.f32.gmra.mrb[0].mxu0 %v58
  %v160 = vpop.f32.mrb[0].mxu0
  %v161 = vadd.f32 0.0, %v160
  %v162 = vpop.f32.mrb[0].mxu0
  %163 = vmatprep.mubr.f32.mxu0 0.0
  %164 = vmatmul.mubr.f32.gmra.mrb[0].mxu0 %v59
  %v165 = vpop.f32.mrb[0].mxu0
  %v166 = vadd.f32 0.0, %v165
  %v167 = vpop.f32.mrb[0].mxu0
  %168 = vmatprep.mubr.f32.mxu0 0.0
  %169 = vmatmul.mubr.f32.gmra.mrb[0].mxu0 %v60
  %v170 = vpop.f32.mrb[0].mxu0
  %v171 = vadd.f32 0.0, %v170
  %v172 = vpop.f32.mrb[0].mxu0
  %173 = vmatprep.mubr.f32.mxu0 0.0
  %174 = vmatmul.mubr.f32.gmra.mrb[0].mxu0 %v61
  %v175 = vpop.f32.mrb[0].mxu0
  %v176 = vadd.f32 0.0, %v175
  %v177 = vpop.f32.mrb[0].mxu0
  %178 = vmatprep.mubr.f32.mxu0 0.0
  %179 = vmatmul.mubr.f32.gmra.mrb[0].mxu0 %v62
  %v180 = vpop.f32.mrb[0].mxu0
  %v181 = vadd.f32 0.0, %v180
  %v182 = vpop.f32.mrb[0].mxu0
  %183 = vmatprep.mubr.f32.mxu0 0.0
  %184 = vmatmul.mubr.f32.gmra.mrb[0].mxu0 %v63
  %v185 = vpop.f32.mrb[0].mxu0
  %v186 = vadd.f32 0.0, %v185
  %v187 = vpop.f32.mrb[0].mxu0
  %188 = vmatprep.mubr.f32.mxu0 0.0
  %189 = vmatmul.mubr.f32.gmra.mrb[0].mxu0 %v64
  %v190 = vpop.f32.mrb[0].mxu0
  %v191 = vadd.f32 0.0, %v190
  %v192 = vpop.f32.mrb[0].mxu0
  %193 = vmatprep.mubr.f32.mxu0 0.0
  %194 = vmatmul.mubr.f32.gmra.mrb[0].mxu0 %v65
  %v195 = vpop.f32.mrb[0].mxu0
  %v196 = vadd.f32 0.0, %v195
  %v197 = vpop.f32.mrb[0].mxu0
  %198 = vmatprep.mubr.f32.mxu0 0.0
  %199 = vmatmul.mubr.f32.gmra.mrb[0].mxu0 %v66
  %v200 = vpop.f32.mrb[0].mxu0
  %v201 = vadd.f32 0.0, %v200
  %v202 = vpop.f32.mrb[0].mxu0
  %203 = vmatprep.mubr.f32.mxu0 0.0
  %204 = vmatmul.mubr.f32.gmra.mrb[0].mxu0 %v67
  %v205 = vpop.f32.mrb[0].mxu0
  %v206 = vadd.f32 0.0, %v205
  %v207 = vpop.f32.mrb[0].mxu0
  %208 = vmatprep.mubr.f32.mxu0 0.0
  %209 = vmatmul.mubr.f32.gmra.mrb[0].mxu0 %v68
  %v210 = vpop.f32.mrb[0].mxu0
  %v211 = vadd.f32 0.0, %v210
  %v212 = vpop.f32.mrb[0].mxu0
  %213 = vmatprep.mubr.f32.mxu0 0.0
  %214 = vmatmul.mubr.f32.gmra.mrb[0].mxu0 %v69
  %v215 = vpop.f32.mrb[0].mxu0
  %v216 = vadd.f32 0.0, %v215
  %v217 = vpop.f32.mrb[0].mxu0
  %218 = vmatprep.mubr.f32.mxu0 0.0
  %219 = vmatmul.mubr.f32.gmra.mrb[0].mxu0 %v70
  %v220 = vpop.f32.mrb[0].mxu0
  %v221 = vadd.f32 0.0, %v220
  %v222 = vpop.f32.mrb[0].mxu0
  %223 = vmatprep.mubr.f32.mxu0 0.0
  %224 = vmatmul.mubr.f32.gmra.mrb[0].mxu0 %v71
  %v225 = vpop.f32.mrb[0].mxu0
  %v226 = vadd.f32 0.0, %v225
  %v227 = vpop.f32.mrb[0].mxu0
  %228 = vmatprep.mubr.f32.mxu0 0.0
  %229 = vmatmul.mubr.f32.gmra.mrb[0].mxu0 %v72
  %v230 = vpop.f32.mrb[0].mxu0
  %v231 = vadd.f32 0.0, %v230
  %v232 = vpop.f32.mrb[0].mxu0
  %233 = vmatprep.mubr.f32.mxu0 0.0
  %234 = vmatmul.mubr.f32.gmra.mrb[0].mxu0 %v73
  %v235 = vpop.f32.mrb[0].mxu0
  %v236 = vadd.f32 0.0, %v235
  %v237 = vpop.f32.mrb[0].mxu0
  %238 = vmatprep.mubr.f32.mxu0 0.0
  %239 = vmatmul.mubr.f32.gmra.mrb[0].mxu0 %v74
  %v240 = vpop.f32.mrb[0].mxu0
  %v241 = vadd.f32 0.0, %v240
  %v242 = vpop.f32.mrb[0].mxu0
  %243 = vmatprep.mubr.f32.mxu0 0.0
  %244 = vmatmul.mubr.f32.gmra.mrb[0].mxu0 %v75
  %v245 = vpop.f32.mrb[0].mxu0
  %v246 = vadd.f32 0.0, %v245
  %v247 = vpop.f32.mrb[0].mxu0
  %248 = vmatprep.mubr.f32.mxu0 0.0
  %249 = vmatmul.mubr.f32.gmra.mrb[0].mxu0 %v76
  %v250 = vpop.f32.mrb[0].mxu0
  %v251 = vadd.f32 0.0, %v250
  %v252 = vpop.f32.mrb[0].mxu0
  %253 = vmatprep.mubr.f32.mxu0 0.0
  %254 = vmatmul.mubr.f32.gmra.mrb[0].mxu0 %v77
  %v255 = vpop.f32.mrb[0].mxu0
  %v256 = vadd.f32 0.0, %v255
  %v257 = vpop.f32.mrb[0].mxu0
  %258 = vdwg.mxu0
  %v259 = vadd.f32 %v38, %v161
  %v260 = vadd.f32 %v39, %v166
  %v261 = vadd.f32 %v40, %v171
  %v262 = vadd.f32 %v41, %v176
  %v263 = vadd.f32 %v42, %v181
  %v264 = vadd.f32 %v43, %v186
  %v265 = vadd.f32 %v44, %v191
  %v266 = vadd.f32 %v45, %v196
  %v267 = vadd.f32 %v46, %v201
  %v268 = vadd.f32 %v47, %v206
  %v269 = vadd.f32 %v48, %v211
  %v270 = vadd.f32 %v49, %v216
  %v271 = vadd.f32 %v50, %v221
  %v272 = vadd.f32 %v51, %v226
  %v273 = vadd.f32 %v52, %v231
  %v274 = vadd.f32 %v53, %v236
  %v275 = vadd.f32 %v54, %v241
  %v276 = vadd.f32 %v55, %v246
  %v277 = vadd.f32 %v56, %v251
  %v278 = vadd.f32 %v57, %v256
  %279 = vst [vmem:[#allocation2] sm:$0xff] %v259
  %280 = vst [vmem:[#allocation2 + $0x8] sm:$0xff] %v260
  %281 = vst [vmem:[#allocation2 + $0x10] sm:$0xff] %v261
  %282 = vst [vmem:[#allocation2 + $0x18] sm:$0xff] %v262
  %283 = vst [vmem:[#allocation2 + $0x20] sm:$0xff] %v263
  %284 = vst [vmem:[#allocation2 + $0x28] sm:$0xff] %v264
  %285 = vst [vmem:[#allocation2 + $0x30] sm:$0xff] %v265
  %286 = vst [vmem:[#allocation2 + $0x38] sm:$0xff] %v266
  %287 = vst [vmem:[#allocation2 + $0x40] sm:$0xff] %v267
  %288 = vst [vmem:[#allocation2 + $0x48] sm:$0xff] %v268
  %289 = vst [vmem:[#allocation2 + $0x50] sm:$0xff] %v269
  %290 = vst [vmem:[#allocation2 + $0x58] sm:$0xff] %v270
  %291 = vst [vmem:[#allocation2 + $0x60] sm:$0xff] %v271
  %292 = vst [vmem:[#allocation2 + $0x68] sm:$0xff] %v272
  %293 = vst [vmem:[#allocation2 + $0x70] sm:$0xff] %v273
  %294 = vst [vmem:[#allocation2 + $0x78] sm:$0xff] %v274
  %295 = vst [vmem:[#allocation2 + $0x80] sm:$0xff] %v275
  %296 = vst [vmem:[#allocation2 + $0x88] sm:$0xff] %v276
  %297 = vst [vmem:[#allocation2 + $0x90] sm:$0xff] %v277
  %298 = vst [vmem:[#allocation2 + $0x98] sm:$0xff] %v278
  // Predicated region
  $region18: #{deformable_transformer_forward.47} parent=0 // pred_check
    %p299 = pneg %p14
  $region19: #{deformable_transformer_forward.47} parent=0 // pred_check_branch
    %301 = sbr.rel (%p299) target = $region21
  $region20: #{deformable_transformer_forward.47} parent=0 // pred_region
    %v302 = vld [vmem:[#allocation2] sm:$0xff]
    %v303 = vld [vmem:[#allocation2 + $0x8] sm:$0xff]
    %v304 = vld [vmem:[#allocation2 + $0x10] sm:$0xff]
    %v305 = vld [vmem:[#allocation2 + $0x18] sm:$0xff]
    %v306 = vld [vmem:[#allocation2 + $0x20] sm:$0xff]
    %v307 = vld [vmem:[#allocation2 + $0x28] sm:$0xff]
    %v308 = vld [vmem:[#allocation2 + $0x30] sm:$0xff]
    %v309 = vld [vmem:[#allocation2 + $0x38] sm:$0xff]
    %v310 = vld [vmem:[#allocation2 + $0x40] sm:$0xff]
    %v311 = vld [vmem:[#allocation2 + $0x48] sm:$0xff]
    %v312 = vld [vmem:[#allocation2 + $0x50] sm:$0xff]
    %v313 = vld [vmem:[#allocation2 + $0x58] sm:$0xff]
    %v314 = vld [vmem:[#allocation2 + $0x60] sm:$0xff]
    %v315 = vld [vmem:[#allocation2 + $0x68] sm:$0xff]
    %v316 = vld [vmem:[#allocation2 + $0x70] sm:$0xff]
    %v317 = vld [vmem:[#allocation2 + $0x78] sm:$0xff]
    %v318 = vld [vmem:[#allocation2 + $0x80] sm:$0xff]
    %v319 = vld [vmem:[#allocation2 + $0x88] sm:$0xff]
    %v320 = vld [vmem:[#allocation2 + $0x90] sm:$0xff]
    %v321 = vld [vmem:[#allocation2 + $0x98] sm:$0xff]
    %v322 = vld [vmem:[%s2] sm:$0x1]
    %v324 = vlaneseq
    %v325 = vshrl.u32 %v324, 7
    %v326 = vsub.s32 0, %v325
    %v327 = vrot.slane %v322, %v326
    %v329 = vadd.f32 %v302, %v327
    %v330 = vadd.f32 %v303, %v327
    %v331 = vadd.f32 %v304, %v327
    %v332 = vadd.f32 %v305, %v327
    %v333 = vadd.f32 %v306, %v327
    %v334 = vadd.f32 %v307, %v327
    %v335 = vadd.f32 %v308, %v327
    %v336 = vadd.f32 %v309, %v327
    %v337 = vadd.f32 %v310, %v327
    %v338 = vadd.f32 %v311, %v327
    %v339 = vadd.f32 %v312, %v327
    %v340 = vadd.f32 %v313, %v327
    %v341 = vadd.f32 %v314, %v327
    %v342 = vadd.f32 %v315, %v327
    %v343 = vadd.f32 %v316, %v327
    %v344 = vadd.f32 %v317, %v327
    %v345 = vadd.f32 %v318, %v327
    %v346 = vadd.f32 %v319, %v327
    %v347 = vadd.f32 %v320, %v327
    %v348 = vadd.f32 %v321, %v327
    %v349 = vmax.f32 %v329, 0.0
    %v350 = vmax.f32 %v330, 0.0
    %v351 = vmax.f32 %v331, 0.0
    %v352 = vmax.f32 %v332, 0.0
    %v353 = vmax.f32 %v333, 0.0
    %v354 = vmax.f32 %v334, 0.0
    %v355 = vmax.f32 %v335, 0.0
    %v356 = vmax.f32 %v336, 0.0
    %v357 = vmax.f32 %v337, 0.0
    %v358 = vmax.f32 %v338, 0.0
    %v359 = vmax.f32 %v339, 0.0
    %v360 = vmax.f32 %v340, 0.0
    %v361 = vmax.f32 %v341, 0.0
    %v362 = vmax.f32 %v342, 0.0
    %v363 = vmax.f32 %v343, 0.0
    %v364 = vmax.f32 %v344, 0.0
    %v365 = vmax.f32 %v345, 0.0
    %v366 = vmax.f32 %v346, 0.0
    %v367 = vmax.f32 %v347, 0.0
    %v368 = vmax.f32 %v348, 0.0
    %369 = vst [vmem:[%s3] sm:$0xff] %v349
    %370 = vst [vmem:[%s3 + $0x8] sm:$0xff] %v350
    %371 = vst [vmem:[%s3 + $0x10] sm:$0xff] %v351
    %372 = vst [vmem:[%s3 + $0x18] sm:$0xff] %v352
    %373 = vst [vmem:[%s3 + $0x20] sm:$0xff] %v353
    %374 = vst [vmem:[%s3 + $0x28] sm:$0xff] %v354
    %375 = vst [vmem:[%s3 + $0x30] sm:$0xff] %v355
    %376 = vst [vmem:[%s3 + $0x38] sm:$0xff] %v356
    %377 = vst [vmem:[%s3 + $0x40] sm:$0xff] %v357
    %378 = vst [vmem:[%s3 + $0x48] sm:$0xff] %v358
    %379 = vst [vmem:[%s3 + $0x50] sm:$0xff] %v359
    %380 = vst [vmem:[%s3 + $0x58] sm:$0xff] %v360
    %381 = vst [vmem:[%s3 + $0x60] sm:$0xff] %v361
    %382 = vst [vmem:[%s3 + $0x68] sm:$0xff] %v362
    %383 = vst [vmem:[%s3 + $0x70] sm:$0xff] %v363
    %384 = vst [vmem:[%s3 + $0x78] sm:$0xff] %v364
    %385 = vst [vmem:[%s3 + $0x80] sm:$0xff] %v365
    %386 = vst [vmem:[%s3 + $0x88] sm:$0xff] %v366
    %387 = vst [vmem:[%s3 + $0x90] sm:$0xff] %v367
    %388 = vst [vmem:[%s3 + $0x98] sm:$0xff] %v368
  $region21: #{deformable_transformer_forward.47} parent=0 // pred_fallthru
    _
  // Predicated region
  $region22: #{deformable_transformer_forward.47} parent=0 // pred_check
    _
  $region23: #{deformable_transformer_forward.47} parent=0 // pred_check_branch
    %390 = sbr.rel (0) target = $region25
  $region24: #{deformable_transformer_forward.47} parent=0 // pred_region
    _
  $region25: #{deformable_transformer_forward.47} parent=0 // pred_fallthru
    _
  // Predicated region
  $region26: #{deformable_transformer_forward.47} parent=0 // pred_check
    _
  $region27: #{deformable_transformer_forward.47} parent=0 // pred_check_branch
    %392 = sbr.rel (0) target = $region29
  $region28: #{deformable_transformer_forward.47} parent=0 // pred_region
    _
  $region29: #{deformable_transformer_forward.47} parent=0 // pred_fallthru
    _

// kernel: deformable_transformer_forward.58
$region0: #{deformable_transformer_forward.58}
  #allocation0 [shape = 'u32[]', space=smem, size = 0x4, offset = 0x4, fixed_abs, tag = 'smem constant byte address 0x4 - core index']
  #allocation1 [shape = 'u32[144,128]{1,0:T(1,128)}', space=vmem, size = 0x12000, scoped, tag = 'internal scratch']
  #allocation2 [shape = 'f32[16,128]{1,0:T(8,128)}', space=vmem, size = 0x2000, scoped, tag = 'scratch operand']
  %s0 = inlined_call_operand.vmem [shape: f32[16,128], index: 0, kind: input, shape index: {}]
  %s1 = inlined_call_operand.vmem [shape: f32[128,128], index: 1, kind: input, shape index: {}]
  %s2 = inlined_call_operand.vmem [shape: f32[1,128], index: 2, kind: input, shape index: {}]
  %s3 = inlined_call_operand.vmem [shape: f32[16,128], index: 3, kind: output, shape index: {}]
  %s4 = sld [smem:[#allocation0]]
  $region30: #{deformable_transformer_forward.58} parent=0
    _
  %s6 = ssub.s32 1, %s4
  %s7 = scalar_select 0, %s6, %s4
  // Predicated region
  $region2: #{deformable_transformer_forward.58} parent=0 // pred_check
    _
  $region3: #{deformable_transformer_forward.58} parent=0 // pred_check_branch
    %9 = sbr.rel (0) target = $region5
  $region4: #{deformable_transformer_forward.58} parent=0 // pred_region
    _
  $region5: #{deformable_transformer_forward.58} parent=0 // pred_fallthru
    _
  // Predicated region
  $region6: #{deformable_transformer_forward.58} parent=0 // pred_check
    _
  $region7: #{deformable_transformer_forward.58} parent=0 // pred_check_branch
    %11 = sbr.rel (0) target = $region9
  $region8: #{deformable_transformer_forward.58} parent=0 // pred_region
    _
  $region9: #{deformable_transformer_forward.58} parent=0 // pred_fallthru
    _
  // Predicated region
  $region10: #{deformable_transformer_forward.58} parent=0 // pred_check
    _
  $region11: #{deformable_transformer_forward.58} parent=0 // pred_check_branch
    %13 = sbr.rel (0) target = $region13
  $region12: #{deformable_transformer_forward.58} parent=0 // pred_region
    _
  $region13: #{deformable_transformer_forward.58} parent=0 // pred_fallthru
    _
  %p14 = scmp.eq.s32.totalorder 0, 0
  // Predicated region
  $region14: #{deformable_transformer_forward.58} parent=0 // pred_check
    %p15 = pneg %p14
  $region15: #{deformable_transformer_forward.58} parent=0 // pred_check_branch
    %17 = sbr.rel (%p15) target = $region17
  $region16: #{deformable_transformer_forward.58} parent=0 // pred_region
    %18 = vst [vmem:[#allocation2] sm:$0xff] 0.0
    %19 = vst [vmem:[#allocation2 + $0x8] sm:$0xff] 0.0
  $region17: #{deformable_transformer_forward.58} parent=0 // pred_fallthru
    _
  %v20 = vld [vmem:[#allocation2] sm:$0xff]
  %v21 = vld [vmem:[#allocation2 + $0x8] sm:$0xff]
  %v22 = vld [vmem:[%s0] sm:$0xff]
  %v23 = vld [vmem:[%s0 + $0x8] sm:$0xff]
  %v24 = vld [vmem:[%s1] sm:$0xff]
  %v25 = vld [vmem:[%s1 + $0x8] sm:$0xff]
  %v26 = vld [vmem:[%s1 + $0x10] sm:$0xff]
  %v27 = vld [vmem:[%s1 + $0x18] sm:$0xff]
  %v28 = vld [vmem:[%s1 + $0x20] sm:$0xff]
  %v29 = vld [vmem:[%s1 + $0x28] sm:$0xff]
  %v30 = vld [vmem:[%s1 + $0x30] sm:$0xff]
  %v31 = vld [vmem:[%s1 + $0x38] sm:$0xff]
  %v32 = vld [vmem:[%s1 + $0x40] sm:$0xff]
  %v33 = vld [vmem:[%s1 + $0x48] sm:$0xff]
  %v34 = vld [vmem:[%s1 + $0x50] sm:$0xff]
  %v35 = vld [vmem:[%s1 + $0x58] sm:$0xff]
  %v36 = vld [vmem:[%s1 + $0x60] sm:$0xff]
  %v37 = vld [vmem:[%s1 + $0x68] sm:$0xff]
  %v38 = vld [vmem:[%s1 + $0x70] sm:$0xff]
  %v39 = vld [vmem:[%s1 + $0x78] sm:$0xff]
  %40 = vmatprep.subr.mxu0 0.0
  %41 = vmatpush1.msra.mxu0 %v24
  %42 = vmatprep.subr.mxu0 0.0
  %43 = vmatpush1.msra.mxu0 %v25
  %44 = vmatprep.subr.mxu0 0.0
  %45 = vmatpush1.msra.mxu0 %v26
  %46 = vmatprep.subr.mxu0 0.0
  %47 = vmatpush1.msra.mxu0 %v27
  %48 = vmatprep.subr.mxu0 0.0
  %49 = vmatpush1.msra.mxu0 %v28
  %50 = vmatprep.subr.mxu0 0.0
  %51 = vmatpush1.msra.mxu0 %v29
  %52 = vmatprep.subr.mxu0 0.0
  %53 = vmatpush1.msra.mxu0 %v30
  %54 = vmatprep.subr.mxu0 0.0
  %55 = vmatpush1.msra.mxu0 %v31
  %56 = vmatprep.subr.mxu0 0.0
  %57 = vmatpush1.msra.mxu0 %v32
  %58 = vmatprep.subr.mxu0 0.0
  %59 = vmatpush1.msra.mxu0 %v33
  %60 = vmatprep.subr.mxu0 0.0
  %61 = vmatpush1.msra.mxu0 %v34
  %62 = vmatprep.subr.mxu0 0.0
  %63 = vmatpush1.msra.mxu0 %v35
  %64 = vmatprep.subr.mxu0 0.0
  %65 = vmatpush1.msra.mxu0 %v36
  %66 = vmatprep.subr.mxu0 0.0
  %67 = vmatpush1.msra.mxu0 %v37
  %68 = vmatprep.subr.mxu0 0.0
  %69 = vmatpush1.msra.mxu0 %v38
  %70 = vmatprep.subr.mxu0 0.0
  %71 = vmatpush1.msra.mxu0 %v39
  %72 = vmatprep.subr.mxu0 0.0
  %73 = vmatpush1.msra.mxu0 0.0
  %74 = vmatprep.subr.mxu0 0.0
  %75 = vmatpush1.msra.mxu0 0.0
  %76 = vmatprep.subr.mxu0 0.0
  %77 = vmatpush1.msra.mxu0 0.0
  %78 = vmatprep.subr.mxu0 0.0
  %79 = vmatpush1.msra.mxu0 0.0
  %80 = vmatprep.subr.mxu0 0.0
  %81 = vmatpush1.msra.mxu0 0.0
  %82 = vmatprep.subr.mxu0 0.0
  %83 = vmatpush1.msra.mxu0 0.0
  %84 = vmatprep.subr.mxu0 0.0
  %85 = vmatpush1.msra.mxu0 0.0
  %86 = vmatprep.subr.mxu0 0.0
  %87 = vmatpush1.msra.mxu0 0.0
  %88 = vmatprep.subr.mxu0 0.0
  %89 = vmatpush1.msra.mxu0 0.0
  %90 = vmatprep.subr.mxu0 0.0
  %91 = vmatpush1.msra.mxu0 0.0
  %92 = vmatprep.subr.mxu0 0.0
  %93 = vmatpush1.msra.mxu0 0.0
  %94 = vmatprep.subr.mxu0 0.0
  %95 = vmatpush1.msra.mxu0 0.0
  %96 = vmatprep.subr.mxu0 0.0
  %97 = vmatpush1.msra.mxu0 0.0
  %98 = vmatprep.subr.mxu0 0.0
  %99 = vmatpush1.msra.mxu0 0.0
  %100 = vmatprep.subr.mxu0 0.0
  %101 = vmatpush1.msra.mxu0 0.0
  %102 = vmatprep.subr.mxu0 0.0
  %103 = vmatpush1.msra.mxu0 0.0
  %104 = vmatprep.mubr.f32.mxu0 0.0
  %105 = vmatmul.mubr.f32.gmra.mrb[0].mxu0 %v22
  %v106 = vpop.f32.mrb[0].mxu0
  %v107 = vadd.f32 0.0, %v106
  %v108 = vpop.f32.mrb[0].mxu0
  %109 = vmatprep.mubr.f32.mxu0 0.0
  %110 = vmatmul.mubr.f32.gmra.mrb[0].mxu0 %v23
  %v111 = vpop.f32.mrb[0].mxu0
  %v112 = vadd.f32 0.0, %v111
  %v113 = vpop.f32.mrb[0].mxu0
  %114 = vdwg.mxu0
  %v115 = vadd.f32 %v20, %v107
  %v116 = vadd.f32 %v21, %v112
  %117 = vst [vmem:[#allocation2] sm:$0xff] %v115
  %118 = vst [vmem:[#allocation2 + $0x8] sm:$0xff] %v116
  // Predicated region
  $region18: #{deformable_transformer_forward.58} parent=0 // pred_check
    %p119 = pneg %p14
  $region19: #{deformable_transformer_forward.58} parent=0 // pred_check_branch
    %121 = sbr.rel (%p119) target = $region21
  $region20: #{deformable_transformer_forward.58} parent=0 // pred_region
    %v122 = vld [vmem:[#allocation2] sm:$0xff]
    %v123 = vld [vmem:[#allocation2 + $0x8] sm:$0xff]
    %v124 = vld [vmem:[%s2] sm:$0x1]
    %v126 = vlaneseq
    %v127 = vshrl.u32 %v126, 7
    %v128 = vsub.s32 0, %v127
    %v129 = vrot.slane %v124, %v128
    %v131 = vadd.f32 %v122, %v129
    %v132 = vadd.f32 %v123, %v129
    %133 = vst [vmem:[%s3] sm:$0xff] %v131
    %134 = vst [vmem:[%s3 + $0x8] sm:$0xff] %v132
  $region21: #{deformable_transformer_forward.58} parent=0 // pred_fallthru
    _
  // Predicated region
  $region22: #{deformable_transformer_forward.58} parent=0 // pred_check
    _
  $region23: #{deformable_transformer_forward.58} parent=0 // pred_check_branch
    %136 = sbr.rel (0) target = $region25
  $region24: #{deformable_transformer_forward.58} parent=0 // pred_region
    _
  $region25: #{deformable_transformer_forward.58} parent=0 // pred_fallthru
    _
  // Predicated region
  $region26: #{deformable_transformer_forward.58} parent=0 // pred_check
    _
  $region27: #{deformable_transformer_forward.58} parent=0 // pred_check_branch
    %138 = sbr.rel (0) target = $region29
  $region28: #{deformable_transformer_forward.58} parent=0 // pred_region
    _
  $region29: #{deformable_transformer_forward.58} parent=0 // pred_fallthru
    _

// kernel: deformable_transformer_forward.62
$region0: #{deformable_transformer_forward.62}
  #allocation0 [shape = 'u32[]', space=smem, size = 0x4, offset = 0x4, fixed_abs, tag = 'smem constant byte address 0x4 - core index']
  #allocation1 [shape = 'u32[144,128]{1,0:T(1,128)}', space=vmem, size = 0x12000, scoped, tag = 'internal scratch']
  %s0 = inlined_call_operand.vmem [shape: f32[16,32], index: 0, kind: input, shape index: {}]
  %s1 = inlined_call_operand.vmem [shape: f32[16,32], index: 1, kind: input, shape index: {}, may-alias: {1,4}]
  %s2 = inlined_call_operand.vmem [shape: f32[1,32], index: 2, kind: input, shape index: {}]
  %s3 = inlined_call_operand.vmem [shape: f32[1,32], index: 3, kind: input, shape index: {}]
  %s4 = inlined_call_operand.vmem [shape: f32[16,32], index: 4, kind: output, shape index: {}, may-alias: {1,4}]
  %s5 = sld [smem:[#allocation0]]
  $region26: #{deformable_transformer_forward.62} parent=0
    _
  %s7 = ssub.s32 1, %s5
  %s8 = scalar_select 0, %s7, %s5
  // Predicated region
  $region2: #{deformable_transformer_forward.62} parent=0 // pred_check
    _
  $region3: #{deformable_transformer_forward.62} parent=0 // pred_check_branch
    %10 = sbr.rel (0) target = $region5
  $region4: #{deformable_transformer_forward.62} parent=0 // pred_region
    _
  $region5: #{deformable_transformer_forward.62} parent=0 // pred_fallthru
    _
  // Predicated region
  $region6: #{deformable_transformer_forward.62} parent=0 // pred_check
    _
  $region7: #{deformable_transformer_forward.62} parent=0 // pred_check_branch
    %12 = sbr.rel (0) target = $region9
  $region8: #{deformable_transformer_forward.62} parent=0 // pred_region
    _
  $region9: #{deformable_transformer_forward.62} parent=0 // pred_fallthru
    _
  // Predicated region
  $region10: #{deformable_transformer_forward.62} parent=0 // pred_check
    _
  $region11: #{deformable_transformer_forward.62} parent=0 // pred_check_branch
    %14 = sbr.rel (0) target = $region13
  $region12: #{deformable_transformer_forward.62} parent=0 // pred_region
    _
  $region13: #{deformable_transformer_forward.62} parent=0 // pred_fallthru
    _
  // Predicated region
  $region14: #{deformable_transformer_forward.62} parent=0 // pred_check
    _
  $region15: #{deformable_transformer_forward.62} parent=0 // pred_check_branch
    %16 = sbr.rel (0) target = $region17
  $region16: #{deformable_transformer_forward.62} parent=0 // pred_region
    _
  $region17: #{deformable_transformer_forward.62} parent=0 // pred_fallthru
    _
  %v17 = vld [vmem:[%s0] sm:$0xff]
  %v18 = vld [vmem:[%s0 + $0x8] sm:$0xff]
  %v19 = vld [vmem:[%s1] sm:$0xff]
  %v20 = vld [vmem:[%s1 + $0x8] sm:$0xff]
  %v21 = vadd.f32 %v17, %v19
  %v22 = vadd.f32 %v18, %v20
  %vm23 = vcmask 261120
  %v24 = vsel %vm23, %v21, 0.0
  %25 = vadd.xlane.f32.xlu0 %v24
  %v26 = vpop.xlane.xlu0 %25
  %v27 = vsel %vm23, %v22, 0.0
  %28 = vadd.xlane.f32.xlu0 %v27
  %v29 = vpop.xlane.xlu0 %28
  %v30 = vrcp.pop 32.0
  %v31 = vmul.f32 %v26, %v30
  %v32 = vmul.f32 %v29, %v30
  %v33 = vsub.f32 %v21, %v31
  %v34 = vsub.f32 %v22, %v32
  %v35 = vmul.f32 %v33, %v33
  %v36 = vmul.f32 %v34, %v34
  %v37 = vsel %vm23, %v35, 0.0
  %38 = vadd.xlane.f32.xlu0 %v37
  %v39 = vpop.xlane.xlu0 %38
  %v40 = vsel %vm23, %v36, 0.0
  %41 = vadd.xlane.f32.xlu0 %v40
  %v42 = vpop.xlane.xlu0 %41
  %v43 = vmul.f32 %v39, %v30
  %v44 = vmul.f32 %v42, %v30
  %v45 = vadd.f32 %v43, 1e-05
  %v46 = vadd.f32 %v44, 1e-05
  %v47 = vrsqrt.pop %v45
  %v48 = vrsqrt.pop %v46
  %v49 = vmul.f32 %v33, %v47
  %v50 = vmul.f32 %v34, %v48
  %v51 = vld [vmem:[%s2] sm:$0x1]
  %v53 = vlaneseq
  %v54 = vshrl.u32 %v53, 7
  %v55 = vsub.s32 0, %v54
  %v56 = vrot.slane %v51, %v55
  %v58 = vmul.f32 %v49, %v56
  %v59 = vmul.f32 %v50, %v56
  %v60 = vld [vmem:[%s3] sm:$0x1]
  %v62 = vlaneseq
  %v63 = vshrl.u32 %v62, 7
  %v64 = vsub.s32 0, %v63
  %v65 = vrot.slane %v60, %v64
  %v67 = vadd.f32 %v58, %v65
  %v68 = vadd.f32 %v59, %v65
  %69 = vst.msk [vmem:[%s4] sm:$0xff] %vm23, %v67
  %70 = vst.msk [vmem:[%s4 + $0x8] sm:$0xff] %vm23, %v68
  // Predicated region
  $region18: #{deformable_transformer_forward.62} parent=0 // pred_check
    _
  $region19: #{deformable_transformer_forward.62} parent=0 // pred_check_branch
    %72 = sbr.rel (0) target = $region21
  $region20: #{deformable_transformer_forward.62} parent=0 // pred_region
    _
  $region21: #{deformable_transformer_forward.62} parent=0 // pred_fallthru
    _
  // Predicated region
  $region22: #{deformable_transformer_forward.62} parent=0 // pred_check
    _
  $region23: #{deformable_transformer_forward.62} parent=0 // pred_check_branch
    %74 = sbr.rel (0) target = $region25
  $region24: #{deformable_transformer_forward.62} parent=0 // pred_region
    _
  $region25: #{deformable_transformer_forward.62} parent=0 // pred_fallthru
    _

// kernel: deformable_transformer_forward.60
$region0: #{deformable_transformer_forward.60}
  #allocation0 [shape = 'u32[]', space=smem, size = 0x4, offset = 0x4, fixed_abs, tag = 'smem constant byte address 0x4 - core index']
  #allocation1 [shape = 'u32[144,128]{1,0:T(1,128)}', space=vmem, size = 0x12000, scoped, tag = 'internal scratch']
  %s0 = inlined_call_operand.vmem [shape: f32[2,8,32], index: 0, kind: input, shape index: {}]
  %s1 = inlined_call_operand.vmem [shape: f32[2,8,32], index: 1, kind: input, shape index: {}]
  %s2 = inlined_call_operand.vmem [shape: f32[2,8,32], index: 2, kind: input, shape index: {}]
  %s3 = inlined_call_operand.vmem [shape: f32[2,8,32], index: 3, kind: output, shape index: {}]
  %s4 = sld [smem:[#allocation0]]
  $region45: #{deformable_transformer_forward.60} parent=0
    _
  %s6 = ssub.s32 1, %s4
  %s7 = scalar_select 0, %s6, %s4
  loop: start=0, step=1, limit=4
  $region2: #{deformable_transformer_forward.60} parent=0 // loop_pre_header
    _
  $region3: #{deformable_transformer_forward.60} parent=0 // loop_header
    %s9 = sphi 0, %s13
    %p10 = scmp.ge.s32.totalorder %s9, 4
    %s19 = sphi 0, %s21
    %s22 = sphi 0, %s19
    %s23 = sphi 0, %s22
    %s39 = sphi 0, %s23
    %s45 = sphi 0, %s47
    %s48 = sphi 0, %s45
    %s49 = sphi 0, %s48
    %s65 = sphi 0, %s49
    %s71 = sphi 0, %s73
    %s74 = sphi 0, %s71
    %s75 = sphi 0, %s74
    %s91 = sphi 0, %s75
    %s97 = sphi 0, %s99
    %s100 = sphi 0, %s97
    %s101 = sphi 0, %s100
    %s117 = sphi 0, %s101
  $region4: #{deformable_transformer_forward.60} parent=0 // loop_header_branch
    %12 = sbr.rel (%p10) target = $region8
  $region5: #{deformable_transformer_forward.60} parent=0 // loop_body
    %s14 = ssub.s32 %s9, 1
    %s15 = ssub.s32 %s9, 2
    %s16 = sadd.s32 %s9, 1
    %s17 = ssub.s32 %s9, %s16
    %p18 = scmp.eq.s32.totalorder %s17, 0
    %s20 = sadd.s32 %s19, 1
    %s21 = scalar_select %p18, %s19, %s20
    %p24 = pneg %p18
    %p25 = scmp.eq.s32.totalorder %s9, 1
    %p26 = por %p24, %p25
    %p27 = scmp.ne.s32.totalorder %s19, %s22
    %p28 = scmp.eq.s32.totalorder %s9, 0
    %p29 = por %p27, %p28
    %p30 = scmp.ne.s32.totalorder %s19, %s22
    %p31 = scmp.eq.s32.totalorder %s14, 1
    %p32 = por %p30, %p31
    %p33 = scmp.ne.s32.totalorder %s22, %s23
    %p34 = scmp.eq.s32.totalorder %s14, 0
    %p35 = por %p33, %p34
    %p36 = scmp.ne.s32.totalorder %s22, %s23
    %p37 = scmp.eq.s32.totalorder %s15, 1
    %p38 = por %p36, %p37
    %p40 = scmp.ne.s32.totalorder %s23, %s39
    %p41 = scmp.eq.s32.totalorder %s15, 0
    %p42 = por %p40, %p41
    %s43 = ssub.s32 %s9, %s16
    %p44 = scmp.eq.s32.totalorder %s43, 0
    %s46 = sadd.s32 %s45, 1
    %s47 = scalar_select %p44, %s45, %s46
    %p50 = pneg %p44
    %p51 = scmp.eq.s32.totalorder %s9, 1
    %p52 = por %p50, %p51
    %p53 = scmp.ne.s32.totalorder %s45, %s48
    %p54 = scmp.eq.s32.totalorder %s9, 0
    %p55 = por %p53, %p54
    %p56 = scmp.ne.s32.totalorder %s45, %s48
    %p57 = scmp.eq.s32.totalorder %s14, 1
    %p58 = por %p56, %p57
    %p59 = scmp.ne.s32.totalorder %s48, %s49
    %p60 = scmp.eq.s32.totalorder %s14, 0
    %p61 = por %p59, %p60
    %p62 = scmp.ne.s32.totalorder %s48, %s49
    %p63 = scmp.eq.s32.totalorder %s15, 1
    %p64 = por %p62, %p63
    %p66 = scmp.ne.s32.totalorder %s49, %s65
    %p67 = scmp.eq.s32.totalorder %s15, 0
    %p68 = por %p66, %p67
    %s69 = ssub.s32 %s9, %s16
    %p70 = scmp.eq.s32.totalorder %s69, 0
    %s72 = sadd.s32 %s71, 1
    %s73 = scalar_select %p70, %s71, %s72
    %p76 = pneg %p70
    %p77 = scmp.eq.s32.totalorder %s9, 1
    %p78 = por %p76, %p77
    %p79 = scmp.ne.s32.totalorder %s71, %s74
    %p80 = scmp.eq.s32.totalorder %s9, 0
    %p81 = por %p79, %p80
    %p82 = scmp.ne.s32.totalorder %s71, %s74
    %p83 = scmp.eq.s32.totalorder %s14, 1
    %p84 = por %p82, %p83
    %p85 = scmp.ne.s32.totalorder %s74, %s75
    %p86 = scmp.eq.s32.totalorder %s14, 0
    %p87 = por %p85, %p86
    %p88 = scmp.ne.s32.totalorder %s74, %s75
    %p89 = scmp.eq.s32.totalorder %s15, 1
    %p90 = por %p88, %p89
    %p92 = scmp.ne.s32.totalorder %s75, %s91
    %p93 = scmp.eq.s32.totalorder %s15, 0
    %p94 = por %p92, %p93
    %s95 = ssub.s32 %s9, %s16
    %p96 = scmp.eq.s32.totalorder %s95, 0
    %s98 = sadd.s32 %s97, 1
    %s99 = scalar_select %p96, %s97, %s98
    %p102 = pneg %p96
    %p103 = scmp.eq.s32.totalorder %s9, 1
    %p104 = por %p102, %p103
    %p105 = scmp.ne.s32.totalorder %s97, %s100
    %p106 = scmp.eq.s32.totalorder %s9, 0
    %p107 = por %p105, %p106
    %p108 = scmp.ne.s32.totalorder %s97, %s100
    %p109 = scmp.eq.s32.totalorder %s14, 1
    %p110 = por %p108, %p109
    %p111 = scmp.ne.s32.totalorder %s100, %s101
    %p112 = scmp.eq.s32.totalorder %s14, 0
    %p113 = por %p111, %p112
    %p114 = scmp.ne.s32.totalorder %s100, %s101
    %p115 = scmp.eq.s32.totalorder %s15, 1
    %p116 = por %p114, %p115
    %p118 = scmp.ne.s32.totalorder %s101, %s117
    %p119 = scmp.eq.s32.totalorder %s15, 0
    %p120 = por %p118, %p119
    %p121 = scmp.le.s32.totalorder 1, %s9
    %p122 = scmp.lt.s32.totalorder %s9, 3
    %p123 = pnand %p121, %p122
    %p124 = pneg %p123
    // Predicated region
    $region9: #{deformable_transformer_forward.60} parent=5 // pred_check
      _
    $region10: #{deformable_transformer_forward.60} parent=5 // pred_check_branch
      %126 = sbr.rel (%p123) target = $region12
    $region11: #{deformable_transformer_forward.60} parent=5 // pred_region
      %s127 = ssub.s32 %s9, 1
    $region12: #{deformable_transformer_forward.60} parent=5 // pred_fallthru
      _
    %p128 = scmp.lt.s32.totalorder %s9, 2
    // Predicated region
    $region13: #{deformable_transformer_forward.60} parent=5 // pred_check
      %p129 = pneg %p128
    $region14: #{deformable_transformer_forward.60} parent=5 // pred_check_branch
      %131 = sbr.rel (%p129) target = $region16
    $region15: #{deformable_transformer_forward.60} parent=5 // pred_region
      // Predicated region
      $region17: #{deformable_transformer_forward.60} parent=15 // pred_check
        %p132 = pneg %p29
      $region18: #{deformable_transformer_forward.60} parent=15 // pred_check_branch
        %134 = sbr.rel (%p132) target = $region20
      $region19: #{deformable_transformer_forward.60} parent=15 // pred_region
        %p135 = scmp.lt.s32.totalorder %s9, 1
        %s136 = scalar_select %p135, %s9, 1
        %s137 = smul.addr %s136, 8
        %s138 = scalar_lea.vmem %s0, %s137
      $region20: #{deformable_transformer_forward.60} parent=15 // pred_fallthru
        _
      // Predicated region
      $region21: #{deformable_transformer_forward.60} parent=15 // pred_check
        %p139 = pneg %p55
      $region22: #{deformable_transformer_forward.60} parent=15 // pred_check_branch
        %141 = sbr.rel (%p139) target = $region24
      $region23: #{deformable_transformer_forward.60} parent=15 // pred_region
        %p142 = scmp.lt.s32.totalorder %s9, 1
        %s143 = scalar_select %p142, %s9, 1
        %s144 = smul.addr %s143, 8
        %s145 = scalar_lea.vmem %s1, %s144
      $region24: #{deformable_transformer_forward.60} parent=15 // pred_fallthru
        _
      // Predicated region
      $region25: #{deformable_transformer_forward.60} parent=15 // pred_check
        %p146 = pneg %p81
      $region26: #{deformable_transformer_forward.60} parent=15 // pred_check_branch
        %148 = sbr.rel (%p146) target = $region28
      $region27: #{deformable_transformer_forward.60} parent=15 // pred_region
        %p149 = scmp.lt.s32.totalorder %s9, 1
        %s150 = scalar_select %p149, %s9, 1
        %s151 = smul.addr %s150, 8
        %s152 = scalar_lea.vmem %s2, %s151
      $region28: #{deformable_transformer_forward.60} parent=15 // pred_fallthru
        _
    $region16: #{deformable_transformer_forward.60} parent=5 // pred_fallthru
      _
    %p153 = scmp.le.s32.totalorder 1, %s9
    %p154 = scmp.lt.s32.totalorder %s9, 3
    %p155 = pnand %p153, %p154
    %p156 = pneg %p155
    // Predicated region
    $region29: #{deformable_transformer_forward.60} parent=5 // pred_check
      _
    $region30: #{deformable_transformer_forward.60} parent=5 // pred_check_branch
      %158 = sbr.rel (%p155) target = $region32
    $region31: #{deformable_transformer_forward.60} parent=5 // pred_region
      %s159 = ssub.s32 %s9, 1
      %p160 = scmp.lt.s32.totalorder %s14, 1
      %s161 = scalar_select %p160, %s14, 1
      %s162 = smul.addr %s161, 8
      %s163 = scalar_lea.vmem %s0, %s162
      %p164 = pneg %p35
      %p165 = pneg %p32
      %p166 = scmp.lt.s32.totalorder %s14, 1
      %s167 = scalar_select %p166, %s14, 1
      %s168 = smul.addr %s167, 8
      %s169 = scalar_lea.vmem %s1, %s168
      %p170 = pneg %p61
      %p171 = pneg %p58
      %p172 = scmp.lt.s32.totalorder %s14, 1
      %s173 = scalar_select %p172, %s14, 1
      %s174 = smul.addr %s173, 8
      %s175 = scalar_lea.vmem %s2, %s174
      %p176 = pneg %p87
      %p177 = pneg %p84
      %p178 = pneg %p113
      %p179 = pneg %p110
      %p180 = scmp.lt.s32.totalorder %s14, 1
      %s181 = scalar_select %p180, %s14, 1
      %s182 = smul.addr %s181, 8
      %s183 = scalar_lea.vmem %s3, %s182
      %p184 = scmp.lt.s32.totalorder %s14, 1
      %s185 = scalar_select %p184, %s14, 1
      %s186 = smul.addr %s185, 8
      %s187 = scalar_lea.vmem %s0, %s186
      %p188 = scmp.lt.s32.totalorder %s14, 1
      %s189 = scalar_select %p188, %s14, 1
      %s190 = smul.addr %s189, 8
      %s191 = scalar_lea.vmem %s1, %s190
      %p192 = scmp.lt.s32.totalorder %s14, 1
      %s193 = scalar_select %p192, %s14, 1
      %s194 = smul.addr %s193, 8
      %s195 = scalar_lea.vmem %s2, %s194
      %p196 = scmp.lt.s32.totalorder %s14, 1
      %s197 = scalar_select %p196, %s14, 1
      %s198 = smul.addr %s197, 8
      %s199 = scalar_lea.vmem %s3, %s198
      %v200 = vld [vmem:[%s187] sm:$0xff]
      %v201 = vld [vmem:[%s191] sm:$0xff]
      %v202 = vld [vmem:[%s195] sm:$0xff]
      %vm203 = vcmask 64512
      %v205 = vsel %vm203, %v200, 0
      %v208 = vsel %vm203, %v201, 0
      %210 = vmatprep.subr.mxu0 0.0
      %211 = vmatpush1.xpose.msra.mxu0 %v208
      %212 = vmatprep.subr.mxu0 0.0
      %213 = vmatpush1.xpose.msra.mxu0 0.0
      %214 = vmatprep.subr.mxu0 0.0
      %215 = vmatpush1.xpose.msra.mxu0 0.0
      %216 = vmatprep.subr.mxu0 0.0
      %217 = vmatpush1.xpose.msra.mxu0 0.0
      %218 = vmatprep.subr.mxu0 0.0
      %219 = vmatpush1.xpose.msra.mxu0 0.0
      %220 = vmatprep.subr.mxu0 0.0
      %221 = vmatpush1.xpose.msra.mxu0 0.0
      %222 = vmatprep.subr.mxu0 0.0
      %223 = vmatpush1.xpose.msra.mxu0 0.0
      %224 = vmatprep.subr.mxu0 0.0
      %225 = vmatpush1.xpose.msra.mxu0 0.0
      %226 = vmatprep.subr.mxu0 0.0
      %227 = vmatpush1.xpose.msra.mxu0 0.0
      %228 = vmatprep.subr.mxu0 0.0
      %229 = vmatpush1.xpose.msra.mxu0 0.0
      %230 = vmatprep.subr.mxu0 0.0
      %231 = vmatpush1.xpose.msra.mxu0 0.0
      %232 = vmatprep.subr.mxu0 0.0
      %233 = vmatpush1.xpose.msra.mxu0 0.0
      %234 = vmatprep.subr.mxu0 0.0
      %235 = vmatpush1.xpose.msra.mxu0 0.0
      %236 = vmatprep.subr.mxu0 0.0
      %237 = vmatpush1.xpose.msra.mxu0 0.0
      %238 = vmatprep.subr.mxu0 0.0
      %239 = vmatpush1.xpose.msra.mxu0 0.0
      %240 = vmatprep.subr.mxu0 0.0
      %241 = vmatpush1.xpose.msra.mxu0 0.0
      %242 = vmatprep.subr.mxu0 0.0
      %243 = vmatpush1.xpose.msra.mxu0 0.0
      %244 = vmatprep.subr.mxu0 0.0
      %245 = vmatpush1.xpose.msra.mxu0 0.0
      %246 = vmatprep.subr.mxu0 0.0
      %247 = vmatpush1.xpose.msra.mxu0 0.0
      %248 = vmatprep.subr.mxu0 0.0
      %249 = vmatpush1.xpose.msra.mxu0 0.0
      %250 = vmatprep.subr.mxu0 0.0
      %251 = vmatpush1.xpose.msra.mxu0 0.0
      %252 = vmatprep.subr.mxu0 0.0
      %253 = vmatpush1.xpose.msra.mxu0 0.0
      %254 = vmatprep.subr.mxu0 0.0
      %255 = vmatpush1.xpose.msra.mxu0 0.0
      %256 = vmatprep.subr.mxu0 0.0
      %257 = vmatpush1.xpose.msra.mxu0 0.0
      %258 = vmatprep.subr.mxu0 0.0
      %259 = vmatpush1.xpose.msra.mxu0 0.0
      %260 = vmatprep.subr.mxu0 0.0
      %261 = vmatpush1.xpose.msra.mxu0 0.0
      %262 = vmatprep.subr.mxu0 0.0
      %263 = vmatpush1.xpose.msra.mxu0 0.0
      %264 = vmatprep.subr.mxu0 0.0
      %265 = vmatpush1.xpose.msra.mxu0 0.0
      %266 = vmatprep.subr.mxu0 0.0
      %267 = vmatpush1.xpose.msra.mxu0 0.0
      %268 = vmatprep.subr.mxu0 0.0
      %269 = vmatpush1.xpose.msra.mxu0 0.0
      %270 = vmatprep.subr.mxu0 0.0
      %271 = vmatpush1.xpose.msra.mxu0 0.0
      %272 = vmatprep.subr.mxu0 0.0
      %273 = vmatpush1.xpose.msra.mxu0 0.0
      %274 = vmatprep.mubr.f32.mxu0 0.0
      %275 = vmatmul.mubr.f32.gmra.mrb[0].mxu0 %v205
      %v276 = vpop.f32.mrb[0].mxu0
      %v277 = vadd.f32 0.0, %v276
      %v278 = vpop.f32.mrb[0].mxu0
      %279 = vdwg.mxu0
      %v280 = vmul.f32 %v277, 0.35355338
      %v281 = vsel %vm203, %v280, -inf
      %282 = vmax.xlane.f32.xlu0 %v281
      %v283 = vpop.xlane.xlu0 %282
      %v284 = vsub.f32 %v280, %v283
      %v285 = vmul.f32 %v284, 1.442695
      %v286 = vpow.pop %v285
      %v287 = vsel %vm203, %v286, 0.0
      %288 = vadd.xlane.f32.xlu0 %v287
      %v289 = vpop.xlane.xlu0 %288
      %v290 = vrcp.pop %v289
      %v291 = vmul.f32 %v286, %v290
      %v293 = vsel %vm203, %v291, 0
      %295 = vmatprep.subr.mxu0 0.0
      %296 = vmatpush1.msra.mxu0 %v202
      %297 = vmatprep.subr.mxu0 0.0
      %298 = vmatpush1.msra.mxu0 0.0
      %299 = vmatprep.subr.mxu0 0.0
      %300 = vmatpush1.msra.mxu0 0.0
      %301 = vmatprep.subr.mxu0 0.0
      %302 = vmatpush1.msra.mxu0 0.0
      %303 = vmatprep.subr.mxu0 0.0
      %304 = vmatpush1.msra.mxu0 0.0
      %305 = vmatprep.subr.mxu0 0.0
      %306 = vmatpush1.msra.mxu0 0.0
      %307 = vmatprep.subr.mxu0 0.0
      %308 = vmatpush1.msra.mxu0 0.0
      %309 = vmatprep.subr.mxu0 0.0
      %310 = vmatpush1.msra.mxu0 0.0
      %311 = vmatprep.subr.mxu0 0.0
      %312 = vmatpush1.msra.mxu0 0.0
      %313 = vmatprep.subr.mxu0 0.0
      %314 = vmatpush1.msra.mxu0 0.0
      %315 = vmatprep.subr.mxu0 0.0
      %316 = vmatpush1.msra.mxu0 0.0
      %317 = vmatprep.subr.mxu0 0.0
      %318 = vmatpush1.msra.mxu0 0.0
      %319 = vmatprep.subr.mxu0 0.0
      %320 = vmatpush1.msra.mxu0 0.0
      %321 = vmatprep.subr.mxu0 0.0
      %322 = vmatpush1.msra.mxu0 0.0
      %323 = vmatprep.subr.mxu0 0.0
      %324 = vmatpush1.msra.mxu0 0.0
      %325 = vmatprep.subr.mxu0 0.0
      %326 = vmatpush1.msra.mxu0 0.0
      %327 = vmatprep.subr.mxu0 0.0
      %328 = vmatpush1.msra.mxu0 0.0
      %329 = vmatprep.subr.mxu0 0.0
      %330 = vmatpush1.msra.mxu0 0.0
      %331 = vmatprep.subr.mxu0 0.0
      %332 = vmatpush1.msra.mxu0 0.0
      %333 = vmatprep.subr.mxu0 0.0
      %334 = vmatpush1.msra.mxu0 0.0
      %335 = vmatprep.subr.mxu0 0.0
      %336 = vmatpush1.msra.mxu0 0.0
      %337 = vmatprep.subr.mxu0 0.0
      %338 = vmatpush1.msra.mxu0 0.0
      %339 = vmatprep.subr.mxu0 0.0
      %340 = vmatpush1.msra.mxu0 0.0
      %341 = vmatprep.subr.mxu0 0.0
      %342 = vmatpush1.msra.mxu0 0.0
      %343 = vmatprep.subr.mxu0 0.0
      %344 = vmatpush1.msra.mxu0 0.0
      %345 = vmatprep.subr.mxu0 0.0
      %346 = vmatpush1.msra.mxu0 0.0
      %347 = vmatprep.subr.mxu0 0.0
      %348 = vmatpush1.msra.mxu0 0.0
      %349 = vmatprep.subr.mxu0 0.0
      %350 = vmatpush1.msra.mxu0 0.0
      %351 = vmatprep.subr.mxu0 0.0
      %352 = vmatpush1.msra.mxu0 0.0
      %353 = vmatprep.subr.mxu0 0.0
      %354 = vmatpush1.msra.mxu0 0.0
      %355 = vmatprep.subr.mxu0 0.0
      %356 = vmatpush1.msra.mxu0 0.0
      %357 = vmatprep.subr.mxu0 0.0
      %358 = vmatpush1.msra.mxu0 0.0
      %359 = vmatprep.mubr.f32.mxu0 0.0
      %360 = vmatmul.mubr.f32.gmra.mrb[0].mxu0 %v293
      %v361 = vpop.f32.mrb[0].mxu0
      %v362 = vadd.f32 0.0, %v361
      %v363 = vpop.f32.mrb[0].mxu0
      %364 = vdwg.mxu0
      %365 = vrot.lane.b32.xlu0 %v200, 120
      %v366 = vpop.permute.xlu0 %365
      %367 = vrot.lane.b32.xlu0 %v201, 120
      %v368 = vpop.permute.xlu0 %367
      %v369 = vsel %vm203, %v366, 0
      %v371 = vsel %vm203, %v368, 0
      %373 = vmatprep.subr.mxu0 0.0
      %374 = vmatpush1.xpose.msra.mxu0 %v371
      %375 = vmatprep.subr.mxu0 0.0
      %376 = vmatpush1.xpose.msra.mxu0 0.0
      %377 = vmatprep.subr.mxu0 0.0
      %378 = vmatpush1.xpose.msra.mxu0 0.0
      %379 = vmatprep.subr.mxu0 0.0
      %380 = vmatpush1.xpose.msra.mxu0 0.0
      %381 = vmatprep.subr.mxu0 0.0
      %382 = vmatpush1.xpose.msra.mxu0 0.0
      %383 = vmatprep.subr.mxu0 0.0
      %384 = vmatpush1.xpose.msra.mxu0 0.0
      %385 = vmatprep.subr.mxu0 0.0
      %386 = vmatpush1.xpose.msra.mxu0 0.0
      %387 = vmatprep.subr.mxu0 0.0
      %388 = vmatpush1.xpose.msra.mxu0 0.0
      %389 = vmatprep.subr.mxu0 0.0
      %390 = vmatpush1.xpose.msra.mxu0 0.0
      %391 = vmatprep.subr.mxu0 0.0
      %392 = vmatpush1.xpose.msra.mxu0 0.0
      %393 = vmatprep.subr.mxu0 0.0
      %394 = vmatpush1.xpose.msra.mxu0 0.0
      %395 = vmatprep.subr.mxu0 0.0
      %396 = vmatpush1.xpose.msra.mxu0 0.0
      %397 = vmatprep.subr.mxu0 0.0
      %398 = vmatpush1.xpose.msra.mxu0 0.0
      %399 = vmatprep.subr.mxu0 0.0
      %400 = vmatpush1.xpose.msra.mxu0 0.0
      %401 = vmatprep.subr.mxu0 0.0
      %402 = vmatpush1.xpose.msra.mxu0 0.0
      %403 = vmatprep.subr.mxu0 0.0
      %404 = vmatpush1.xpose.msra.mxu0 0.0
      %405 = vmatprep.subr.mxu0 0.0
      %406 = vmatpush1.xpose.msra.mxu0 0.0
      %407 = vmatprep.subr.mxu0 0.0
      %408 = vmatpush1.xpose.msra.mxu0 0.0
      %409 = vmatprep.subr.mxu0 0.0
      %410 = vmatpush1.xpose.msra.mxu0 0.0
      %411 = vmatprep.subr.mxu0 0.0
      %412 = vmatpush1.xpose.msra.mxu0 0.0
      %413 = vmatprep.subr.mxu0 0.0
      %414 = vmatpush1.xpose.msra.mxu0 0.0
      %415 = vmatprep.subr.mxu0 0.0
      %416 = vmatpush1.xpose.msra.mxu0 0.0
      %417 = vmatprep.subr.mxu0 0.0
      %418 = vmatpush1.xpose.msra.mxu0 0.0
      %419 = vmatprep.subr.mxu0 0.0
      %420 = vmatpush1.xpose.msra.mxu0 0.0
      %421 = vmatprep.subr.mxu0 0.0
      %422 = vmatpush1.xpose.msra.mxu0 0.0
      %423 = vmatprep.subr.mxu0 0.0
      %424 = vmatpush1.xpose.msra.mxu0 0.0
      %425 = vmatprep.subr.mxu0 0.0
      %426 = vmatpush1.xpose.msra.mxu0 0.0
      %427 = vmatprep.subr.mxu0 0.0
      %428 = vmatpush1.xpose.msra.mxu0 0.0
      %429 = vmatprep.subr.mxu0 0.0
      %430 = vmatpush1.xpose.msra.mxu0 0.0
      %431 = vmatprep.subr.mxu0 0.0
      %432 = vmatpush1.xpose.msra.mxu0 0.0
      %433 = vmatprep.subr.mxu0 0.0
      %434 = vmatpush1.xpose.msra.mxu0 0.0
      %435 = vmatprep.subr.mxu0 0.0
      %436 = vmatpush1.xpose.msra.mxu0 0.0
      %437 = vmatprep.mubr.f32.mxu0 0.0
      %438 = vmatmul.mubr.f32.gmra.mrb[0].mxu0 %v369
      %v439 = vpop.f32.mrb[0].mxu0
      %v440 = vadd.f32 0.0, %v439
      %v441 = vpop.f32.mrb[0].mxu0
      %442 = vdwg.mxu0
      %v443 = vmul.f32 %v440, 0.35355338
      %v444 = vsel %vm203, %v443, -inf
      %445 = vmax.xlane.f32.xlu0 %v444
      %v446 = vpop.xlane.xlu0 %445
      %v447 = vsub.f32 %v443, %v446
      %v448 = vmul.f32 %v447, 1.442695
      %v449 = vpow.pop %v448
      %v450 = vsel %vm203, %v449, 0.0
      %451 = vadd.xlane.f32.xlu0 %v450
      %v452 = vpop.xlane.xlu0 %451
      %v453 = vrcp.pop %v452
      %v454 = vmul.f32 %v449, %v453
      %456 = vrot.lane.b32.xlu0 %v202, 120
      %v457 = vpop.permute.xlu0 %456
      %v460 = vsel %vm203, %v454, 0
      %462 = vmatprep.subr.mxu0 0.0
      %463 = vmatpush1.msra.mxu0 %v457
      %464 = vmatprep.subr.mxu0 0.0
      %465 = vmatpush1.msra.mxu0 0.0
      %466 = vmatprep.subr.mxu0 0.0
      %467 = vmatpush1.msra.mxu0 0.0
      %468 = vmatprep.subr.mxu0 0.0
      %469 = vmatpush1.msra.mxu0 0.0
      %470 = vmatprep.subr.mxu0 0.0
      %471 = vmatpush1.msra.mxu0 0.0
      %472 = vmatprep.subr.mxu0 0.0
      %473 = vmatpush1.msra.mxu0 0.0
      %474 = vmatprep.subr.mxu0 0.0
      %475 = vmatpush1.msra.mxu0 0.0
      %476 = vmatprep.subr.mxu0 0.0
      %477 = vmatpush1.msra.mxu0 0.0
      %478 = vmatprep.subr.mxu0 0.0
      %479 = vmatpush1.msra.mxu0 0.0
      %480 = vmatprep.subr.mxu0 0.0
      %481 = vmatpush1.msra.mxu0 0.0
      %482 = vmatprep.subr.mxu0 0.0
      %483 = vmatpush1.msra.mxu0 0.0
      %484 = vmatprep.subr.mxu0 0.0
      %485 = vmatpush1.msra.mxu0 0.0
      %486 = vmatprep.subr.mxu0 0.0
      %487 = vmatpush1.msra.mxu0 0.0
      %488 = vmatprep.subr.mxu0 0.0
      %489 = vmatpush1.msra.mxu0 0.0
      %490 = vmatprep.subr.mxu0 0.0
      %491 = vmatpush1.msra.mxu0 0.0
      %492 = vmatprep.subr.mxu0 0.0
      %493 = vmatpush1.msra.mxu0 0.0
      %494 = vmatprep.subr.mxu0 0.0
      %495 = vmatpush1.msra.mxu0 0.0
      %496 = vmatprep.subr.mxu0 0.0
      %497 = vmatpush1.msra.mxu0 0.0
      %498 = vmatprep.subr.mxu0 0.0
      %499 = vmatpush1.msra.mxu0 0.0
      %500 = vmatprep.subr.mxu0 0.0
      %501 = vmatpush1.msra.mxu0 0.0
      %502 = vmatprep.subr.mxu0 0.0
      %503 = vmatpush1.msra.mxu0 0.0
      %504 = vmatprep.subr.mxu0 0.0
      %505 = vmatpush1.msra.mxu0 0.0
      %506 = vmatprep.subr.mxu0 0.0
      %507 = vmatpush1.msra.mxu0 0.0
      %508 = vmatprep.subr.mxu0 0.0
      %509 = vmatpush1.msra.mxu0 0.0
      %510 = vmatprep.subr.mxu0 0.0
      %511 = vmatpush1.msra.mxu0 0.0
      %512 = vmatprep.subr.mxu0 0.0
      %513 = vmatpush1.msra.mxu0 0.0
      %514 = vmatprep.subr.mxu0 0.0
      %515 = vmatpush1.msra.mxu0 0.0
      %516 = vmatprep.subr.mxu0 0.0
      %517 = vmatpush1.msra.mxu0 0.0
      %518 = vmatprep.subr.mxu0 0.0
      %519 = vmatpush1.msra.mxu0 0.0
      %520 = vmatprep.subr.mxu0 0.0
      %521 = vmatpush1.msra.mxu0 0.0
      %522 = vmatprep.subr.mxu0 0.0
      %523 = vmatpush1.msra.mxu0 0.0
      %524 = vmatprep.subr.mxu0 0.0
      %525 = vmatpush1.msra.mxu0 0.0
      %526 = vmatprep.mubr.f32.mxu0 0.0
      %527 = vmatmul.mubr.f32.gmra.mrb[0].mxu0 %v460
      %v528 = vpop.f32.mrb[0].mxu0
      %v529 = vadd.f32 0.0, %v528
      %v530 = vpop.f32.mrb[0].mxu0
      %531 = vdwg.mxu0
      %532 = vrot.lane.b32.xlu0 %v200, 112
      %v533 = vpop.permute.xlu0 %532
      %534 = vrot.lane.b32.xlu0 %v201, 112
      %v535 = vpop.permute.xlu0 %534
      %v536 = vsel %vm203, %v533, 0
      %v538 = vsel %vm203, %v535, 0
      %540 = vmatprep.subr.mxu0 0.0
      %541 = vmatpush1.xpose.msra.mxu0 %v538
      %542 = vmatprep.subr.mxu0 0.0
      %543 = vmatpush1.xpose.msra.mxu0 0.0
      %544 = vmatprep.subr.mxu0 0.0
      %545 = vmatpush1.xpose.msra.mxu0 0.0
      %546 = vmatprep.subr.mxu0 0.0
      %547 = vmatpush1.xpose.msra.mxu0 0.0
      %548 = vmatprep.subr.mxu0 0.0
      %549 = vmatpush1.xpose.msra.mxu0 0.0
      %550 = vmatprep.subr.mxu0 0.0
      %551 = vmatpush1.xpose.msra.mxu0 0.0
      %552 = vmatprep.subr.mxu0 0.0
      %553 = vmatpush1.xpose.msra.mxu0 0.0
      %554 = vmatprep.subr.mxu0 0.0
      %555 = vmatpush1.xpose.msra.mxu0 0.0
      %556 = vmatprep.subr.mxu0 0.0
      %557 = vmatpush1.xpose.msra.mxu0 0.0
      %558 = vmatprep.subr.mxu0 0.0
      %559 = vmatpush1.xpose.msra.mxu0 0.0
      %560 = vmatprep.subr.mxu0 0.0
      %561 = vmatpush1.xpose.msra.mxu0 0.0
      %562 = vmatprep.subr.mxu0 0.0
      %563 = vmatpush1.xpose.msra.mxu0 0.0
      %564 = vmatprep.subr.mxu0 0.0
      %565 = vmatpush1.xpose.msra.mxu0 0.0
      %566 = vmatprep.subr.mxu0 0.0
      %567 = vmatpush1.xpose.msra.mxu0 0.0
      %568 = vmatprep.subr.mxu0 0.0
      %569 = vmatpush1.xpose.msra.mxu0 0.0
      %570 = vmatprep.subr.mxu0 0.0
      %571 = vmatpush1.xpose.msra.mxu0 0.0
      %572 = vmatprep.subr.mxu0 0.0
      %573 = vmatpush1.xpose.msra.mxu0 0.0
      %574 = vmatprep.subr.mxu0 0.0
      %575 = vmatpush1.xpose.msra.mxu0 0.0
      %576 = vmatprep.subr.mxu0 0.0
      %577 = vmatpush1.xpose.msra.mxu0 0.0
      %578 = vmatprep.subr.mxu0 0.0
      %579 = vmatpush1.xpose.msra.mxu0 0.0
      %580 = vmatprep.subr.mxu0 0.0
      %581 = vmatpush1.xpose.msra.mxu0 0.0
      %582 = vmatprep.subr.mxu0 0.0
      %583 = vmatpush1.xpose.msra.mxu0 0.0
      %584 = vmatprep.subr.mxu0 0.0
      %585 = vmatpush1.xpose.msra.mxu0 0.0
      %586 = vmatprep.subr.mxu0 0.0
      %587 = vmatpush1.xpose.msra.mxu0 0.0
      %588 = vmatprep.subr.mxu0 0.0
      %589 = vmatpush1.xpose.msra.mxu0 0.0
      %590 = vmatprep.subr.mxu0 0.0
      %591 = vmatpush1.xpose.msra.mxu0 0.0
      %592 = vmatprep.subr.mxu0 0.0
      %593 = vmatpush1.xpose.msra.mxu0 0.0
      %594 = vmatprep.subr.mxu0 0.0
      %595 = vmatpush1.xpose.msra.mxu0 0.0
      %596 = vmatprep.subr.mxu0 0.0
      %597 = vmatpush1.xpose.msra.mxu0 0.0
      %598 = vmatprep.subr.mxu0 0.0
      %599 = vmatpush1.xpose.msra.mxu0 0.0
      %600 = vmatprep.subr.mxu0 0.0
      %601 = vmatpush1.xpose.msra.mxu0 0.0
      %602 = vmatprep.subr.mxu0 0.0
      %603 = vmatpush1.xpose.msra.mxu0 0.0
      %604 = vmatprep.mubr.f32.mxu0 0.0
      %605 = vmatmul.mubr.f32.gmra.mrb[0].mxu0 %v536
      %v606 = vpop.f32.mrb[0].mxu0
      %v607 = vadd.f32 0.0, %v606
      %v608 = vpop.f32.mrb[0].mxu0
      %609 = vdwg.mxu0
      %v610 = vmul.f32 %v607, 0.35355338
      %v611 = vsel %vm203, %v610, -inf
      %612 = vmax.xlane.f32.xlu0 %v611
      %v613 = vpop.xlane.xlu0 %612
      %v614 = vsub.f32 %v610, %v613
      %v615 = vmul.f32 %v614, 1.442695
      %v616 = vpow.pop %v615
      %v617 = vsel %vm203, %v616, 0.0
      %618 = vadd.xlane.f32.xlu0 %v617
      %v619 = vpop.xlane.xlu0 %618
      %v620 = vrcp.pop %v619
      %v621 = vmul.f32 %v616, %v620
      %622 = vrot.lane.b32.xlu0 %v202, 112
      %v623 = vpop.permute.xlu0 %622
      %v626 = vsel %vm203, %v621, 0
      %628 = vmatprep.subr.mxu0 0.0
      %629 = vmatpush1.msra.mxu0 %v623
      %630 = vmatprep.subr.mxu0 0.0
      %631 = vmatpush1.msra.mxu0 0.0
      %632 = vmatprep.subr.mxu0 0.0
      %633 = vmatpush1.msra.mxu0 0.0
      %634 = vmatprep.subr.mxu0 0.0
      %635 = vmatpush1.msra.mxu0 0.0
      %636 = vmatprep.subr.mxu0 0.0
      %637 = vmatpush1.msra.mxu0 0.0
      %638 = vmatprep.subr.mxu0 0.0
      %639 = vmatpush1.msra.mxu0 0.0
      %640 = vmatprep.subr.mxu0 0.0
      %641 = vmatpush1.msra.mxu0 0.0
      %642 = vmatprep.subr.mxu0 0.0
      %643 = vmatpush1.msra.mxu0 0.0
      %644 = vmatprep.subr.mxu0 0.0
      %645 = vmatpush1.msra.mxu0 0.0
      %646 = vmatprep.subr.mxu0 0.0
      %647 = vmatpush1.msra.mxu0 0.0
      %648 = vmatprep.subr.mxu0 0.0
      %649 = vmatpush1.msra.mxu0 0.0
      %650 = vmatprep.subr.mxu0 0.0
      %651 = vmatpush1.msra.mxu0 0.0
      %652 = vmatprep.subr.mxu0 0.0
      %653 = vmatpush1.msra.mxu0 0.0
      %654 = vmatprep.subr.mxu0 0.0
      %655 = vmatpush1.msra.mxu0 0.0
      %656 = vmatprep.subr.mxu0 0.0
      %657 = vmatpush1.msra.mxu0 0.0
      %658 = vmatprep.subr.mxu0 0.0
      %659 = vmatpush1.msra.mxu0 0.0
      %660 = vmatprep.subr.mxu0 0.0
      %661 = vmatpush1.msra.mxu0 0.0
      %662 = vmatprep.subr.mxu0 0.0
      %663 = vmatpush1.msra.mxu0 0.0
      %664 = vmatprep.subr.mxu0 0.0
      %665 = vmatpush1.msra.mxu0 0.0
      %666 = vmatprep.subr.mxu0 0.0
      %667 = vmatpush1.msra.mxu0 0.0
      %668 = vmatprep.subr.mxu0 0.0
      %669 = vmatpush1.msra.mxu0 0.0
      %670 = vmatprep.subr.mxu0 0.0
      %671 = vmatpush1.msra.mxu0 0.0
      %672 = vmatprep.subr.mxu0 0.0
      %673 = vmatpush1.msra.mxu0 0.0
      %674 = vmatprep.subr.mxu0 0.0
      %675 = vmatpush1.msra.mxu0 0.0
      %676 = vmatprep.subr.mxu0 0.0
      %677 = vmatpush1.msra.mxu0 0.0
      %678 = vmatprep.subr.mxu0 0.0
      %679 = vmatpush1.msra.mxu0 0.0
      %680 = vmatprep.subr.mxu0 0.0
      %681 = vmatpush1.msra.mxu0 0.0
      %682 = vmatprep.subr.mxu0 0.0
      %683 = vmatpush1.msra.mxu0 0.0
      %684 = vmatprep.subr.mxu0 0.0
      %685 = vmatpush1.msra.mxu0 0.0
      %686 = vmatprep.subr.mxu0 0.0
      %687 = vmatpush1.msra.mxu0 0.0
      %688 = vmatprep.subr.mxu0 0.0
      %689 = vmatpush1.msra.mxu0 0.0
      %690 = vmatprep.subr.mxu0 0.0
      %691 = vmatpush1.msra.mxu0 0.0
      %692 = vmatprep.mubr.f32.mxu0 0.0
      %693 = vmatmul.mubr.f32.gmra.mrb[0].mxu0 %v626
      %v694 = vpop.f32.mrb[0].mxu0
      %v695 = vadd.f32 0.0, %v694
      %v696 = vpop.f32.mrb[0].mxu0
      %697 = vdwg.mxu0
      %698 = vrot.lane.b32.xlu0 %v200, 104
      %v699 = vpop.permute.xlu0 %698
      %700 = vrot.lane.b32.xlu0 %v201, 104
      %v701 = vpop.permute.xlu0 %700
      %v702 = vsel %vm203, %v699, 0
      %v704 = vsel %vm203, %v701, 0
      %706 = vmatprep.subr.mxu0 0.0
      %707 = vmatpush1.xpose.msra.mxu0 %v704
      %708 = vmatprep.subr.mxu0 0.0
      %709 = vmatpush1.xpose.msra.mxu0 0.0
      %710 = vmatprep.subr.mxu0 0.0
      %711 = vmatpush1.xpose.msra.mxu0 0.0
      %712 = vmatprep.subr.mxu0 0.0
      %713 = vmatpush1.xpose.msra.mxu0 0.0
      %714 = vmatprep.subr.mxu0 0.0
      %715 = vmatpush1.xpose.msra.mxu0 0.0
      %716 = vmatprep.subr.mxu0 0.0
      %717 = vmatpush1.xpose.msra.mxu0 0.0
      %718 = vmatprep.subr.mxu0 0.0
      %719 = vmatpush1.xpose.msra.mxu0 0.0
      %720 = vmatprep.subr.mxu0 0.0
      %721 = vmatpush1.xpose.msra.mxu0 0.0
      %722 = vmatprep.subr.mxu0 0.0
      %723 = vmatpush1.xpose.msra.mxu0 0.0
      %724 = vmatprep.subr.mxu0 0.0
      %725 = vmatpush1.xpose.msra.mxu0 0.0
      %726 = vmatprep.subr.mxu0 0.0
      %727 = vmatpush1.xpose.msra.mxu0 0.0
      %728 = vmatprep.subr.mxu0 0.0
      %729 = vmatpush1.xpose.msra.mxu0 0.0
      %730 = vmatprep.subr.mxu0 0.0
      %731 = vmatpush1.xpose.msra.mxu0 0.0
      %732 = vmatprep.subr.mxu0 0.0
      %733 = vmatpush1.xpose.msra.mxu0 0.0
      %734 = vmatprep.subr.mxu0 0.0
      %735 = vmatpush1.xpose.msra.mxu0 0.0
      %736 = vmatprep.subr.mxu0 0.0
      %737 = vmatpush1.xpose.msra.mxu0 0.0
      %738 = vmatprep.subr.mxu0 0.0
      %739 = vmatpush1.xpose.msra.mxu0 0.0
      %740 = vmatprep.subr.mxu0 0.0
      %741 = vmatpush1.xpose.msra.mxu0 0.0
      %742 = vmatprep.subr.mxu0 0.0
      %743 = vmatpush1.xpose.msra.mxu0 0.0
      %744 = vmatprep.subr.mxu0 0.0
      %745 = vmatpush1.xpose.msra.mxu0 0.0
      %746 = vmatprep.subr.mxu0 0.0
      %747 = vmatpush1.xpose.msra.mxu0 0.0
      %748 = vmatprep.subr.mxu0 0.0
      %749 = vmatpush1.xpose.msra.mxu0 0.0
      %750 = vmatprep.subr.mxu0 0.0
      %751 = vmatpush1.xpose.msra.mxu0 0.0
      %752 = vmatprep.subr.mxu0 0.0
      %753 = vmatpush1.xpose.msra.mxu0 0.0
      %754 = vmatprep.subr.mxu0 0.0
      %755 = vmatpush1.xpose.msra.mxu0 0.0
      %756 = vmatprep.subr.mxu0 0.0
      %757 = vmatpush1.xpose.msra.mxu0 0.0
      %758 = vmatprep.subr.mxu0 0.0
      %759 = vmatpush1.xpose.msra.mxu0 0.0
      %760 = vmatprep.subr.mxu0 0.0
      %761 = vmatpush1.xpose.msra.mxu0 0.0
      %762 = vmatprep.subr.mxu0 0.0
      %763 = vmatpush1.xpose.msra.mxu0 0.0
      %764 = vmatprep.subr.mxu0 0.0
      %765 = vmatpush1.xpose.msra.mxu0 0.0
      %766 = vmatprep.subr.mxu0 0.0
      %767 = vmatpush1.xpose.msra.mxu0 0.0
      %768 = vmatprep.subr.mxu0 0.0
      %769 = vmatpush1.xpose.msra.mxu0 0.0
      %770 = vmatprep.mubr.f32.mxu0 0.0
      %771 = vmatmul.mubr.f32.gmra.mrb[0].mxu0 %v702
      %v772 = vpop.f32.mrb[0].mxu0
      %v773 = vadd.f32 0.0, %v772
      %v774 = vpop.f32.mrb[0].mxu0
      %775 = vdwg.mxu0
      %v776 = vmul.f32 %v773, 0.35355338
      %v777 = vsel %vm203, %v776, -inf
      %778 = vmax.xlane.f32.xlu0 %v777
      %v779 = vpop.xlane.xlu0 %778
      %v780 = vsub.f32 %v776, %v779
      %v781 = vmul.f32 %v780, 1.442695
      %v782 = vpow.pop %v781
      %v783 = vsel %vm203, %v782, 0.0
      %784 = vadd.xlane.f32.xlu0 %v783
      %v785 = vpop.xlane.xlu0 %784
      %v786 = vrcp.pop %v785
      %v787 = vmul.f32 %v782, %v786
      %788 = vrot.lane.b32.xlu0 %v202, 104
      %v789 = vpop.permute.xlu0 %788
      %v792 = vsel %vm203, %v787, 0
      %794 = vmatprep.subr.mxu0 0.0
      %795 = vmatpush1.msra.mxu0 %v789
      %796 = vmatprep.subr.mxu0 0.0
      %797 = vmatpush1.msra.mxu0 0.0
      %798 = vmatprep.subr.mxu0 0.0
      %799 = vmatpush1.msra.mxu0 0.0
      %800 = vmatprep.subr.mxu0 0.0
      %801 = vmatpush1.msra.mxu0 0.0
      %802 = vmatprep.subr.mxu0 0.0
      %803 = vmatpush1.msra.mxu0 0.0
      %804 = vmatprep.subr.mxu0 0.0
      %805 = vmatpush1.msra.mxu0 0.0
      %806 = vmatprep.subr.mxu0 0.0
      %807 = vmatpush1.msra.mxu0 0.0
      %808 = vmatprep.subr.mxu0 0.0
      %809 = vmatpush1.msra.mxu0 0.0
      %810 = vmatprep.subr.mxu0 0.0
      %811 = vmatpush1.msra.mxu0 0.0
      %812 = vmatprep.subr.mxu0 0.0
      %813 = vmatpush1.msra.mxu0 0.0
      %814 = vmatprep.subr.mxu0 0.0
      %815 = vmatpush1.msra.mxu0 0.0
      %816 = vmatprep.subr.mxu0 0.0
      %817 = vmatpush1.msra.mxu0 0.0
      %818 = vmatprep.subr.mxu0 0.0
      %819 = vmatpush1.msra.mxu0 0.0
      %820 = vmatprep.subr.mxu0 0.0
      %821 = vmatpush1.msra.mxu0 0.0
      %822 = vmatprep.subr.mxu0 0.0
      %823 = vmatpush1.msra.mxu0 0.0
      %824 = vmatprep.subr.mxu0 0.0
      %825 = vmatpush1.msra.mxu0 0.0
      %826 = vmatprep.subr.mxu0 0.0
      %827 = vmatpush1.msra.mxu0 0.0
      %828 = vmatprep.subr.mxu0 0.0
      %829 = vmatpush1.msra.mxu0 0.0
      %830 = vmatprep.subr.mxu0 0.0
      %831 = vmatpush1.msra.mxu0 0.0
      %832 = vmatprep.subr.mxu0 0.0
      %833 = vmatpush1.msra.mxu0 0.0
      %834 = vmatprep.subr.mxu0 0.0
      %835 = vmatpush1.msra.mxu0 0.0
      %836 = vmatprep.subr.mxu0 0.0
      %837 = vmatpush1.msra.mxu0 0.0
      %838 = vmatprep.subr.mxu0 0.0
      %839 = vmatpush1.msra.mxu0 0.0
      %840 = vmatprep.subr.mxu0 0.0
      %841 = vmatpush1.msra.mxu0 0.0
      %842 = vmatprep.subr.mxu0 0.0
      %843 = vmatpush1.msra.mxu0 0.0
      %844 = vmatprep.subr.mxu0 0.0
      %845 = vmatpush1.msra.mxu0 0.0
      %846 = vmatprep.subr.mxu0 0.0
      %847 = vmatpush1.msra.mxu0 0.0
      %848 = vmatprep.subr.mxu0 0.0
      %849 = vmatpush1.msra.mxu0 0.0
      %850 = vmatprep.subr.mxu0 0.0
      %851 = vmatpush1.msra.mxu0 0.0
      %852 = vmatprep.subr.mxu0 0.0
      %853 = vmatpush1.msra.mxu0 0.0
      %854 = vmatprep.subr.mxu0 0.0
      %855 = vmatpush1.msra.mxu0 0.0
      %856 = vmatprep.subr.mxu0 0.0
      %857 = vmatpush1.msra.mxu0 0.0
      %858 = vmatprep.mubr.f32.mxu0 0.0
      %859 = vmatmul.mubr.f32.gmra.mrb[0].mxu0 %v792
      %v860 = vpop.f32.mrb[0].mxu0
      %v861 = vadd.f32 0.0, %v860
      %v862 = vpop.f32.mrb[0].mxu0
      %863 = vdwg.mxu0
      %865 = vrot.lane.b32.xlu0 %v529, 8
      %v866 = vpop.permute.xlu0 %865
      %869 = vrot.lane.b32.xlu0 %v695, 16
      %v870 = vpop.permute.xlu0 %869
      %873 = vrot.lane.b32.xlu0 %v861, 24
      %v874 = vpop.permute.xlu0 %873
      %v876 = vsel %vm203, %v362, %v866
      %vm877 = vcmask 130048
      %v878 = vsel %vm877, %v876, %v870
      %vm879 = vcmask 195584
      %v880 = vsel %vm879, %v878, %v874
      %vm881 = vcmask 261120
      %882 = vst.msk [vmem:[%s199] sm:$0xff] %vm881, %v880
      %p883 = scmp.lt.s32.totalorder %s14, 1
      %s884 = scalar_select %p883, %s14, 1
      %s885 = smul.addr %s884, 8
      %s886 = scalar_lea.vmem %s3, %s885
      // Predicated region
      $region33: #{deformable_transformer_forward.60} parent=31 // pred_check
        %p887 = pneg %p110
      $region34: #{deformable_transformer_forward.60} parent=31 // pred_check_branch
        %889 = sbr.rel (%p887) target = $region36
      $region35: #{deformable_transformer_forward.60} parent=31 // pred_region
        _
      $region36: #{deformable_transformer_forward.60} parent=31 // pred_fallthru
        _
    $region32: #{deformable_transformer_forward.60} parent=5 // pred_fallthru
      _
    %p890 = scmp.le.s32.totalorder 2, %s9
    // Predicated region
    $region37: #{deformable_transformer_forward.60} parent=5 // pred_check
      %p891 = pneg %p890
    $region38: #{deformable_transformer_forward.60} parent=5 // pred_check_branch
      %893 = sbr.rel (%p891) target = $region40
    $region39: #{deformable_transformer_forward.60} parent=5 // pred_region
      %s894 = ssub.s32 %s9, 2
      // Predicated region
      $region41: #{deformable_transformer_forward.60} parent=39 // pred_check
        %p895 = pneg %p116
      $region42: #{deformable_transformer_forward.60} parent=39 // pred_check_branch
        %897 = sbr.rel (%p895) target = $region44
      $region43: #{deformable_transformer_forward.60} parent=39 // pred_region
        %p898 = scmp.lt.s32.totalorder %s15, 1
        %s899 = scalar_select %p898, %s15, 1
        %s900 = smul.addr %s899, 8
        %s901 = scalar_lea.vmem %s3, %s900
      $region44: #{deformable_transformer_forward.60} parent=39 // pred_fallthru
        _
    $region40: #{deformable_transformer_forward.60} parent=5 // pred_fallthru
      _
  $region6: #{deformable_transformer_forward.60} parent=0 // loop_footer
    %s13 = sadd.s32 1, %s9
  $region7: #{deformable_transformer_forward.60} parent=0 // loop_footer_branch
    %8 = sbr.rel target = $region3
  $region8: #{deformable_transformer_forward.60} parent=0 // loop_exit
    _

// kernel: deformable_transformer_forward.68
$region0: #{deformable_transformer_forward.68}
  #allocation0 [shape = 'u32[]', space=smem, size = 0x4, offset = 0x4, fixed_abs, tag = 'smem constant byte address 0x4 - core index']
  #allocation1 [shape = 'u32[144,128]{1,0:T(1,128)}', space=vmem, size = 0x12000, scoped, tag = 'internal scratch']
  #allocation2 [shape = 'f32[16,128]{1,0:T(8,128)}', space=vmem, size = 0x2000, scoped, tag = 'scratch operand']
  %s0 = inlined_call_operand.vmem [shape: f32[16,128], index: 0, kind: input, shape index: {}]
  %s1 = inlined_call_operand.vmem [shape: f32[128,128], index: 1, kind: input, shape index: {}]
  %s2 = inlined_call_operand.vmem [shape: f32[1,128], index: 2, kind: input, shape index: {}]
  %s3 = inlined_call_operand.vmem [shape: f32[16,128], index: 3, kind: output, shape index: {}]
  %s4 = sld [smem:[#allocation0]]
  $region30: #{deformable_transformer_forward.68} parent=0
    _
  %s6 = ssub.s32 1, %s4
  %s7 = scalar_select 0, %s6, %s4
  // Predicated region
  $region2: #{deformable_transformer_forward.68} parent=0 // pred_check
    _
  $region3: #{deformable_transformer_forward.68} parent=0 // pred_check_branch
    %9 = sbr.rel (0) target = $region5
  $region4: #{deformable_transformer_forward.68} parent=0 // pred_region
    _
  $region5: #{deformable_transformer_forward.68} parent=0 // pred_fallthru
    _
  // Predicated region
  $region6: #{deformable_transformer_forward.68} parent=0 // pred_check
    _
  $region7: #{deformable_transformer_forward.68} parent=0 // pred_check_branch
    %11 = sbr.rel (0) target = $region9
  $region8: #{deformable_transformer_forward.68} parent=0 // pred_region
    _
  $region9: #{deformable_transformer_forward.68} parent=0 // pred_fallthru
    _
  // Predicated region
  $region10: #{deformable_transformer_forward.68} parent=0 // pred_check
    _
  $region11: #{deformable_transformer_forward.68} parent=0 // pred_check_branch
    %13 = sbr.rel (0) target = $region13
  $region12: #{deformable_transformer_forward.68} parent=0 // pred_region
    _
  $region13: #{deformable_transformer_forward.68} parent=0 // pred_fallthru
    _
  %p14 = scmp.eq.s32.totalorder 0, 0
  // Predicated region
  $region14: #{deformable_transformer_forward.68} parent=0 // pred_check
    %p15 = pneg %p14
  $region15: #{deformable_transformer_forward.68} parent=0 // pred_check_branch
    %17 = sbr.rel (%p15) target = $region17
  $region16: #{deformable_transformer_forward.68} parent=0 // pred_region
    %18 = vst [vmem:[#allocation2] sm:$0xff] 0.0
    %19 = vst [vmem:[#allocation2 + $0x8] sm:$0xff] 0.0
  $region17: #{deformable_transformer_forward.68} parent=0 // pred_fallthru
    _
  %v20 = vld [vmem:[#allocation2] sm:$0xff]
  %v21 = vld [vmem:[#allocation2 + $0x8] sm:$0xff]
  %v22 = vld [vmem:[%s0] sm:$0xff]
  %v23 = vld [vmem:[%s0 + $0x8] sm:$0xff]
  %v24 = vld [vmem:[%s1] sm:$0xff]
  %v25 = vld [vmem:[%s1 + $0x8] sm:$0xff]
  %v26 = vld [vmem:[%s1 + $0x10] sm:$0xff]
  %v27 = vld [vmem:[%s1 + $0x18] sm:$0xff]
  %v28 = vld [vmem:[%s1 + $0x20] sm:$0xff]
  %v29 = vld [vmem:[%s1 + $0x28] sm:$0xff]
  %v30 = vld [vmem:[%s1 + $0x30] sm:$0xff]
  %v31 = vld [vmem:[%s1 + $0x38] sm:$0xff]
  %v32 = vld [vmem:[%s1 + $0x40] sm:$0xff]
  %v33 = vld [vmem:[%s1 + $0x48] sm:$0xff]
  %v34 = vld [vmem:[%s1 + $0x50] sm:$0xff]
  %v35 = vld [vmem:[%s1 + $0x58] sm:$0xff]
  %v36 = vld [vmem:[%s1 + $0x60] sm:$0xff]
  %v37 = vld [vmem:[%s1 + $0x68] sm:$0xff]
  %v38 = vld [vmem:[%s1 + $0x70] sm:$0xff]
  %v39 = vld [vmem:[%s1 + $0x78] sm:$0xff]
  %40 = vmatprep.subr.mxu0 0.0
  %41 = vmatpush1.msra.mxu0 %v24
  %42 = vmatprep.subr.mxu0 0.0
  %43 = vmatpush1.msra.mxu0 %v25
  %44 = vmatprep.subr.mxu0 0.0
  %45 = vmatpush1.msra.mxu0 %v26
  %46 = vmatprep.subr.mxu0 0.0
  %47 = vmatpush1.msra.mxu0 %v27
  %48 = vmatprep.subr.mxu0 0.0
  %49 = vmatpush1.msra.mxu0 %v28
  %50 = vmatprep.subr.mxu0 0.0
  %51 = vmatpush1.msra.mxu0 %v29
  %52 = vmatprep.subr.mxu0 0.0
  %53 = vmatpush1.msra.mxu0 %v30
  %54 = vmatprep.subr.mxu0 0.0
  %55 = vmatpush1.msra.mxu0 %v31
  %56 = vmatprep.subr.mxu0 0.0
  %57 = vmatpush1.msra.mxu0 %v32
  %58 = vmatprep.subr.mxu0 0.0
  %59 = vmatpush1.msra.mxu0 %v33
  %60 = vmatprep.subr.mxu0 0.0
  %61 = vmatpush1.msra.mxu0 %v34
  %62 = vmatprep.subr.mxu0 0.0
  %63 = vmatpush1.msra.mxu0 %v35
  %64 = vmatprep.subr.mxu0 0.0
  %65 = vmatpush1.msra.mxu0 %v36
  %66 = vmatprep.subr.mxu0 0.0
  %67 = vmatpush1.msra.mxu0 %v37
  %68 = vmatprep.subr.mxu0 0.0
  %69 = vmatpush1.msra.mxu0 %v38
  %70 = vmatprep.subr.mxu0 0.0
  %71 = vmatpush1.msra.mxu0 %v39
  %72 = vmatprep.subr.mxu0 0.0
  %73 = vmatpush1.msra.mxu0 0.0
  %74 = vmatprep.subr.mxu0 0.0
  %75 = vmatpush1.msra.mxu0 0.0
  %76 = vmatprep.subr.mxu0 0.0
  %77 = vmatpush1.msra.mxu0 0.0
  %78 = vmatprep.subr.mxu0 0.0
  %79 = vmatpush1.msra.mxu0 0.0
  %80 = vmatprep.subr.mxu0 0.0
  %81 = vmatpush1.msra.mxu0 0.0
  %82 = vmatprep.subr.mxu0 0.0
  %83 = vmatpush1.msra.mxu0 0.0
  %84 = vmatprep.subr.mxu0 0.0
  %85 = vmatpush1.msra.mxu0 0.0
  %86 = vmatprep.subr.mxu0 0.0
  %87 = vmatpush1.msra.mxu0 0.0
  %88 = vmatprep.subr.mxu0 0.0
  %89 = vmatpush1.msra.mxu0 0.0
  %90 = vmatprep.subr.mxu0 0.0
  %91 = vmatpush1.msra.mxu0 0.0
  %92 = vmatprep.subr.mxu0 0.0
  %93 = vmatpush1.msra.mxu0 0.0
  %94 = vmatprep.subr.mxu0 0.0
  %95 = vmatpush1.msra.mxu0 0.0
  %96 = vmatprep.subr.mxu0 0.0
  %97 = vmatpush1.msra.mxu0 0.0
  %98 = vmatprep.subr.mxu0 0.0
  %99 = vmatpush1.msra.mxu0 0.0
  %100 = vmatprep.subr.mxu0 0.0
  %101 = vmatpush1.msra.mxu0 0.0
  %102 = vmatprep.subr.mxu0 0.0
  %103 = vmatpush1.msra.mxu0 0.0
  %104 = vmatprep.mubr.f32.mxu0 0.0
  %105 = vmatmul.mubr.f32.gmra.mrb[0].mxu0 %v22
  %v106 = vpop.f32.mrb[0].mxu0
  %v107 = vadd.f32 0.0, %v106
  %v108 = vpop.f32.mrb[0].mxu0
  %109 = vmatprep.mubr.f32.mxu0 0.0
  %110 = vmatmul.mubr.f32.gmra.mrb[0].mxu0 %v23
  %v111 = vpop.f32.mrb[0].mxu0
  %v112 = vadd.f32 0.0, %v111
  %v113 = vpop.f32.mrb[0].mxu0
  %114 = vdwg.mxu0
  %v115 = vadd.f32 %v20, %v107
  %v116 = vadd.f32 %v21, %v112
  %117 = vst [vmem:[#allocation2] sm:$0xff] %v115
  %118 = vst [vmem:[#allocation2 + $0x8] sm:$0xff] %v116
  // Predicated region
  $region18: #{deformable_transformer_forward.68} parent=0 // pred_check
    %p119 = pneg %p14
  $region19: #{deformable_transformer_forward.68} parent=0 // pred_check_branch
    %121 = sbr.rel (%p119) target = $region21
  $region20: #{deformable_transformer_forward.68} parent=0 // pred_region
    %v122 = vld [vmem:[#allocation2] sm:$0xff]
    %v123 = vld [vmem:[#allocation2 + $0x8] sm:$0xff]
    %v124 = vld [vmem:[%s2] sm:$0x1]
    %v126 = vlaneseq
    %v127 = vshrl.u32 %v126, 7
    %v128 = vsub.s32 0, %v127
    %v129 = vrot.slane %v124, %v128
    %v131 = vadd.f32 %v122, %v129
    %v132 = vadd.f32 %v123, %v129
    %v133 = vmax.f32 %v131, 0.0
    %v134 = vmax.f32 %v132, 0.0
    %135 = vst [vmem:[%s3] sm:$0xff] %v133
    %136 = vst [vmem:[%s3 + $0x8] sm:$0xff] %v134
  $region21: #{deformable_transformer_forward.68} parent=0 // pred_fallthru
    _
  // Predicated region
  $region22: #{deformable_transformer_forward.68} parent=0 // pred_check
    _
  $region23: #{deformable_transformer_forward.68} parent=0 // pred_check_branch
    %138 = sbr.rel (0) target = $region25
  $region24: #{deformable_transformer_forward.68} parent=0 // pred_region
    _
  $region25: #{deformable_transformer_forward.68} parent=0 // pred_fallthru
    _
  // Predicated region
  $region26: #{deformable_transformer_forward.68} parent=0 // pred_check
    _
  $region27: #{deformable_transformer_forward.68} parent=0 // pred_check_branch
    %140 = sbr.rel (0) target = $region29
  $region28: #{deformable_transformer_forward.68} parent=0 // pred_region
    _
  $region29: #{deformable_transformer_forward.68} parent=0 // pred_fallthru
    _

</llo_original>
